<compile_context>
chip_gen: v6e
topology: v6e:2x2x1
jax: 0.10.0
libtpu: 0.0.40
codegen_flags: <defaults>
</compile_context>

<pallas_src>
import functools

import jax
import jax.numpy as jnp
from jax.experimental import pallas as pl
from jax.experimental.pallas import tpu as pltpu

VERB_CONCEPT = 512
NOUN_CONCEPT = 1024
NUM_VERBS = 10
NUM_NOUNS = 20
SE_R = 16
BN_EPS = 1e-5
LANE = 128


def _round_up(x, m):
    return ((x + m - 1) // m) * m


def _encoder_kernel(lens_ref, x_ref, w012_ref, b012_ref,
                    se1w1_ref, se1w2_ref, se2w1_ref, se2w2_ref,
                    wv_ref, bv_ref, bnv_s_ref, bnv_b_ref,
                    wn_ref, bno_ref, bnn_s_ref, bnn_b_ref,
                    sent_ref, e1_ref, e2_ref, g1_ref, g2_ref, lv_ref, ln_ref,
                    acc_ref, *, BB, Tp, T_real, Dp):
    M = BB * Tp
    k = pl.program_id(1)
    nk = pl.num_programs(1)

    # ---- K-tiled fused matmul: (M, tk) @ (tk, 3*Dp+128) bf16 -> f32 accumulator ----
    xf = x_ref[...].reshape(M, -1)                                   # bf16
    part = jnp.dot(xf, w012_ref[...], preferred_element_type=jnp.float32)

    @pl.when(k == 0)
    def _():
        acc_ref[...] = part

    @pl.when(k > 0)
    def _():
        acc_ref[...] += part

    # ---- everything downstream only on the last K step ----
    @pl.when(k == nk - 1)
    def _():
        e012 = acc_ref[...] + b012_ref[...]
        e0f = e012[:, 0:Dp]                                          # (M, Dp) f32
        e1f = e012[:, Dp:2 * Dp]
        e2f = e012[:, 2 * Dp:3 * Dp]
        score = e012[:, 3 * Dp:3 * Dp + 1]           # folded ft_attn score (bias included)

        e1_3 = e1f.reshape(BB, Tp, Dp)
        e2_3 = e2f.reshape(BB, Tp, Dp)
        e1_ref[...] = e1_3
        e2_ref[...] = e2_3

        L = lens_ref[...]                                            # (BB, 1, 1) int32
        t3 = jax.lax.broadcasted_iota(jnp.int32, (BB, Tp, 1), 1)
        len_mask = t3 < L
        real_mask = (t3 < T_real).astype(jnp.float32)                # frame inside original T

        # masked softmax over time -> sentence embedding
        s = jnp.where(len_mask, score.reshape(BB, Tp, 1), -1e18)
        m = jnp.max(s, axis=1, keepdims=True)
        p = jnp.exp(s - m)
        denom = jnp.maximum(jnp.sum(p, axis=1, keepdims=True), 1e-30)
        p = p * pl.reciprocal(denom, approx=True)
        sent_ref[...] = jnp.sum(e0f.reshape(BB, Tp, Dp) * p, axis=1, keepdims=True)

        # SE gate vectors: AdaptiveAvgPool1d over all T_real original frames (PyTorch semantics)
        inv_t = 1.0 / T_real

        def se_gate(e3, w1, w2):
            y = jnp.sum(e3 * real_mask, axis=1) * inv_t              # (BB, Dp)
            h = jnp.maximum(jnp.dot(y, w1, preferred_element_type=jnp.float32), 0.0)
            return jax.nn.sigmoid(jnp.dot(h, w2, preferred_element_type=jnp.float32))

        g1_ref[...] = se_gate(e1_3, se1w1_ref[...], se1w2_ref[...]).reshape(BB, 1, Dp)
        g2_ref[...] = se_gate(e2_3, se2w1_ref[...], se2w2_ref[...]).reshape(BB, 1, Dp)

        # verb classifier: Conv1d(k=5, pad=2) = 5 accumulated bf16 dots; the time shifts are
        # rolls of the f32 partial products, pulling zeros from the pre-zeroed padded rows
        # (Tp >= T_real + 2 guarantees no cross-sample leakage through the circular roll).
        tflat = t3.reshape(M, 1)
        e1z = jnp.where(tflat < T_real, e1f, 0.0).astype(jnp.bfloat16)   # (M, Dp) bf16
        lv = None
        for j in range(5):
            o = j - 2
            pj = jnp.dot(e1z, wv_ref[j], preferred_element_type=jnp.float32)  # (M, 512)
            if o != 0:
                pj = pltpu.roll(pj, shift=(-o) % M, axis=0)
            lv = pj if lv is None else lv + pj
        lv = lv + bv_ref[...]
        lv_ref[...] = jax.nn.sigmoid(lv * bnv_s_ref[...] + bnv_b_ref[...]).reshape(
            BB, Tp, VERB_CONCEPT)

        # noun classifier: Conv1d(k=1) + BN(eval) + sigmoid
        ln = jnp.dot(e2f.astype(jnp.bfloat16), wn_ref[...],
                     preferred_element_type=jnp.float32) + bno_ref[...]
        ln_ref[...] = jax.nn.sigmoid(ln * bnn_s_ref[...] + bnn_b_ref[...]).reshape(
            BB, Tp, NOUN_CONCEPT)


def _pad2(a, rows, cols):
    return jnp.pad(a, ((0, rows - a.shape[0]), (0, cols - a.shape[1])))


def _wspec(shape):
    """Grid-invariant weight: single-buffered (no pointless double buffering)."""
    nd = len(shape)
    idx = lambda i, k, nd=nd: (0,) * nd
    try:
        return pl.BlockSpec(shape, idx, pipeline_mode=pl.Buffered(1))
    except (TypeError, AttributeError):      # older jax without pipeline_mode support
        return pl.BlockSpec(shape, idx)


def multilevel_encoder(inputs, input_lens, params, block_b=8):
    B, T, F = inputs.shape
    D = params["w0"].shape[1]
    hid = params["se1w1"].shape[1]

    # ---- pad feature dims to lane multiples (production dims usually already aligned) ----
    # TODO(synk): on v6e additionally pad M / K / N up to 256 multiples for the 2x256 MXU.
    Dp = _round_up(D, LANE)
    Fp = _round_up(F, LANE)
    Hp = _round_up(hid, LANE)
    # >= 2 padded frames (roll-based conv needs zeros there) + multiple of 16 (bf16 sublanes)
    Tp = _round_up(T + 2, 16)
    assert Tp - T >= 2

    # batch block: keep the batch grid axis >= 2 steps when possible (v7x megacore)
    BB = min(block_b, B)
    while BB > 1 and (B + BB - 1) // BB < 2:
        BB //= 2
    Bp = _round_up(B, BB)
    M = BB * Tp
    W = 3 * Dp + LANE                                 # fused weight width (incl. score block)
    tk = 512 if Fp % 512 == 0 else (256 if Fp % 256 == 0 else LANE)   # F tile for K-tiling

    # ---- host-side padding; inputs become bf16 (halves the dominant HBM stream) ----
    x = jnp.pad(inputs.astype(jnp.float32),
                ((0, Bp - B), (0, Tp - T), (0, Fp - F))).astype(jnp.bfloat16)
    lens3d = jnp.pad(input_lens.astype(jnp.int32), (0, Bp - B)).reshape(Bp, 1, 1)

    # ---- weight prep: fuse w0/w1/w2 + folded attention-score column, pad, cast to bf16 ----
    w0, w1, w2 = params["w0"], params["w1"], params["w2"]
    wscore = w0 @ params["wattn"]                                     # (F, 1)
    bscore = params["b0"] @ params["wattn"] + params["battn"]         # (1, 1)
    w012 = jnp.concatenate(
        [_pad2(w0, Fp, Dp), _pad2(w1, Fp, Dp), _pad2(w2, Fp, Dp),
         _pad2(wscore, Fp, LANE)], axis=1).astype(jnp.bfloat16)       # (Fp, W)
    b012 = jnp.concatenate(
        [_pad2(params["b0"], 1, Dp), _pad2(params["b1"], 1, Dp),
         _pad2(params["b2"], 1, Dp), _pad2(bscore, 1, LANE)], axis=1)  # (1, W) f32

    wv = jnp.pad(params["wv"], ((0, 0), (0, Dp - D), (0, 0))).astype(jnp.bfloat16)  # (5,Dp,V)
    wn = _pad2(params["wn"], Dp, NOUN_CONCEPT).astype(jnp.bfloat16)
    invariant = [
        b012,
        _pad2(params["se1w1"], Dp, Hp), _pad2(params["se1w2"], Hp, Dp),
        _pad2(params["se2w1"], Dp, Hp), _pad2(params["se2w2"], Hp, Dp),
        wv, params["bv"], params["bnv_s"], params["bnv_b"],
        wn, params["bno"], params["bnn_s"], params["bnn_b"],
    ]

    in_specs = [
        pl.BlockSpec((BB, 1, 1), lambda i, k: (i, 0, 0)),             # lens
        pl.BlockSpec((BB, Tp, tk), lambda i, k: (i, 0, k)),           # inputs (bf16, K-tiled)
        pl.BlockSpec((tk, W), lambda i, k: (k, 0)),                   # fused weights (K-tiled)
    ] + [_wspec(w.shape) for w in invariant]

    out_shape = (
        jax.ShapeDtypeStruct((Bp, 1, Dp), jnp.float32),               # sent_embeds
        jax.ShapeDtypeStruct((Bp, Tp, Dp), jnp.float32),              # embeds[1]
        jax.ShapeDtypeStruct((Bp, Tp, Dp), jnp.float32),              # embeds[2]
        jax.ShapeDtypeStruct((Bp, 1, Dp), jnp.float32),               # SE gate 1
        jax.ShapeDtypeStruct((Bp, 1, Dp), jnp.float32),               # SE gate 2
        jax.ShapeDtypeStruct((Bp, Tp, VERB_CONCEPT), jnp.float32),    # logits_verb
        jax.ShapeDtypeStruct((Bp, Tp, NOUN_CONCEPT), jnp.float32),    # logits_noun
    )
    out_specs = (
        pl.BlockSpec((BB, 1, Dp), lambda i, k: (i, 0, 0)),
        pl.BlockSpec((BB, Tp, Dp), lambda i, k: (i, 0, 0)),
        pl.BlockSpec((BB, Tp, Dp), lambda i, k: (i, 0, 0)),
        pl.BlockSpec((BB, 1, Dp), lambda i, k: (i, 0, 0)),
        pl.BlockSpec((BB, 1, Dp), lambda i, k: (i, 0, 0)),
        pl.BlockSpec((BB, Tp, VERB_CONCEPT), lambda i, k: (i, 0, 0)),
        pl.BlockSpec((BB, Tp, NOUN_CONCEPT), lambda i, k: (i, 0, 0)),
    )

    grid_spec = pltpu.PrefetchScalarGridSpec(
        num_scalar_prefetch=0,
        grid=(Bp // BB, Fp // tk),                                    # (batch, F-tiles)
        in_specs=in_specs, out_specs=out_specs,
        scratch_shapes=[pltpu.VMEM((M, W), jnp.float32)])

    # generation-aware VMEM limit (~85% of physical: v5e/v6e 128 MiB, v7x 64 MiB)
    try:
        vmem_limit = min(int(pltpu.get_tpu_info().vmem_capacity_bytes * 0.85),
                         112 * 1024 * 1024)
    except Exception:
        vmem_limit = 48 * 1024 * 1024

    kernel = functools.partial(_encoder_kernel, BB=BB, Tp=Tp, T_real=T, Dp=Dp)
    sent_p, e1_p, e2_p, g1_p, g2_p, lv_p, ln_p = pl.pallas_call(
        kernel,
        out_shape=out_shape,
        grid_spec=grid_spec,
        compiler_params=pltpu.CompilerParams(
            dimension_semantics=("parallel", "arbitrary"),
            vmem_limit_bytes=vmem_limit),
    )(lens3d, x, w012, *invariant)

    # strip batch / time / lane padding
    sent_embeds = sent_p[:B, 0, :D]
    e1 = e1_p[:B, :T, :D]
    e2 = e2_p[:B, :T, :D]
    g1 = g1_p[:B, 0, :D]
    g2 = g2_p[:B, 0, :D]
    lv = lv_p[:B, :T]
    ln = ln_p[:B, :T]

    # -------- plain-JAX glue: per-sample dynamic top-k / argmax gather logic --------
    lens = input_lens.astype(jnp.int32)
    kk = jnp.ceil(lens.astype(jnp.float32) / 8.0).astype(jnp.int32)     # (B,)
    t_idx = jnp.arange(T)
    valid = t_idx[None, :] < lens[:, None]                              # (B, T)

    def instance_logits(logits):
        masked = jnp.where(valid[:, :, None], logits, -1e30)
        srt = jnp.flip(jnp.sort(masked, axis=1), axis=1)                # descending over time
        kmask = (t_idx[None, :, None] < kk[:, None, None]).astype(logits.dtype)
        return jnp.sum(srt * kmask, axis=1) / kk[:, None].astype(logits.dtype)

    inst_verb = instance_logits(lv)                                     # (B, 512)
    inst_noun = instance_logits(ln)                                     # (B, 1024)
    top_idx_verb = jax.lax.top_k(inst_verb, NUM_VERBS)[1]               # (B, 10)
    top_idx_noun = jax.lax.top_k(inst_noun, NUM_NOUNS)[1]               # (B, 20)

    def per_sample(lv_i, ln_i, e1_i, e2_i, g1_i, g2_i, L, tiv, tin):
        tmask = jnp.arange(T) < L
        # verb branch (se1 rows == e1 rows * g1 gate, gate is time-constant)
        lv_sel = jnp.where(tmask[:, None], lv_i[:, tiv], -1e30)         # (T, 10)
        ind = jnp.argmax(lv_sel, axis=0)                                # (10,)
        cond = (jnp.max(ind) + 2 < L) & (jnp.min(ind) > 1)
        g = lambda idx: e1_i[jnp.clip(idx, 0, T - 1)]
        branch_a = (g(ind - 2) + g(ind - 1) + g(ind) + g(ind + 1) + g(ind + 2)) / 5.0
        emb_verb = jnp.where(cond, branch_a, e1_i[ind]) * g1_i[None, :]  # (10, D)
        # noun branch
        ln_sel = jnp.where(tmask[:, None], ln_i[:, tin], -1e30)         # (T, 20)
        top3 = jax.lax.top_k(ln_sel.T, 3)[1]                            # (20, 3)
        avg3 = (e2_i[top3[:, 0]] + e2_i[top3[:, 1]] + e2_i[top3[:, 2]]) / 3.0
        emb_noun = jnp.where(L > 2, avg3, e2_i[jnp.argmax(ln_sel, axis=0)]) * g2_i[None, :]
        return emb_verb, emb_noun

    embeds_verb, embeds_noun = jax.vmap(per_sample)(
        lv, ln, e1, e2, g1, g2, lens, top_idx_verb, top_idx_noun)

    return (sent_embeds, embeds_verb, embeds_noun, [e1, e2],
            [inst_verb, inst_noun, top_idx_verb, top_idx_noun], T)


def init_params(key, input_size, dim_embed):
    hid = max(dim_embed // SE_R, 1)
    ks = jax.random.split(key, 12)

    def w(k, shape, scale=0.05):
        return (jax.random.normal(k, shape, jnp.float32) * scale).astype(jnp.float32)

    bn_scale = jnp.full((1,), 1.0 / jnp.sqrt(1.0 + BN_EPS), jnp.float32)
    p = {
        "w0": w(ks[0], (input_size, dim_embed)), "b0": jnp.zeros((1, dim_embed), jnp.float32),
        "w1": w(ks[1], (input_size, dim_embed)), "b1": jnp.zeros((1, dim_embed), jnp.float32),
        "w2": w(ks[2], (input_size, dim_embed)), "b2": jnp.zeros((1, dim_embed), jnp.float32),
        "wattn": w(ks[3], (dim_embed, 1)), "battn": jnp.zeros((1, 1), jnp.float32),
        "se1w1": w(ks[4], (dim_embed, hid)), "se1w2": w(ks[5], (hid, dim_embed)),
        "se2w1": w(ks[6], (dim_embed, hid)), "se2w2": w(ks[7], (hid, dim_embed)),
        "wv": w(ks[8], (5, dim_embed, VERB_CONCEPT)),
        "bv": jnp.zeros((1, VERB_CONCEPT), jnp.float32),
        "bnv_s": jnp.broadcast_to(bn_scale, (1, VERB_CONCEPT)).astype(jnp.float32),
        "bnv_b": jnp.zeros((1, VERB_CONCEPT), jnp.float32),
        "wn": w(ks[9], (dim_embed, NOUN_CONCEPT)),
        "bno": jnp.zeros((1, NOUN_CONCEPT), jnp.float32),
        "bnn_s": jnp.broadcast_to(bn_scale, (1, NOUN_CONCEPT)).astype(jnp.float32),
        "bnn_b": jnp.zeros((1, NOUN_CONCEPT), jnp.float32),
    }
    return p


if __name__ == "__main__":
    B, T, F, D = 2, 8, 48, 32          # batch, max_seq_len, sum(dim_fts), dim_embed
    key = jax.random.PRNGKey(0)
    kx, kp = jax.random.split(key)
    inputs = jax.random.normal(kx, (B, T, F), jnp.float32)
    input_lens = jnp.array([8, 6], jnp.int32)
    params = init_params(kp, F, D)

    outs = multilevel_encoder(inputs, input_lens, params)
    for leaf in jax.tree_util.tree_leaves(outs):
        if hasattr(leaf, "block_until_ready"):
            leaf.block_until_ready()
    print("KERNEL_OK")
</pallas_src>

<mosaic_0001>
module attributes {stable_mosaic.version = 11 : i64} {
  func.func @_encoder_kernel(%arg0: i32, %arg1: i32, %arg2: memref<1x1x1xi32, #tpu.memory_space<vmem>>, %arg3: memref<1x16x128xbf16, #tpu.memory_space<vmem>>, %arg4: memref<128x512xbf16, #tpu.memory_space<vmem>>, %arg5: memref<1x512xf32, #tpu.memory_space<vmem>>, %arg6: memref<128x128xf32, #tpu.memory_space<vmem>>, %arg7: memref<128x128xf32, #tpu.memory_space<vmem>>, %arg8: memref<128x128xf32, #tpu.memory_space<vmem>>, %arg9: memref<128x128xf32, #tpu.memory_space<vmem>>, %arg10: memref<5x128x512xbf16, #tpu.memory_space<vmem>>, %arg11: memref<1x512xf32, #tpu.memory_space<vmem>>, %arg12: memref<1x512xf32, #tpu.memory_space<vmem>>, %arg13: memref<1x512xf32, #tpu.memory_space<vmem>>, %arg14: memref<128x1024xbf16, #tpu.memory_space<vmem>>, %arg15: memref<1x1024xf32, #tpu.memory_space<vmem>>, %arg16: memref<1x1024xf32, #tpu.memory_space<vmem>>, %arg17: memref<1x1024xf32, #tpu.memory_space<vmem>>, %arg18: memref<1x1x128xf32, #tpu.memory_space<vmem>>, %arg19: memref<1x16x128xf32, #tpu.memory_space<vmem>>, %arg20: memref<1x16x128xf32, #tpu.memory_space<vmem>>, %arg21: memref<1x1x128xf32, #tpu.memory_space<vmem>>, %arg22: memref<1x1x128xf32, #tpu.memory_space<vmem>>, %arg23: memref<1x16x512xf32, #tpu.memory_space<vmem>>, %arg24: memref<1x16x1024xf32, #tpu.memory_space<vmem>>, %arg25: memref<16x512xf32, #tpu.memory_space<vmem>>) attributes {dimension_semantics = [#tpu.dimension_semantics<parallel>, #tpu.dimension_semantics<arbitrary>], iteration_bounds = array<i64: 2, 1>, scalar_prefetch = 0 : i64, scratch_operands = 1 : i64, tpu.core_type = #tpu.core_type<tc>, window_params = [{transform_indices = @transform_0, window_bounds = array<i64: 1, 1, 1>}, {transform_indices = @transform_1, window_bounds = array<i64: 1, 16, 128>}, {transform_indices = @transform_2, window_bounds = array<i64: 128, 512>}, {pipeline_mode = #tpu.pipeline_mode<synchronous>, transform_indices = @transform_3, window_bounds = array<i64: 1, 512>}, {pipeline_mode = #tpu.pipeline_mode<synchronous>, transform_indices = @transform_4, window_bounds = array<i64: 128, 128>}, {pipeline_mode = #tpu.pipeline_mode<synchronous>, transform_indices = @transform_5, window_bounds = array<i64: 128, 128>}, {pipeline_mode = #tpu.pipeline_mode<synchronous>, transform_indices = @transform_6, window_bounds = array<i64: 128, 128>}, {pipeline_mode = #tpu.pipeline_mode<synchronous>, transform_indices = @transform_7, window_bounds = array<i64: 128, 128>}, {pipeline_mode = #tpu.pipeline_mode<synchronous>, transform_indices = @transform_8, window_bounds = array<i64: 5, 128, 512>}, {pipeline_mode = #tpu.pipeline_mode<synchronous>, transform_indices = @transform_9, window_bounds = array<i64: 1, 512>}, {pipeline_mode = #tpu.pipeline_mode<synchronous>, transform_indices = @transform_10, window_bounds = array<i64: 1, 512>}, {pipeline_mode = #tpu.pipeline_mode<synchronous>, transform_indices = @transform_11, window_bounds = array<i64: 1, 512>}, {pipeline_mode = #tpu.pipeline_mode<synchronous>, transform_indices = @transform_12, window_bounds = array<i64: 128, 1024>}, {pipeline_mode = #tpu.pipeline_mode<synchronous>, transform_indices = @transform_13, window_bounds = array<i64: 1, 1024>}, {pipeline_mode = #tpu.pipeline_mode<synchronous>, transform_indices = @transform_14, window_bounds = array<i64: 1, 1024>}, {pipeline_mode = #tpu.pipeline_mode<synchronous>, transform_indices = @transform_15, window_bounds = array<i64: 1, 1024>}, {transform_indices = @transform_16, window_bounds = array<i64: 1, 1, 128>}, {transform_indices = @transform_17, window_bounds = array<i64: 1, 16, 128>}, {transform_indices = @transform_18, window_bounds = array<i64: 1, 16, 128>}, {transform_indices = @transform_19, window_bounds = array<i64: 1, 1, 128>}, {transform_indices = @transform_20, window_bounds = array<i64: 1, 1, 128>}, {transform_indices = @transform_21, window_bounds = array<i64: 1, 16, 512>}, {transform_indices = @transform_22, window_bounds = array<i64: 1, 16, 1024>}]} {
    %c0 = arith.constant 0 : index
    %c0_0 = arith.constant 0 : index
    %c0_1 = arith.constant 0 : index
    %0 = vector.load %arg3[%c0, %c0_0, %c0_1] : memref<1x16x128xbf16, #tpu.memory_space<vmem>>, vector<1x16x128xbf16>
    %1 = vector.shape_cast %0 : vector<1x16x128xbf16> to vector<16x128xbf16>
    %c0_2 = arith.constant 0 : index
    %c0_3 = arith.constant 0 : index
    %2 = vector.load %arg4[%c0_2, %c0_3] : memref<128x512xbf16, #tpu.memory_space<vmem>>, vector<128x512xbf16>
    %cst = arith.constant dense<0.000000e+00> : vector<16x512xf32>
    %3 = tpu.matmul %1, %2, %cst {dimension_numbers = #tpu.dot_dimension_numbers<[1], [0], [0], [1], [0, 0, 1, 1], [], []>} : vector<16x128xbf16>, vector<128x512xbf16>, vector<16x512xf32> -> vector<16x512xf32>
    %c0_i32 = arith.constant 0 : i32
    %4 = arith.cmpi eq, %arg1, %c0_i32 : i32
    %5 = arith.extui %4 : i1 to i32
    %c0_i32_4 = arith.constant 0 : i32
    %6 = arith.cmpi ne, %5, %c0_i32_4 : i32
    scf.if %6 {
      %c0_9 = arith.constant 0 : index
      %c0_10 = arith.constant 0 : index
      %13 = vector.load %arg25[%c0_9, %c0_10] : memref<16x512xf32, #tpu.memory_space<vmem>>, vector<16x512xf32>
      tpu.vector_store %arg25[%c0_9, %c0_10], %3 {strides = array<i32>} : memref<16x512xf32, #tpu.memory_space<vmem>>, vector<16x512xf32>,
    } else {
    }
    %c0_i32_5 = arith.constant 0 : i32
    %7 = arith.cmpi sgt, %arg1, %c0_i32_5 : i32
    %8 = arith.extui %7 : i1 to i32
    %c0_i32_6 = arith.constant 0 : i32
    %9 = arith.cmpi ne, %8, %c0_i32_6 : i32
    scf.if %9 {
      %c0_9 = arith.constant 0 : index
      %c0_10 = arith.constant 0 : index
      %13 = vector.load %arg25[%c0_9, %c0_10] : memref<16x512xf32, #tpu.memory_space<vmem>>, vector<16x512xf32>
      %14 = arith.addf %13, %3 : vector<16x512xf32>
      %c0_11 = arith.constant 0 : index
      %c0_12 = arith.constant 0 : index
      %15 = vector.load %arg25[%c0_11, %c0_12] : memref<16x512xf32, #tpu.memory_space<vmem>>, vector<16x512xf32>
      tpu.vector_store %arg25[%c0_11, %c0_12], %14 {strides = array<i32>} : memref<16x512xf32, #tpu.memory_space<vmem>>, vector<16x512xf32>,
    } else {
    }
    %c0_i32_7 = arith.constant 0 : i32
    %10 = arith.cmpi eq, %arg1, %c0_i32_7 : i32
    %11 = arith.extui %10 : i1 to i32
    %c0_i32_8 = arith.constant 0 : i32
    %12 = arith.cmpi ne, %11, %c0_i32_8 : i32
    scf.if %12 {
      %c0_9 = arith.constant 0 : index
      %c0_10 = arith.constant 0 : index
      %13 = vector.load %arg25[%c0_9, %c0_10] : memref<16x512xf32, #tpu.memory_space<vmem>>, vector<16x512xf32>
      %c0_11 = arith.constant 0 : index
      %c0_12 = arith.constant 0 : index
      %14 = vector.load %arg5[%c0_11, %c0_12] : memref<1x512xf32, #tpu.memory_space<vmem>>, vector<1x512xf32>
      %15 = vector.broadcast %14 : vector<1x512xf32> to vector<16x512xf32>
      %16 = arith.addf %13, %15 : vector<16x512xf32>
      %17 = vector.extract_strided_slice %16 {offsets = [0, 0], sizes = [16, 128], strides = [1, 1]} : vector<16x512xf32> to vector<16x128xf32>
      %18 = vector.extract_strided_slice %16 {offsets = [0, 128], sizes = [16, 128], strides = [1, 1]} : vector<16x512xf32> to vector<16x128xf32>
      %19 = vector.extract_strided_slice %16 {offsets = [0, 256], sizes = [16, 128], strides = [1, 1]} : vector<16x512xf32> to vector<16x128xf32>
      %20 = vector.extract_strided_slice %16 {offsets = [0, 384], sizes = [16, 1], strides = [1, 1]} : vector<16x512xf32> to vector<16x1xf32>
      %21 = vector.shape_cast %18 : vector<16x128xf32> to vector<1x16x128xf32>
      %22 = vector.shape_cast %19 : vector<16x128xf32> to vector<1x16x128xf32>
      %c0_13 = arith.constant 0 : index
      %c0_14 = arith.constant 0 : index
      %c0_15 = arith.constant 0 : index
      %23 = vector.load %arg19[%c0_13, %c0_14, %c0_15] : memref<1x16x128xf32, #tpu.memory_space<vmem>>, vector<1x16x128xf32>
      tpu.vector_store %arg19[%c0_13, %c0_14, %c0_15], %21 {strides = array<i32>} : memref<1x16x128xf32, #tpu.memory_space<vmem>>, vector<1x16x128xf32>,
      %c0_16 = arith.constant 0 : index
      %c0_17 = arith.constant 0 : index
      %c0_18 = arith.constant 0 : index
      %24 = vector.load %arg20[%c0_16, %c0_17, %c0_18] : memref<1x16x128xf32, #tpu.memory_space<vmem>>, vector<1x16x128xf32>
      tpu.vector_store %arg20[%c0_16, %c0_17, %c0_18], %22 {strides = array<i32>} : memref<1x16x128xf32, #tpu.memory_space<vmem>>, vector<1x16x128xf32>,
      %c0_19 = arith.constant 0 : index
      %c0_20 = arith.constant 0 : index
      %c0_21 = arith.constant 0 : index
      %25 = vector.load %arg2[%c0_19, %c0_20, %c0_21] : memref<1x1x1xi32, #tpu.memory_space<vmem>>, vector<1x1x1xi32>
      %26 = tpu.iota {dimensions = array<i32: 1>} : vector<1x16x1xi32>
      %27 = vector.broadcast %25 : vector<1x1x1xi32> to vector<1x16x1xi32>
      %28 = arith.cmpi slt, %26, %27 : vector<1x16x1xi32>
      %c8_i32 = arith.constant 8 : i32
      %29 = vector.broadcast %c8_i32 : i32 to vector<1x16x1xi32>
      %30 = arith.cmpi slt, %26, %29 : vector<1x16x1xi32>
      %31 = arith.extui %30 : vector<1x16x1xi1> to vector<1x16x1xi32>
      %32 = arith.sitofp %31 : vector<1x16x1xi32> to vector<1x16x1xf32>
      %33 = vector.shape_cast %20 : vector<16x1xf32> to vector<1x16x1xf32>
      %cst_22 = arith.constant -9.99999984E+17 : f32
      %34 = vector.broadcast %cst_22 : f32 to vector<1x16x1xf32>
      %35 = arith.select %28, %33, %34 : vector<1x16x1xi1>, vector<1x16x1xf32>
      %cst_23 = arith.constant dense<0xFF800000> : vector<1x1xf32>
      %36 = vector.multi_reduction <maximumf>, %35, %cst_23 [1] : vector<1x16x1xf32> to vector<1x1xf32>
      %37 = vector.shape_cast %36 : vector<1x1xf32> to vector<1x1x1xf32>
      %38 = vector.broadcast %37 : vector<1x1x1xf32> to vector<1x16x1xf32>
      %39 = arith.subf %35, %38 : vector<1x16x1xf32>
      %40 = math.exp %39 : vector<1x16x1xf32>
      %cst_24 = arith.constant dense<0.000000e+00> : vector<1x1xf32>
      %41 = vector.multi_reduction <add>, %40, %cst_24 [1] : vector<1x16x1xf32> to vector<1x1xf32>
      %42 = vector.shape_cast %41 : vector<1x1xf32> to vector<1x1x1xf32>
      %cst_25 = arith.constant 1.000000e-30 : f32
      %43 = vector.broadcast %cst_25 : f32 to vector<1x1x1xf32>
      %44 = arith.maximumf %42, %43 : vector<1x1x1xf32>
      %45 = tpu.reciprocal %44 {approx = true} : vector<1x1x1xf32> -> vector<1x1x1xf32>
      %46 = vector.broadcast %45 : vector<1x1x1xf32> to vector<1x16x1xf32>
      %47 = arith.mulf %40, %46 : vector<1x16x1xf32>
      %48 = vector.shape_cast %17 : vector<16x128xf32> to vector<1x16x128xf32>
      %49 = vector.broadcast %47 : vector<1x16x1xf32> to vector<1x16x128xf32>
      %50 = arith.mulf %48, %49 : vector<1x16x128xf32>
      %cst_26 = arith.constant dense<0.000000e+00> : vector<1x128xf32>
      %51 = vector.multi_reduction <add>, %50, %cst_26 [1] : vector<1x16x128xf32> to vector<1x128xf32>
      %52 = vector.shape_cast %51 : vector<1x128xf32> to vector<1x1x128xf32>
      %c0_27 = arith.constant 0 : index
      %c0_28 = arith.constant 0 : index
      %c0_29 = arith.constant 0 : index
      %53 = vector.load %arg18[%c0_27, %c0_28, %c0_29] : memref<1x1x128xf32, #tpu.memory_space<vmem>>, vector<1x1x128xf32>
      tpu.vector_store %arg18[%c0_27, %c0_28, %c0_29], %52 {strides = array<i32>} : memref<1x1x128xf32, #tpu.memory_space<vmem>>, vector<1x1x128xf32>,
      %c0_30 = arith.constant 0 : index
      %c0_31 = arith.constant 0 : index
      %54 = vector.load %arg6[%c0_30, %c0_31] : memref<128x128xf32, #tpu.memory_space<vmem>>, vector<128x128xf32>
      %c0_32 = arith.constant 0 : index
      %c0_33 = arith.constant 0 : index
      %55 = vector.load %arg7[%c0_32, %c0_33] : memref<128x128xf32, #tpu.memory_space<vmem>>, vector<128x128xf32>
      %56 = vector.broadcast %32 : vector<1x16x1xf32> to vector<1x16x128xf32>
      %57 = arith.mulf %21, %56 : vector<1x16x128xf32>
      %cst_34 = arith.constant dense<0.000000e+00> : vector<1x128xf32>
      %58 = vector.multi_reduction <add>, %57, %cst_34 [1] : vector<1x16x128xf32> to vector<1x128xf32>
      %cst_35 = arith.constant 1.250000e-01 : f32
      %59 = vector.broadcast %cst_35 : f32 to vector<1x128xf32>
      %60 = arith.mulf %58, %59 : vector<1x128xf32>
      %cst_36 = arith.constant dense<0.000000e+00> : vector<1x128xf32>
      %61 = tpu.matmul %60, %54, %cst_36 {dimension_numbers = #tpu.dot_dimension_numbers<[1], [0], [0], [1], [0, 0, 1, 1], [], []>} : vector<1x128xf32>, vector<128x128xf32>, vector<1x128xf32> -> vector<1x128xf32>
      %cst_37 = arith.constant 0.000000e+00 : f32
      %62 = vector.broadcast %cst_37 : f32 to vector<1x128xf32>
      %63 = arith.maximumf %61, %62 : vector<1x128xf32>
      %cst_38 = arith.constant dense<0.000000e+00> : vector<1x128xf32>
      %64 = tpu.matmul %63, %55, %cst_38 {dimension_numbers = #tpu.dot_dimension_numbers<[1], [0], [0], [1], [0, 0, 1, 1], [], []>} : vector<1x128xf32>, vector<128x128xf32>, vector<1x128xf32> -> vector<1x128xf32>
      %65 = arith.negf %64 : vector<1x128xf32>
      %66 = math.exp %65 : vector<1x128xf32>
      %cst_39 = arith.constant 1.000000e+00 : f32
      %67 = vector.broadcast %cst_39 : f32 to vector<1x128xf32>
      %68 = arith.addf %67, %66 : vector<1x128xf32>
      %69 = arith.divf %67, %68 : vector<1x128xf32>
      %70 = vector.shape_cast %69 : vector<1x128xf32> to vector<1x1x128xf32>
      %c0_40 = arith.constant 0 : index
      %c0_41 = arith.constant 0 : index
      %c0_42 = arith.constant 0 : index
      %71 = vector.load %arg21[%c0_40, %c0_41, %c0_42] : memref<1x1x128xf32, #tpu.memory_space<vmem>>, vector<1x1x128xf32>
      tpu.vector_store %arg21[%c0_40, %c0_41, %c0_42], %70 {strides = array<i32>} : memref<1x1x128xf32, #tpu.memory_space<vmem>>, vector<1x1x128xf32>,
      %c0_43 = arith.constant 0 : index
      %c0_44 = arith.constant 0 : index
      %72 = vector.load %arg8[%c0_43, %c0_44] : memref<128x128xf32, #tpu.memory_space<vmem>>, vector<128x128xf32>
      %c0_45 = arith.constant 0 : index
      %c0_46 = arith.constant 0 : index
      %73 = vector.load %arg9[%c0_45, %c0_46] : memref<128x128xf32, #tpu.memory_space<vmem>>, vector<128x128xf32>
      %74 = vector.broadcast %32 : vector<1x16x1xf32> to vector<1x16x128xf32>
      %75 = arith.mulf %22, %74 : vector<1x16x128xf32>
      %cst_47 = arith.constant dense<0.000000e+00> : vector<1x128xf32>
      %76 = vector.multi_reduction <add>, %75, %cst_47 [1] : vector<1x16x128xf32> to vector<1x128xf32>
      %cst_48 = arith.constant 1.250000e-01 : f32
      %77 = vector.broadcast %cst_48 : f32 to vector<1x128xf32>
      %78 = arith.mulf %76, %77 : vector<1x128xf32>
      %cst_49 = arith.constant dense<0.000000e+00> : vector<1x128xf32>
      %79 = tpu.matmul %78, %72, %cst_49 {dimension_numbers = #tpu.dot_dimension_numbers<[1], [0], [0], [1], [0, 0, 1, 1], [], []>} : vector<1x128xf32>, vector<128x128xf32>, vector<1x128xf32> -> vector<1x128xf32>
      %cst_50 = arith.constant 0.000000e+00 : f32
      %80 = vector.broadcast %cst_50 : f32 to vector<1x128xf32>
      %81 = arith.maximumf %79, %80 : vector<1x128xf32>
      %cst_51 = arith.constant dense<0.000000e+00> : vector<1x128xf32>
      %82 = tpu.matmul %81, %73, %cst_51 {dimension_numbers = #tpu.dot_dimension_numbers<[1], [0], [0], [1], [0, 0, 1, 1], [], []>} : vector<1x128xf32>, vector<128x128xf32>, vector<1x128xf32> -> vector<1x128xf32>
      %83 = arith.negf %82 : vector<1x128xf32>
      %84 = math.exp %83 : vector<1x128xf32>
      %cst_52 = arith.constant 1.000000e+00 : f32
      %85 = vector.broadcast %cst_52 : f32 to vector<1x128xf32>
      %86 = arith.addf %85, %84 : vector<1x128xf32>
      %87 = arith.divf %85, %86 : vector<1x128xf32>
      %88 = vector.shape_cast %87 : vector<1x128xf32> to vector<1x1x128xf32>
      %c0_53 = arith.constant 0 : index
      %c0_54 = arith.constant 0 : index
      %c0_55 = arith.constant 0 : index
      %89 = vector.load %arg22[%c0_53, %c0_54, %c0_55] : memref<1x1x128xf32, #tpu.memory_space<vmem>>, vector<1x1x128xf32>
      tpu.vector_store %arg22[%c0_53, %c0_54, %c0_55], %88 {strides = array<i32>} : memref<1x1x128xf32, #tpu.memory_space<vmem>>, vector<1x1x128xf32>,
      %90 = vector.shape_cast %26 : vector<1x16x1xi32> to vector<16x1xi32>
      %c8_i32_56 = arith.constant 8 : i32
      %91 = vector.broadcast %c8_i32_56 : i32 to vector<16x1xi32>
      %92 = arith.cmpi slt, %90, %91 : vector<16x1xi32>
      %cst_57 = arith.constant 0.000000e+00 : f32
      %93 = vector.shape_cast %92 : vector<16x1xi1> to vector<16x1xi1>
      %94 = vector.broadcast %93 : vector<16x1xi1> to vector<16x128xi1>
      %95 = vector.broadcast %cst_57 : f32 to vector<16x128xf32>
      %96 = arith.select %94, %18, %95 : vector<16x128xi1>, vector<16x128xf32>
      %97 = arith.truncf %96 : vector<16x128xf32> to vector<16x128xbf16>
      %c0_58 = arith.constant 0 : index
      %c0_59 = arith.constant 0 : index
      %c0_60 = arith.constant 0 : index
      %98 = vector.load %arg10[%c0_58, %c0_59, %c0_60] : memref<5x128x512xbf16, #tpu.memory_space<vmem>>, vector<1x128x512xbf16>
      %99 = vector.shape_cast %98 : vector<1x128x512xbf16> to vector<128x512xbf16>
      %cst_61 = arith.constant dense<0.000000e+00> : vector<16x512xf32>
      %100 = tpu.matmul %97, %99, %cst_61 {dimension_numbers = #tpu.dot_dimension_numbers<[1], [0], [0], [1], [0, 0, 1, 1], [], []>} : vector<16x128xbf16>, vector<128x512xbf16>, vector<16x512xf32> -> vector<16x512xf32>
      %c2_i32 = arith.constant 2 : i32
      %101 = tpu.dynamic_rotate %100 by %c2_i32 dim 0 : vector<16x512xf32>, i32 -> vector<16x512xf32>
      %c1 = arith.constant 1 : index
      %c0_62 = arith.constant 0 : index
      %c0_63 = arith.constant 0 : index
      %102 = vector.load %arg10[%c1, %c0_62, %c0_63] : memref<5x128x512xbf16, #tpu.memory_space<vmem>>, vector<1x128x512xbf16>
      %103 = vector.shape_cast %102 : vector<1x128x512xbf16> to vector<128x512xbf16>
      %cst_64 = arith.constant dense<0.000000e+00> : vector<16x512xf32>
      %104 = tpu.matmul %97, %103, %cst_64 {dimension_numbers = #tpu.dot_dimension_numbers<[1], [0], [0], [1], [0, 0, 1, 1], [], []>} : vector<16x128xbf16>, vector<128x512xbf16>, vector<16x512xf32> -> vector<16x512xf32>
      %c1_i32 = arith.constant 1 : i32
      %105 = tpu.dynamic_rotate %104 by %c1_i32 dim 0 : vector<16x512xf32>, i32 -> vector<16x512xf32>
      %106 = arith.addf %101, %105 : vector<16x512xf32>
      %c2 = arith.constant 2 : index
      %c0_65 = arith.constant 0 : index
      %c0_66 = arith.constant 0 : index
      %107 = vector.load %arg10[%c2, %c0_65, %c0_66] : memref<5x128x512xbf16, #tpu.memory_space<vmem>>, vector<1x128x512xbf16>
      %108 = vector.shape_cast %107 : vector<1x128x512xbf16> to vector<128x512xbf16>
      %cst_67 = arith.constant dense<0.000000e+00> : vector<16x512xf32>
      %109 = tpu.matmul %97, %108, %cst_67 {dimension_numbers = #tpu.dot_dimension_numbers<[1], [0], [0], [1], [0, 0, 1, 1], [], []>} : vector<16x128xbf16>, vector<128x512xbf16>, vector<16x512xf32> -> vector<16x512xf32>
      %110 = arith.addf %106, %109 : vector<16x512xf32>
      %c3 = arith.constant 3 : index
      %c0_68 = arith.constant 0 : index
      %c0_69 = arith.constant 0 : index
      %111 = vector.load %arg10[%c3, %c0_68, %c0_69] : memref<5x128x512xbf16, #tpu.memory_space<vmem>>, vector<1x128x512xbf16>
      %112 = vector.shape_cast %111 : vector<1x128x512xbf16> to vector<128x512xbf16>
      %cst_70 = arith.constant dense<0.000000e+00> : vector<16x512xf32>
      %113 = tpu.matmul %97, %112, %cst_70 {dimension_numbers = #tpu.dot_dimension_numbers<[1], [0], [0], [1], [0, 0, 1, 1], [], []>} : vector<16x128xbf16>, vector<128x512xbf16>, vector<16x512xf32> -> vector<16x512xf32>
      %c15_i32 = arith.constant 15 : i32
      %114 = tpu.dynamic_rotate %113 by %c15_i32 dim 0 : vector<16x512xf32>, i32 -> vector<16x512xf32>
      %115 = arith.addf %110, %114 : vector<16x512xf32>
      %c4 = arith.constant 4 : index
      %c0_71 = arith.constant 0 : index
      %c0_72 = arith.constant 0 : index
      %116 = vector.load %arg10[%c4, %c0_71, %c0_72] : memref<5x128x512xbf16, #tpu.memory_space<vmem>>, vector<1x128x512xbf16>
      %117 = vector.shape_cast %116 : vector<1x128x512xbf16> to vector<128x512xbf16>
      %cst_73 = arith.constant dense<0.000000e+00> : vector<16x512xf32>
      %118 = tpu.matmul %97, %117, %cst_73 {dimension_numbers = #tpu.dot_dimension_numbers<[1], [0], [0], [1], [0, 0, 1, 1], [], []>} : vector<16x128xbf16>, vector<128x512xbf16>, vector<16x512xf32> -> vector<16x512xf32>
      %c14_i32 = arith.constant 14 : i32
      %119 = tpu.dynamic_rotate %118 by %c14_i32 dim 0 : vector<16x512xf32>, i32 -> vector<16x512xf32>
      %120 = arith.addf %115, %119 : vector<16x512xf32>
      %c0_74 = arith.constant 0 : index
      %c0_75 = arith.constant 0 : index
      %121 = vector.load %arg11[%c0_74, %c0_75] : memref<1x512xf32, #tpu.memory_space<vmem>>, vector<1x512xf32>
      %122 = vector.broadcast %121 : vector<1x512xf32> to vector<16x512xf32>
      %123 = arith.addf %120, %122 : vector<16x512xf32>
      %c0_76 = arith.constant 0 : index
      %c0_77 = arith.constant 0 : index
      %124 = vector.load %arg12[%c0_76, %c0_77] : memref<1x512xf32, #tpu.memory_space<vmem>>, vector<1x512xf32>
      %125 = vector.broadcast %124 : vector<1x512xf32> to vector<16x512xf32>
      %126 = arith.mulf %123, %125 : vector<16x512xf32>
      %c0_78 = arith.constant 0 : index
      %c0_79 = arith.constant 0 : index
      %127 = vector.load %arg13[%c0_78, %c0_79] : memref<1x512xf32, #tpu.memory_space<vmem>>, vector<1x512xf32>
      %128 = vector.broadcast %127 : vector<1x512xf32> to vector<16x512xf32>
      %129 = arith.addf %126, %128 : vector<16x512xf32>
      %130 = arith.negf %129 : vector<16x512xf32>
      %131 = math.exp %130 : vector<16x512xf32>
      %cst_80 = arith.constant 1.000000e+00 : f32
      %132 = vector.broadcast %cst_80 : f32 to vector<16x512xf32>
      %133 = arith.addf %132, %131 : vector<16x512xf32>
      %134 = arith.divf %132, %133 : vector<16x512xf32>
      %135 = vector.shape_cast %134 : vector<16x512xf32> to vector<1x16x512xf32>
      %c0_81 = arith.constant 0 : index
      %c0_82 = arith.constant 0 : index
      %c0_83 = arith.constant 0 : index
      %136 = vector.load %arg23[%c0_81, %c0_82, %c0_83] : memref<1x16x512xf32, #tpu.memory_space<vmem>>, vector<1x16x512xf32>
      tpu.vector_store %arg23[%c0_81, %c0_82, %c0_83], %135 {strides = array<i32>} : memref<1x16x512xf32, #tpu.memory_space<vmem>>, vector<1x16x512xf32>,
      %137 = arith.truncf %19 : vector<16x128xf32> to vector<16x128xbf16>
      %c0_84 = arith.constant 0 : index
      %c0_85 = arith.constant 0 : index
      %138 = vector.load %arg14[%c0_84, %c0_85] : memref<128x1024xbf16, #tpu.memory_space<vmem>>, vector<128x1024xbf16>
      %cst_86 = arith.constant dense<0.000000e+00> : vector<16x1024xf32>
      %139 = tpu.matmul %137, %138, %cst_86 {dimension_numbers = #tpu.dot_dimension_numbers<[1], [0], [0], [1], [0, 0, 1, 1], [], []>} : vector<16x128xbf16>, vector<128x1024xbf16>, vector<16x1024xf32> -> vector<16x1024xf32>
      %c0_87 = arith.constant 0 : index
      %c0_88 = arith.constant 0 : index
      %140 = vector.load %arg15[%c0_87, %c0_88] : memref<1x1024xf32, #tpu.memory_space<vmem>>, vector<1x1024xf32>
      %141 = vector.broadcast %140 : vector<1x1024xf32> to vector<16x1024xf32>
      %142 = arith.addf %139, %141 : vector<16x1024xf32>
      %c0_89 = arith.constant 0 : index
      %c0_90 = arith.constant 0 : index
      %143 = vector.load %arg16[%c0_89, %c0_90] : memref<1x1024xf32, #tpu.memory_space<vmem>>, vector<1x1024xf32>
      %144 = vector.broadcast %143 : vector<1x1024xf32> to vector<16x1024xf32>
      %145 = arith.mulf %142, %144 : vector<16x1024xf32>
      %c0_91 = arith.constant 0 : index
      %c0_92 = arith.constant 0 : index
      %146 = vector.load %arg17[%c0_91, %c0_92] : memref<1x1024xf32, #tpu.memory_space<vmem>>, vector<1x1024xf32>
      %147 = vector.broadcast %146 : vector<1x1024xf32> to vector<16x1024xf32>
      %148 = arith.addf %145, %147 : vector<16x1024xf32>
      %149 = arith.negf %148 : vector<16x1024xf32>
      %150 = math.exp %149 : vector<16x1024xf32>
      %cst_93 = arith.constant 1.000000e+00 : f32
      %151 = vector.broadcast %cst_93 : f32 to vector<16x1024xf32>
      %152 = arith.addf %151, %150 : vector<16x1024xf32>
      %153 = arith.divf %151, %152 : vector<16x1024xf32>
      %154 = vector.shape_cast %153 : vector<16x1024xf32> to vector<1x16x1024xf32>
      %c0_94 = arith.constant 0 : index
      %c0_95 = arith.constant 0 : index
      %c0_96 = arith.constant 0 : index
      %155 = vector.load %arg24[%c0_94, %c0_95, %c0_96] : memref<1x16x1024xf32, #tpu.memory_space<vmem>>, vector<1x16x1024xf32>
      tpu.vector_store %arg24[%c0_94, %c0_95, %c0_96], %154 {strides = array<i32>} : memref<1x16x1024xf32, #tpu.memory_space<vmem>>, vector<1x16x1024xf32>,
    } else {
    }
    return
  }
  func.func @transform_0(%arg0: i32, %arg1: i32) -> (i32, i32, i32) {
    %c0_i32 = arith.constant 0 : i32
    %c0_i32_0 = arith.constant 0 : i32
    %c0_i32_1 = arith.constant 0 : i32
    return %arg0, %c0_i32, %c0_i32_0 : i32, i32, i32
  }
  func.func @transform_1(%arg0: i32, %arg1: i32) -> (i32, i32, i32) {
    %c0_i32 = arith.constant 0 : i32
    %c0_i32_0 = arith.constant 0 : i32
    return %arg0, %c0_i32, %arg1 : i32, i32, i32
  }
  func.func @transform_2(%arg0: i32, %arg1: i32) -> (i32, i32) {
    %c0_i32 = arith.constant 0 : i32
    %c0_i32_0 = arith.constant 0 : i32
    return %arg1, %c0_i32 : i32, i32
  }
  func.func @transform_3(%arg0: i32, %arg1: i32) -> (i32, i32) {
    %c0_i32 = arith.constant 0 : i32
    %c0_i32_0 = arith.constant 0 : i32
    %c0_i32_1 = arith.constant 0 : i32
    return %c0_i32, %c0_i32_0 : i32, i32
  }
  func.func @transform_4(%arg0: i32, %arg1: i32) -> (i32, i32) {
    %c0_i32 = arith.constant 0 : i32
    %c0_i32_0 = arith.constant 0 : i32
    %c0_i32_1 = arith.constant 0 : i32
    return %c0_i32, %c0_i32_0 : i32, i32
  }
  func.func @transform_5(%arg0: i32, %arg1: i32) -> (i32, i32) {
    %c0_i32 = arith.constant 0 : i32
    %c0_i32_0 = arith.constant 0 : i32
    %c0_i32_1 = arith.constant 0 : i32
    return %c0_i32, %c0_i32_0 : i32, i32
  }
  func.func @transform_6(%arg0: i32, %arg1: i32) -> (i32, i32) {
    %c0_i32 = arith.constant 0 : i32
    %c0_i32_0 = arith.constant 0 : i32
    %c0_i32_1 = arith.constant 0 : i32
    return %c0_i32, %c0_i32_0 : i32, i32
  }
  func.func @transform_7(%arg0: i32, %arg1: i32) -> (i32, i32) {
    %c0_i32 = arith.constant 0 : i32
    %c0_i32_0 = arith.constant 0 : i32
    %c0_i32_1 = arith.constant 0 : i32
    return %c0_i32, %c0_i32_0 : i32, i32
  }
  func.func @transform_8(%arg0: i32, %arg1: i32) -> (i32, i32, i32) {
    %c0_i32 = arith.constant 0 : i32
    %c0_i32_0 = arith.constant 0 : i32
    %c0_i32_1 = arith.constant 0 : i32
    %c0_i32_2 = arith.constant 0 : i32
    return %c0_i32, %c0_i32_0, %c0_i32_1 : i32, i32, i32
  }
  func.func @transform_9(%arg0: i32, %arg1: i32) -> (i32, i32) {
    %c0_i32 = arith.constant 0 : i32
    %c0_i32_0 = arith.constant 0 : i32
    %c0_i32_1 = arith.constant 0 : i32
    return %c0_i32, %c0_i32_0 : i32, i32
  }
  func.func @transform_10(%arg0: i32, %arg1: i32) -> (i32, i32) {
    %c0_i32 = arith.constant 0 : i32
    %c0_i32_0 = arith.constant 0 : i32
    %c0_i32_1 = arith.constant 0 : i32
    return %c0_i32, %c0_i32_0 : i32, i32
  }
  func.func @transform_11(%arg0: i32, %arg1: i32) -> (i32, i32) {
    %c0_i32 = arith.constant 0 : i32
    %c0_i32_0 = arith.constant 0 : i32
    %c0_i32_1 = arith.constant 0 : i32
    return %c0_i32, %c0_i32_0 : i32, i32
  }
  func.func @transform_12(%arg0: i32, %arg1: i32) -> (i32, i32) {
    %c0_i32 = arith.constant 0 : i32
    %c0_i32_0 = arith.constant 0 : i32
    %c0_i32_1 = arith.constant 0 : i32
    return %c0_i32, %c0_i32_0 : i32, i32
  }
  func.func @transform_13(%arg0: i32, %arg1: i32) -> (i32, i32) {
    %c0_i32 = arith.constant 0 : i32
    %c0_i32_0 = arith.constant 0 : i32
    %c0_i32_1 = arith.constant 0 : i32
    return %c0_i32, %c0_i32_0 : i32, i32
  }
  func.func @transform_14(%arg0: i32, %arg1: i32) -> (i32, i32) {
    %c0_i32 = arith.constant 0 : i32
    %c0_i32_0 = arith.constant 0 : i32
    %c0_i32_1 = arith.constant 0 : i32
    return %c0_i32, %c0_i32_0 : i32, i32
  }
  func.func @transform_15(%arg0: i32, %arg1: i32) -> (i32, i32) {
    %c0_i32 = arith.constant 0 : i32
    %c0_i32_0 = arith.constant 0 : i32
    %c0_i32_1 = arith.constant 0 : i32
    return %c0_i32, %c0_i32_0 : i32, i32
  }
  func.func @transform_16(%arg0: i32, %arg1: i32) -> (i32, i32, i32) {
    %c0_i32 = arith.constant 0 : i32
    %c0_i32_0 = arith.constant 0 : i32
    %c0_i32_1 = arith.constant 0 : i32
    return %arg0, %c0_i32, %c0_i32_0 : i32, i32, i32
  }
  func.func @transform_17(%arg0: i32, %arg1: i32) -> (i32, i32, i32) {
    %c0_i32 = arith.constant 0 : i32
    %c0_i32_0 = arith.constant 0 : i32
    %c0_i32_1 = arith.constant 0 : i32
    return %arg0, %c0_i32, %c0_i32_0 : i32, i32, i32
  }
  func.func @transform_18(%arg0: i32, %arg1: i32) -> (i32, i32, i32) {
    %c0_i32 = arith.constant 0 : i32
    %c0_i32_0 = arith.constant 0 : i32
    %c0_i32_1 = arith.constant 0 : i32
    return %arg0, %c0_i32, %c0_i32_0 : i32, i32, i32
  }
  func.func @transform_19(%arg0: i32, %arg1: i32) -> (i32, i32, i32) {
    %c0_i32 = arith.constant 0 : i32
    %c0_i32_0 = arith.constant 0 : i32
    %c0_i32_1 = arith.constant 0 : i32
    return %arg0, %c0_i32, %c0_i32_0 : i32, i32, i32
  }
  func.func @transform_20(%arg0: i32, %arg1: i32) -> (i32, i32, i32) {
    %c0_i32 = arith.constant 0 : i32
    %c0_i32_0 = arith.constant 0 : i32
    %c0_i32_1 = arith.constant 0 : i32
    return %arg0, %c0_i32, %c0_i32_0 : i32, i32, i32
  }
  func.func @transform_21(%arg0: i32, %arg1: i32) -> (i32, i32, i32) {
    %c0_i32 = arith.constant 0 : i32
    %c0_i32_0 = arith.constant 0 : i32
    %c0_i32_1 = arith.constant 0 : i32
    return %arg0, %c0_i32, %c0_i32_0 : i32, i32, i32
  }
  func.func @transform_22(%arg0: i32, %arg1: i32) -> (i32, i32, i32) {
    %c0_i32 = arith.constant 0 : i32
    %c0_i32_0 = arith.constant 0 : i32
    %c0_i32_1 = arith.constant 0 : i32
    return %arg0, %c0_i32, %c0_i32_0 : i32, i32, i32
  }
}

</mosaic_0001>

<llo_original>
// kernel: tpu_custom_call.1
$region0: #{tpu_custom_call.1}
  #allocation0 [shape = 'u32[]', space=smem, size = 0x4, offset = 0x4, fixed_abs, tag = 'smem constant byte address 0x4 - core index']
  #allocation1 [shape = 'u32[144,128]{1,0:T(1,128)}', space=vmem, size = 0x12000, scoped, tag = 'internal scratch']
  #allocation2 [shape = 'f32[16,512]{1,0:T(8,128)}', space=vmem, size = 0x8000, scoped, tag = 'scratch operand']
  %s0 = inlined_call_operand.vmem [shape: s32[2,1,1], index: 0, kind: input, shape index: {}]
  %s1 = inlined_call_operand.hbm [shape: bf16[2,16,128], index: 1, kind: input, shape index: {}]
  %s2 = inlined_call_operand.hbm [shape: bf16[128,512], index: 2, kind: input, shape index: {}]
  %s3 = inlined_call_operand.hbm [shape: f32[1,512], index: 3, kind: input, shape index: {}]
  %s4 = inlined_call_operand.hbm [shape: f32[128,128], index: 4, kind: input, shape index: {}]
  %s5 = inlined_call_operand.hbm [shape: f32[128,128], index: 5, kind: input, shape index: {}]
  %s6 = inlined_call_operand.hbm [shape: f32[128,128], index: 6, kind: input, shape index: {}]
  %s7 = inlined_call_operand.hbm [shape: f32[128,128], index: 7, kind: input, shape index: {}]
  %s8 = inlined_call_operand.hbm [shape: bf16[5,128,512], index: 8, kind: input, shape index: {}]
  %s9 = inlined_call_operand.hbm [shape: f32[1,512], index: 9, kind: input, shape index: {}]
  %s10 = inlined_call_operand.hbm [shape: f32[1,512], index: 10, kind: input, shape index: {}]
  %s11 = inlined_call_operand.hbm [shape: f32[1,512], index: 11, kind: input, shape index: {}]
  %s12 = inlined_call_operand.hbm [shape: bf16[128,1024], index: 12, kind: input, shape index: {}]
  %s13 = inlined_call_operand.vmem [shape: f32[1,1024], index: 13, kind: input, shape index: {}]
  %s14 = inlined_call_operand.vmem [shape: f32[1,1024], index: 14, kind: input, shape index: {}]
  %s15 = inlined_call_operand.vmem [shape: f32[1,1024], index: 15, kind: input, shape index: {}]
  %s16 = inlined_call_operand.hbm [shape: f32[2,1,128], index: 16, kind: output, shape index: {0}]
  %s17 = inlined_call_operand.hbm [shape: f32[2,16,128], index: 17, kind: output, shape index: {1}]
  %s18 = inlined_call_operand.hbm [shape: f32[2,16,128], index: 18, kind: output, shape index: {2}]
  %s19 = inlined_call_operand.hbm [shape: f32[2,1,128], index: 19, kind: output, shape index: {3}]
  %s20 = inlined_call_operand.hbm [shape: f32[2,1,128], index: 20, kind: output, shape index: {4}]
  %s21 = inlined_call_operand.hbm [shape: f32[2,16,512], index: 21, kind: output, shape index: {5}]
  %s22 = inlined_call_operand.hbm [shape: f32[2,16,1024], index: 22, kind: output, shape index: {6}]
  %23 = xla_tuple %s16, %s17, %s18, %s19, %s20, %s21, %s22
  %s24 = sld [smem:[#allocation0]]
  $region205: #{tpu_custom_call.1} parent=0
    _
  %s26 = ssub.s32 1, %s24
  %s27 = scalar_select 0, %s26, %s24
  $region1: #{tpu_custom_call.1} parent=0
    #allocation3 [shape = 'u8[8192]{0}', space=vmem, size = 0x2000, scoped, tag = 'input window, operand 1']
    #allocation4 [shape = 's32[2]{0}', space=sflag, size = 0x8, scoped, tag = 'scoped memory for tpu_custom_call.1']
    #allocation5 [shape = 's32[2]{0}', space=sflag, size = 0x8, scoped, tag = 'scoped memory for tpu_custom_call.1']
    #allocation6 [shape = 'u8[131072]{0}', space=vmem, size = 0x20000, scoped, tag = 'input window, operand 2, single buffered']
    #allocation7 [shape = 's32[1]{0}', space=sflag, size = 0x4, scoped, tag = 'scoped memory for tpu_custom_call.1']
    #allocation8 [shape = 'u8[2048]{0}', space=vmem, size = 0x800, scoped, tag = 'input window, operand 3, single buffered']
    #allocation9 [shape = 'u8[65536]{0}', space=vmem, size = 0x10000, scoped, tag = 'input window, operand 4, single buffered']
    #allocation10 [shape = 's32[1]{0}', space=sflag, size = 0x4, scoped, tag = 'scoped memory for tpu_custom_call.1']
    #allocation11 [shape = 'u8[65536]{0}', space=vmem, size = 0x10000, scoped, tag = 'input window, operand 5, single buffered']
    #allocation12 [shape = 'u8[65536]{0}', space=vmem, size = 0x10000, scoped, tag = 'input window, operand 6, single buffered']
    #allocation13 [shape = 's32[1]{0}', space=sflag, size = 0x4, scoped, tag = 'scoped memory for tpu_custom_call.1']
    #allocation14 [shape = 'u8[65536]{0}', space=vmem, size = 0x10000, scoped, tag = 'input window, operand 7, single buffered']
    #allocation15 [shape = 'u8[655360]{0}', space=vmem, size = 0xa0000, scoped, tag = 'input window, operand 8, single buffered']
    #allocation16 [shape = 's32[1]{0}', space=sflag, size = 0x4, scoped, tag = 'scoped memory for tpu_custom_call.1']
    #allocation17 [shape = 'u8[2048]{0}', space=vmem, size = 0x800, scoped, tag = 'input window, operand 9, single buffered']
    #allocation18 [shape = 'u8[2048]{0}', space=vmem, size = 0x800, scoped, tag = 'input window, operand 10, single buffered']
    #allocation19 [shape = 's32[1]{0}', space=sflag, size = 0x4, scoped, tag = 'scoped memory for tpu_custom_call.1']
    #allocation20 [shape = 'u8[2048]{0}', space=vmem, size = 0x800, scoped, tag = 'input window, operand 11, single buffered']
    #allocation21 [shape = 'u8[262144]{0}', space=vmem, size = 0x40000, scoped, tag = 'input window, operand 12, single buffered']
    #allocation22 [shape = 's32[1]{0}', space=sflag, size = 0x4, scoped, tag = 'scoped memory for tpu_custom_call.1']
    #allocation23 [shape = 'u8[1024]{0}', space=vmem, size = 0x400, scoped, tag = 'output window, operand 0']
    #allocation24 [shape = 'u8[16384]{0}', space=vmem, size = 0x4000, scoped, tag = 'output window, operand 1']
    #allocation25 [shape = 's32[2]{0}', space=sflag, size = 0x8, scoped, tag = 'scoped memory for tpu_custom_call.1']
    #allocation26 [shape = 'u8[16384]{0}', space=vmem, size = 0x4000, scoped, tag = 'output window, operand 2']
    #allocation27 [shape = 'u8[1024]{0}', space=vmem, size = 0x400, scoped, tag = 'output window, operand 3']
    #allocation28 [shape = 's32[2]{0}', space=sflag, size = 0x8, scoped, tag = 'scoped memory for tpu_custom_call.1']
    #allocation29 [shape = 'u8[1024]{0}', space=vmem, size = 0x400, scoped, tag = 'output window, operand 4']
    #allocation30 [shape = 'u8[65536]{0}', space=vmem, size = 0x10000, scoped, tag = 'output window, operand 5']
    #allocation31 [shape = 's32[2]{0}', space=sflag, size = 0x8, scoped, tag = 'scoped memory for tpu_custom_call.1']
    #allocation32 [shape = 'u8[131072]{0}', space=vmem, size = 0x20000, scoped, tag = 'output window, operand 6']
    %28 = vsyncpa [#allocation4], 0
    %s29 = scalar_lea.sflag [#allocation4], 1
    %30 = vsyncpa %s29, 0
    %31 = vsyncpa [#allocation7], 0
    %32 = vsyncpa [#allocation10], 0
    %33 = vsyncpa [#allocation13], 0
    %34 = vsyncpa [#allocation16], 0
    %35 = vsyncpa [#allocation19], 0
    %36 = vsyncpa [#allocation22], 0
    %37 = vsyncpa [#allocation5], 0
    %s38 = scalar_lea.sflag [#allocation5], 1
    %39 = vsyncpa %s38, 0
    %40 = vsyncpa [#allocation25], 0
    %s41 = scalar_lea.sflag [#allocation25], 1
    %42 = vsyncpa %s41, 0
    %43 = vsyncpa [#allocation28], 0
    %s44 = scalar_lea.sflag [#allocation28], 1
    %45 = vsyncpa %s44, 0
    %46 = vsyncpa [#allocation31], 0
    %s47 = scalar_lea.sflag [#allocation31], 1
    %48 = vsyncpa %s47, 0
    loop: start=0, step=1, limit=4
    $region2: #{tpu_custom_call.1} parent=1 // loop_pre_header
      _
    $region3: #{tpu_custom_call.1} parent=1 // loop_header
      %s50 = sphi 0, %s54
      %p51 = scmp.ge.s32.totalorder %s50, 4
      %s57 = sphi 0, %s69
      %s58 = sphi 0, %s65
      %s59 = sphi 0, %s57
      %s60 = sphi 0, %s58
      %s61 = sphi 0, %s59
      %s62 = sphi 0, %s60
      %s72 = sphi 0, %s74
      %s75 = sphi 0, %s72
      %s76 = sphi 0, %s75
      %s92 = sphi 0, %s76
      %s100 = sphi 0, %s102
      %s103 = sphi 0, %s100
      %s104 = sphi 0, %s103
      %s120 = sphi 0, %s104
      %s126 = sphi 0, %s128
      %s129 = sphi 0, %s126
      %s130 = sphi 0, %s129
      %s146 = sphi 0, %s130
      %s150 = sphi 0, %s150
      %s152 = sphi 0, %s150
      %s153 = sphi 0, %s152
      %s167 = sphi 0, %s153
      %s171 = sphi 0, %s171
      %s173 = sphi 0, %s171
      %s174 = sphi 0, %s173
      %s188 = sphi 0, %s174
      %s192 = sphi 0, %s192
      %s194 = sphi 0, %s192
      %s195 = sphi 0, %s194
      %s209 = sphi 0, %s195
      %s213 = sphi 0, %s213
      %s215 = sphi 0, %s213
      %s216 = sphi 0, %s215
      %s230 = sphi 0, %s216
      %s234 = sphi 0, %s234
      %s236 = sphi 0, %s234
      %s237 = sphi 0, %s236
      %s251 = sphi 0, %s237
      %s255 = sphi 0, %s255
      %s257 = sphi 0, %s255
      %s258 = sphi 0, %s257
      %s272 = sphi 0, %s258
      %s276 = sphi 0, %s276
      %s278 = sphi 0, %s276
      %s279 = sphi 0, %s278
      %s293 = sphi 0, %s279
      %s297 = sphi 0, %s297
      %s299 = sphi 0, %s297
      %s300 = sphi 0, %s299
      %s314 = sphi 0, %s300
      %s318 = sphi 0, %s318
      %s320 = sphi 0, %s318
      %s321 = sphi 0, %s320
      %s335 = sphi 0, %s321
      %s339 = sphi 0, %s339
      %s341 = sphi 0, %s339
      %s342 = sphi 0, %s341
      %s356 = sphi 0, %s342
      %s360 = sphi 0, %s360
      %s362 = sphi 0, %s360
      %s363 = sphi 0, %s362
      %s377 = sphi 0, %s363
      %s381 = sphi 0, %s381
      %s383 = sphi 0, %s381
      %s384 = sphi 0, %s383
      %s398 = sphi 0, %s384
      %s402 = sphi 0, %s402
      %s404 = sphi 0, %s402
      %s405 = sphi 0, %s404
      %s419 = sphi 0, %s405
      %s425 = sphi 0, %s427
      %s428 = sphi 0, %s425
      %s429 = sphi 0, %s428
      %s445 = sphi 0, %s429
      %s451 = sphi 0, %s453
      %s454 = sphi 0, %s451
      %s455 = sphi 0, %s454
      %s471 = sphi 0, %s455
      %s477 = sphi 0, %s479
      %s480 = sphi 0, %s477
      %s481 = sphi 0, %s480
      %s497 = sphi 0, %s481
      %s503 = sphi 0, %s505
      %s506 = sphi 0, %s503
      %s507 = sphi 0, %s506
      %s523 = sphi 0, %s507
      %s529 = sphi 0, %s531
      %s532 = sphi 0, %s529
      %s533 = sphi 0, %s532
      %s549 = sphi 0, %s533
      %s555 = sphi 0, %s557
      %s558 = sphi 0, %s555
      %s559 = sphi 0, %s558
      %s575 = sphi 0, %s559
      %s581 = sphi 0, %s583
      %s584 = sphi 0, %s581
      %s585 = sphi 0, %s584
      %s601 = sphi 0, %s585
    $region4: #{tpu_custom_call.1} parent=1 // loop_header_branch
      %53 = sbr.rel (%p51) target = $region8
    $region5: #{tpu_custom_call.1} parent=1 // loop_body
      %s55 = ssub.s32 %s50, 1
      %s56 = ssub.s32 %s50, 2
      %s63 = sadd.s32 1, %s58
      %p64 = scmp.ge.s32.totalorder %s63, 1
      %s65 = scalar_select %p64, 0, %s63
      %s66 = sadd.s32 1, %s57
      %s67 = scalar_select %p64, %s66, %s57
      %p68 = scmp.ge.s32.totalorder %s67, 2
      %s69 = scalar_select %p68, 0, %s67
      %s70 = ssub.s32 %s57, %s69
      %p71 = scmp.eq.s32.totalorder %s70, 0
      %s73 = sadd.s32 %s72, 1
      %s74 = scalar_select %p71, %s72, %s73
      %p77 = pneg %p71
      %p78 = scmp.eq.s32.totalorder %s50, 1
      %p79 = por %p77, %p78
      %p80 = scmp.ne.s32.totalorder %s72, %s75
      %p81 = scmp.eq.s32.totalorder %s50, 0
      %p82 = por %p80, %p81
      %p83 = scmp.ne.s32.totalorder %s72, %s75
      %p84 = scmp.eq.s32.totalorder %s55, 1
      %p85 = por %p83, %p84
      %p86 = scmp.ne.s32.totalorder %s75, %s76
      %p87 = scmp.eq.s32.totalorder %s55, 0
      %p88 = por %p86, %p87
      %p89 = scmp.ne.s32.totalorder %s75, %s76
      %p90 = scmp.eq.s32.totalorder %s56, 1
      %p91 = por %p89, %p90
      %p93 = scmp.ne.s32.totalorder %s76, %s92
      %p94 = scmp.eq.s32.totalorder %s56, 0
      %p95 = por %p93, %p94
      %s96 = ssub.s32 %s57, %s69
      %s97 = ssub.s32 %s58, %s65
      %s98 = sor.u32 %s96, %s97
      %p99 = scmp.eq.s32.totalorder %s98, 0
      %s101 = sadd.s32 %s100, 1
      %s102 = scalar_select %p99, %s100, %s101
      %p105 = pneg %p99
      %p106 = scmp.eq.s32.totalorder %s50, 1
      %p107 = por %p105, %p106
      %p108 = scmp.ne.s32.totalorder %s100, %s103
      %p109 = scmp.eq.s32.totalorder %s50, 0
      %p110 = por %p108, %p109
      %p111 = scmp.ne.s32.totalorder %s100, %s103
      %p112 = scmp.eq.s32.totalorder %s55, 1
      %p113 = por %p111, %p112
      %p114 = scmp.ne.s32.totalorder %s103, %s104
      %p115 = scmp.eq.s32.totalorder %s55, 0
      %p116 = por %p114, %p115
      %p117 = scmp.ne.s32.totalorder %s103, %s104
      %p118 = scmp.eq.s32.totalorder %s56, 1
      %p119 = por %p117, %p118
      %p121 = scmp.ne.s32.totalorder %s104, %s120
      %p122 = scmp.eq.s32.totalorder %s56, 0
      %p123 = por %p121, %p122
      %s124 = ssub.s32 %s58, %s65
      %p125 = scmp.eq.s32.totalorder %s124, 0
      %s127 = sadd.s32 %s126, 1
      %s128 = scalar_select %p125, %s126, %s127
      %p131 = pneg %p125
      %p132 = scmp.eq.s32.totalorder %s50, 1
      %p133 = por %p131, %p132
      %p134 = scmp.ne.s32.totalorder %s126, %s129
      %p135 = scmp.eq.s32.totalorder %s50, 0
      %p136 = por %p134, %p135
      %p137 = scmp.ne.s32.totalorder %s126, %s129
      %p138 = scmp.eq.s32.totalorder %s55, 1
      %p139 = por %p137, %p138
      %p140 = scmp.ne.s32.totalorder %s129, %s130
      %p141 = scmp.eq.s32.totalorder %s55, 0
      %p142 = por %p140, %p141
      %p143 = scmp.ne.s32.totalorder %s129, %s130
      %p144 = scmp.eq.s32.totalorder %s56, 1
      %p145 = por %p143, %p144
      %p147 = scmp.ne.s32.totalorder %s130, %s146
      %p148 = scmp.eq.s32.totalorder %s56, 0
      %p149 = por %p147, %p148
      %s151 = sadd.s32 %s150, 1
      %p154 = scmp.eq.s32.totalorder %s50, 1
      %p155 = scmp.ne.s32.totalorder %s150, %s152
      %p156 = scmp.eq.s32.totalorder %s50, 0
      %p157 = por %p155, %p156
      %p158 = scmp.ne.s32.totalorder %s150, %s152
      %p159 = scmp.eq.s32.totalorder %s55, 1
      %p160 = por %p158, %p159
      %p161 = scmp.ne.s32.totalorder %s152, %s153
      %p162 = scmp.eq.s32.totalorder %s55, 0
      %p163 = por %p161, %p162
      %p164 = scmp.ne.s32.totalorder %s152, %s153
      %p165 = scmp.eq.s32.totalorder %s56, 1
      %p166 = por %p164, %p165
      %p168 = scmp.ne.s32.totalorder %s153, %s167
      %p169 = scmp.eq.s32.totalorder %s56, 0
      %p170 = por %p168, %p169
      %s172 = sadd.s32 %s171, 1
      %p175 = scmp.eq.s32.totalorder %s50, 1
      %p176 = scmp.ne.s32.totalorder %s171, %s173
      %p177 = scmp.eq.s32.totalorder %s50, 0
      %p178 = por %p176, %p177
      %p179 = scmp.ne.s32.totalorder %s171, %s173
      %p180 = scmp.eq.s32.totalorder %s55, 1
      %p181 = por %p179, %p180
      %p182 = scmp.ne.s32.totalorder %s173, %s174
      %p183 = scmp.eq.s32.totalorder %s55, 0
      %p184 = por %p182, %p183
      %p185 = scmp.ne.s32.totalorder %s173, %s174
      %p186 = scmp.eq.s32.totalorder %s56, 1
      %p187 = por %p185, %p186
      %p189 = scmp.ne.s32.totalorder %s174, %s188
      %p190 = scmp.eq.s32.totalorder %s56, 0
      %p191 = por %p189, %p190
      %s193 = sadd.s32 %s192, 1
      %p196 = scmp.eq.s32.totalorder %s50, 1
      %p197 = scmp.ne.s32.totalorder %s192, %s194
      %p198 = scmp.eq.s32.totalorder %s50, 0
      %p199 = por %p197, %p198
      %p200 = scmp.ne.s32.totalorder %s192, %s194
      %p201 = scmp.eq.s32.totalorder %s55, 1
      %p202 = por %p200, %p201
      %p203 = scmp.ne.s32.totalorder %s194, %s195
      %p204 = scmp.eq.s32.totalorder %s55, 0
      %p205 = por %p203, %p204
      %p206 = scmp.ne.s32.totalorder %s194, %s195
      %p207 = scmp.eq.s32.totalorder %s56, 1
      %p208 = por %p206, %p207
      %p210 = scmp.ne.s32.totalorder %s195, %s209
      %p211 = scmp.eq.s32.totalorder %s56, 0
      %p212 = por %p210, %p211
      %s214 = sadd.s32 %s213, 1
      %p217 = scmp.eq.s32.totalorder %s50, 1
      %p218 = scmp.ne.s32.totalorder %s213, %s215
      %p219 = scmp.eq.s32.totalorder %s50, 0
      %p220 = por %p218, %p219
      %p221 = scmp.ne.s32.totalorder %s213, %s215
      %p222 = scmp.eq.s32.totalorder %s55, 1
      %p223 = por %p221, %p222
      %p224 = scmp.ne.s32.totalorder %s215, %s216
      %p225 = scmp.eq.s32.totalorder %s55, 0
      %p226 = por %p224, %p225
      %p227 = scmp.ne.s32.totalorder %s215, %s216
      %p228 = scmp.eq.s32.totalorder %s56, 1
      %p229 = por %p227, %p228
      %p231 = scmp.ne.s32.totalorder %s216, %s230
      %p232 = scmp.eq.s32.totalorder %s56, 0
      %p233 = por %p231, %p232
      %s235 = sadd.s32 %s234, 1
      %p238 = scmp.eq.s32.totalorder %s50, 1
      %p239 = scmp.ne.s32.totalorder %s234, %s236
      %p240 = scmp.eq.s32.totalorder %s50, 0
      %p241 = por %p239, %p240
      %p242 = scmp.ne.s32.totalorder %s234, %s236
      %p243 = scmp.eq.s32.totalorder %s55, 1
      %p244 = por %p242, %p243
      %p245 = scmp.ne.s32.totalorder %s236, %s237
      %p246 = scmp.eq.s32.totalorder %s55, 0
      %p247 = por %p245, %p246
      %p248 = scmp.ne.s32.totalorder %s236, %s237
      %p249 = scmp.eq.s32.totalorder %s56, 1
      %p250 = por %p248, %p249
      %p252 = scmp.ne.s32.totalorder %s237, %s251
      %p253 = scmp.eq.s32.totalorder %s56, 0
      %p254 = por %p252, %p253
      %s256 = sadd.s32 %s255, 1
      %p259 = scmp.eq.s32.totalorder %s50, 1
      %p260 = scmp.ne.s32.totalorder %s255, %s257
      %p261 = scmp.eq.s32.totalorder %s50, 0
      %p262 = por %p260, %p261
      %p263 = scmp.ne.s32.totalorder %s255, %s257
      %p264 = scmp.eq.s32.totalorder %s55, 1
      %p265 = por %p263, %p264
      %p266 = scmp.ne.s32.totalorder %s257, %s258
      %p267 = scmp.eq.s32.totalorder %s55, 0
      %p268 = por %p266, %p267
      %p269 = scmp.ne.s32.totalorder %s257, %s258
      %p270 = scmp.eq.s32.totalorder %s56, 1
      %p271 = por %p269, %p270
      %p273 = scmp.ne.s32.totalorder %s258, %s272
      %p274 = scmp.eq.s32.totalorder %s56, 0
      %p275 = por %p273, %p274
      %s277 = sadd.s32 %s276, 1
      %p280 = scmp.eq.s32.totalorder %s50, 1
      %p281 = scmp.ne.s32.totalorder %s276, %s278
      %p282 = scmp.eq.s32.totalorder %s50, 0
      %p283 = por %p281, %p282
      %p284 = scmp.ne.s32.totalorder %s276, %s278
      %p285 = scmp.eq.s32.totalorder %s55, 1
      %p286 = por %p284, %p285
      %p287 = scmp.ne.s32.totalorder %s278, %s279
      %p288 = scmp.eq.s32.totalorder %s55, 0
      %p289 = por %p287, %p288
      %p290 = scmp.ne.s32.totalorder %s278, %s279
      %p291 = scmp.eq.s32.totalorder %s56, 1
      %p292 = por %p290, %p291
      %p294 = scmp.ne.s32.totalorder %s279, %s293
      %p295 = scmp.eq.s32.totalorder %s56, 0
      %p296 = por %p294, %p295
      %s298 = sadd.s32 %s297, 1
      %p301 = scmp.eq.s32.totalorder %s50, 1
      %p302 = scmp.ne.s32.totalorder %s297, %s299
      %p303 = scmp.eq.s32.totalorder %s50, 0
      %p304 = por %p302, %p303
      %p305 = scmp.ne.s32.totalorder %s297, %s299
      %p306 = scmp.eq.s32.totalorder %s55, 1
      %p307 = por %p305, %p306
      %p308 = scmp.ne.s32.totalorder %s299, %s300
      %p309 = scmp.eq.s32.totalorder %s55, 0
      %p310 = por %p308, %p309
      %p311 = scmp.ne.s32.totalorder %s299, %s300
      %p312 = scmp.eq.s32.totalorder %s56, 1
      %p313 = por %p311, %p312
      %p315 = scmp.ne.s32.totalorder %s300, %s314
      %p316 = scmp.eq.s32.totalorder %s56, 0
      %p317 = por %p315, %p316
      %s319 = sadd.s32 %s318, 1
      %p322 = scmp.eq.s32.totalorder %s50, 1
      %p323 = scmp.ne.s32.totalorder %s318, %s320
      %p324 = scmp.eq.s32.totalorder %s50, 0
      %p325 = por %p323, %p324
      %p326 = scmp.ne.s32.totalorder %s318, %s320
      %p327 = scmp.eq.s32.totalorder %s55, 1
      %p328 = por %p326, %p327
      %p329 = scmp.ne.s32.totalorder %s320, %s321
      %p330 = scmp.eq.s32.totalorder %s55, 0
      %p331 = por %p329, %p330
      %p332 = scmp.ne.s32.totalorder %s320, %s321
      %p333 = scmp.eq.s32.totalorder %s56, 1
      %p334 = por %p332, %p333
      %p336 = scmp.ne.s32.totalorder %s321, %s335
      %p337 = scmp.eq.s32.totalorder %s56, 0
      %p338 = por %p336, %p337
      %s340 = sadd.s32 %s339, 1
      %p343 = scmp.eq.s32.totalorder %s50, 1
      %p344 = scmp.ne.s32.totalorder %s339, %s341
      %p345 = scmp.eq.s32.totalorder %s50, 0
      %p346 = por %p344, %p345
      %p347 = scmp.ne.s32.totalorder %s339, %s341
      %p348 = scmp.eq.s32.totalorder %s55, 1
      %p349 = por %p347, %p348
      %p350 = scmp.ne.s32.totalorder %s341, %s342
      %p351 = scmp.eq.s32.totalorder %s55, 0
      %p352 = por %p350, %p351
      %p353 = scmp.ne.s32.totalorder %s341, %s342
      %p354 = scmp.eq.s32.totalorder %s56, 1
      %p355 = por %p353, %p354
      %p357 = scmp.ne.s32.totalorder %s342, %s356
      %p358 = scmp.eq.s32.totalorder %s56, 0
      %p359 = por %p357, %p358
      %s361 = sadd.s32 %s360, 1
      %p364 = scmp.eq.s32.totalorder %s50, 1
      %p365 = scmp.ne.s32.totalorder %s360, %s362
      %p366 = scmp.eq.s32.totalorder %s50, 0
      %p367 = por %p365, %p366
      %p368 = scmp.ne.s32.totalorder %s360, %s362
      %p369 = scmp.eq.s32.totalorder %s55, 1
      %p370 = por %p368, %p369
      %p371 = scmp.ne.s32.totalorder %s362, %s363
      %p372 = scmp.eq.s32.totalorder %s55, 0
      %p373 = por %p371, %p372
      %p374 = scmp.ne.s32.totalorder %s362, %s363
      %p375 = scmp.eq.s32.totalorder %s56, 1
      %p376 = por %p374, %p375
      %p378 = scmp.ne.s32.totalorder %s363, %s377
      %p379 = scmp.eq.s32.totalorder %s56, 0
      %p380 = por %p378, %p379
      %s382 = sadd.s32 %s381, 1
      %p385 = scmp.eq.s32.totalorder %s50, 1
      %p386 = scmp.ne.s32.totalorder %s381, %s383
      %p387 = scmp.eq.s32.totalorder %s50, 0
      %p388 = por %p386, %p387
      %p389 = scmp.ne.s32.totalorder %s381, %s383
      %p390 = scmp.eq.s32.totalorder %s55, 1
      %p391 = por %p389, %p390
      %p392 = scmp.ne.s32.totalorder %s383, %s384
      %p393 = scmp.eq.s32.totalorder %s55, 0
      %p394 = por %p392, %p393
      %p395 = scmp.ne.s32.totalorder %s383, %s384
      %p396 = scmp.eq.s32.totalorder %s56, 1
      %p397 = por %p395, %p396
      %p399 = scmp.ne.s32.totalorder %s384, %s398
      %p400 = scmp.eq.s32.totalorder %s56, 0
      %p401 = por %p399, %p400
      %s403 = sadd.s32 %s402, 1
      %p406 = scmp.eq.s32.totalorder %s50, 1
      %p407 = scmp.ne.s32.totalorder %s402, %s404
      %p408 = scmp.eq.s32.totalorder %s50, 0
      %p409 = por %p407, %p408
      %p410 = scmp.ne.s32.totalorder %s402, %s404
      %p411 = scmp.eq.s32.totalorder %s55, 1
      %p412 = por %p410, %p411
      %p413 = scmp.ne.s32.totalorder %s404, %s405
      %p414 = scmp.eq.s32.totalorder %s55, 0
      %p415 = por %p413, %p414
      %p416 = scmp.ne.s32.totalorder %s404, %s405
      %p417 = scmp.eq.s32.totalorder %s56, 1
      %p418 = por %p416, %p417
      %p420 = scmp.ne.s32.totalorder %s405, %s419
      %p421 = scmp.eq.s32.totalorder %s56, 0
      %p422 = por %p420, %p421
      %s423 = ssub.s32 %s57, %s69
      %p424 = scmp.eq.s32.totalorder %s423, 0
      %s426 = sadd.s32 %s425, 1
      %s427 = scalar_select %p424, %s425, %s426
      %p430 = pneg %p424
      %p431 = scmp.eq.s32.totalorder %s50, 1
      %p432 = por %p430, %p431
      %p433 = scmp.ne.s32.totalorder %s425, %s428
      %p434 = scmp.eq.s32.totalorder %s50, 0
      %p435 = por %p433, %p434
      %p436 = scmp.ne.s32.totalorder %s425, %s428
      %p437 = scmp.eq.s32.totalorder %s55, 1
      %p438 = por %p436, %p437
      %p439 = scmp.ne.s32.totalorder %s428, %s429
      %p440 = scmp.eq.s32.totalorder %s55, 0
      %p441 = por %p439, %p440
      %p442 = scmp.ne.s32.totalorder %s428, %s429
      %p443 = scmp.eq.s32.totalorder %s56, 1
      %p444 = por %p442, %p443
      %p446 = scmp.ne.s32.totalorder %s429, %s445
      %p447 = scmp.eq.s32.totalorder %s56, 0
      %p448 = por %p446, %p447
      %s449 = ssub.s32 %s57, %s69
      %p450 = scmp.eq.s32.totalorder %s449, 0
      %s452 = sadd.s32 %s451, 1
      %s453 = scalar_select %p450, %s451, %s452
      %p456 = pneg %p450
      %p457 = scmp.eq.s32.totalorder %s50, 1
      %p458 = por %p456, %p457
      %p459 = scmp.ne.s32.totalorder %s451, %s454
      %p460 = scmp.eq.s32.totalorder %s50, 0
      %p461 = por %p459, %p460
      %p462 = scmp.ne.s32.totalorder %s451, %s454
      %p463 = scmp.eq.s32.totalorder %s55, 1
      %p464 = por %p462, %p463
      %p465 = scmp.ne.s32.totalorder %s454, %s455
      %p466 = scmp.eq.s32.totalorder %s55, 0
      %p467 = por %p465, %p466
      %p468 = scmp.ne.s32.totalorder %s454, %s455
      %p469 = scmp.eq.s32.totalorder %s56, 1
      %p470 = por %p468, %p469
      %p472 = scmp.ne.s32.totalorder %s455, %s471
      %p473 = scmp.eq.s32.totalorder %s56, 0
      %p474 = por %p472, %p473
      %s475 = ssub.s32 %s57, %s69
      %p476 = scmp.eq.s32.totalorder %s475, 0
      %s478 = sadd.s32 %s477, 1
      %s479 = scalar_select %p476, %s477, %s478
      %p482 = pneg %p476
      %p483 = scmp.eq.s32.totalorder %s50, 1
      %p484 = por %p482, %p483
      %p485 = scmp.ne.s32.totalorder %s477, %s480
      %p486 = scmp.eq.s32.totalorder %s50, 0
      %p487 = por %p485, %p486
      %p488 = scmp.ne.s32.totalorder %s477, %s480
      %p489 = scmp.eq.s32.totalorder %s55, 1
      %p490 = por %p488, %p489
      %p491 = scmp.ne.s32.totalorder %s480, %s481
      %p492 = scmp.eq.s32.totalorder %s55, 0
      %p493 = por %p491, %p492
      %p494 = scmp.ne.s32.totalorder %s480, %s481
      %p495 = scmp.eq.s32.totalorder %s56, 1
      %p496 = por %p494, %p495
      %p498 = scmp.ne.s32.totalorder %s481, %s497
      %p499 = scmp.eq.s32.totalorder %s56, 0
      %p500 = por %p498, %p499
      %s501 = ssub.s32 %s57, %s69
      %p502 = scmp.eq.s32.totalorder %s501, 0
      %s504 = sadd.s32 %s503, 1
      %s505 = scalar_select %p502, %s503, %s504
      %p508 = pneg %p502
      %p509 = scmp.eq.s32.totalorder %s50, 1
      %p510 = por %p508, %p509
      %p511 = scmp.ne.s32.totalorder %s503, %s506
      %p512 = scmp.eq.s32.totalorder %s50, 0
      %p513 = por %p511, %p512
      %p514 = scmp.ne.s32.totalorder %s503, %s506
      %p515 = scmp.eq.s32.totalorder %s55, 1
      %p516 = por %p514, %p515
      %p517 = scmp.ne.s32.totalorder %s506, %s507
      %p518 = scmp.eq.s32.totalorder %s55, 0
      %p519 = por %p517, %p518
      %p520 = scmp.ne.s32.totalorder %s506, %s507
      %p521 = scmp.eq.s32.totalorder %s56, 1
      %p522 = por %p520, %p521
      %p524 = scmp.ne.s32.totalorder %s507, %s523
      %p525 = scmp.eq.s32.totalorder %s56, 0
      %p526 = por %p524, %p525
      %s527 = ssub.s32 %s57, %s69
      %p528 = scmp.eq.s32.totalorder %s527, 0
      %s530 = sadd.s32 %s529, 1
      %s531 = scalar_select %p528, %s529, %s530
      %p534 = pneg %p528
      %p535 = scmp.eq.s32.totalorder %s50, 1
      %p536 = por %p534, %p535
      %p537 = scmp.ne.s32.totalorder %s529, %s532
      %p538 = scmp.eq.s32.totalorder %s50, 0
      %p539 = por %p537, %p538
      %p540 = scmp.ne.s32.totalorder %s529, %s532
      %p541 = scmp.eq.s32.totalorder %s55, 1
      %p542 = por %p540, %p541
      %p543 = scmp.ne.s32.totalorder %s532, %s533
      %p544 = scmp.eq.s32.totalorder %s55, 0
      %p545 = por %p543, %p544
      %p546 = scmp.ne.s32.totalorder %s532, %s533
      %p547 = scmp.eq.s32.totalorder %s56, 1
      %p548 = por %p546, %p547
      %p550 = scmp.ne.s32.totalorder %s533, %s549
      %p551 = scmp.eq.s32.totalorder %s56, 0
      %p552 = por %p550, %p551
      %s553 = ssub.s32 %s57, %s69
      %p554 = scmp.eq.s32.totalorder %s553, 0
      %s556 = sadd.s32 %s555, 1
      %s557 = scalar_select %p554, %s555, %s556
      %p560 = pneg %p554
      %p561 = scmp.eq.s32.totalorder %s50, 1
      %p562 = por %p560, %p561
      %p563 = scmp.ne.s32.totalorder %s555, %s558
      %p564 = scmp.eq.s32.totalorder %s50, 0
      %p565 = por %p563, %p564
      %p566 = scmp.ne.s32.totalorder %s555, %s558
      %p567 = scmp.eq.s32.totalorder %s55, 1
      %p568 = por %p566, %p567
      %p569 = scmp.ne.s32.totalorder %s558, %s559
      %p570 = scmp.eq.s32.totalorder %s55, 0
      %p571 = por %p569, %p570
      %p572 = scmp.ne.s32.totalorder %s558, %s559
      %p573 = scmp.eq.s32.totalorder %s56, 1
      %p574 = por %p572, %p573
      %p576 = scmp.ne.s32.totalorder %s559, %s575
      %p577 = scmp.eq.s32.totalorder %s56, 0
      %p578 = por %p576, %p577
      %s579 = ssub.s32 %s57, %s69
      %p580 = scmp.eq.s32.totalorder %s579, 0
      %s582 = sadd.s32 %s581, 1
      %s583 = scalar_select %p580, %s581, %s582
      %p586 = pneg %p580
      %p587 = scmp.eq.s32.totalorder %s50, 1
      %p588 = por %p586, %p587
      %p589 = scmp.ne.s32.totalorder %s581, %s584
      %p590 = scmp.eq.s32.totalorder %s50, 0
      %p591 = por %p589, %p590
      %p592 = scmp.ne.s32.totalorder %s581, %s584
      %p593 = scmp.eq.s32.totalorder %s55, 1
      %p594 = por %p592, %p593
      %p595 = scmp.ne.s32.totalorder %s584, %s585
      %p596 = scmp.eq.s32.totalorder %s55, 0
      %p597 = por %p595, %p596
      %p598 = scmp.ne.s32.totalorder %s584, %s585
      %p599 = scmp.eq.s32.totalorder %s56, 1
      %p600 = por %p598, %p599
      %p602 = scmp.ne.s32.totalorder %s585, %s601
      %p603 = scmp.eq.s32.totalorder %s56, 0
      %p604 = por %p602, %p603
      %p605 = scmp.le.s32.totalorder 1, %s50
      %p606 = scmp.lt.s32.totalorder %s50, 3
      %p607 = pnand %p605, %p606
      %p608 = pneg %p607
      // Predicated region
      $region9: #{tpu_custom_call.1} parent=5 // pred_check
        _
      $region10: #{tpu_custom_call.1} parent=5 // pred_check_branch
        %610 = sbr.rel (%p607) target = $region12
      $region11: #{tpu_custom_call.1} parent=5 // pred_region
        %s611 = ssub.s32 %s50, 1
        // Predicated region
        $region13: #{tpu_custom_call.1} parent=11 // pred_check
          %p612 = pneg %p142
        $region14: #{tpu_custom_call.1} parent=11 // pred_check_branch
          %614 = sbr.rel (%p612) target = $region16
        $region15: #{tpu_custom_call.1} parent=11 // pred_region
          %s615 = smul.u32 16, %s60
          %s617 = ssub.s32 4096, 4096
          %618 = vsyncadd [#allocation7], %s617
          %s619 = smul.addr %s615, 4
          %s620 = smul.addr %s619, 64
          %s621 = scalar_lea.hbm %s2, %s620
          %s622 = sshll.u32 [#allocation6], 4
          %s623 = int_to_ptr.vmem [resolvable:$true] %s622
          %628 = dma.hbm_to_vmem [thread:$0]  %s621, 4096, %s623, [#allocation7], 256, 256, 16
        $region16: #{tpu_custom_call.1} parent=11 // pred_fallthru
          _
        // Predicated region
        $region17: #{tpu_custom_call.1} parent=11 // pred_check
          %p629 = pneg %p163
        $region18: #{tpu_custom_call.1} parent=11 // pred_check_branch
          %631 = sbr.rel (%p629) target = $region20
        $region19: #{tpu_custom_call.1} parent=11 // pred_region
          %s633 = ssub.s32 64, 64
          %634 = vsyncadd [#allocation7], %s633
          %s636 = sshll.u32 [#allocation8], 4
          %s637 = int_to_ptr.vmem [resolvable:$true] %s636
          %639 = dma.hbm_to_vmem [thread:$0]  %s3, 64, %s637, [#allocation7]
        $region20: #{tpu_custom_call.1} parent=11 // pred_fallthru
          _
        // Predicated region
        $region21: #{tpu_custom_call.1} parent=11 // pred_check
          %p640 = pneg %p184
        $region22: #{tpu_custom_call.1} parent=11 // pred_check_branch
          %642 = sbr.rel (%p640) target = $region24
        $region23: #{tpu_custom_call.1} parent=11 // pred_region
          %s644 = ssub.s32 2048, 2048
          %645 = vsyncadd [#allocation10], %s644
          %s646 = sshll.u32 [#allocation9], 4
          %s647 = int_to_ptr.vmem [resolvable:$true] %s646
          %652 = dma.hbm_to_vmem [thread:$0]  %s4, 2048, %s647, [#allocation10], 128, 128, 8
        $region24: #{tpu_custom_call.1} parent=11 // pred_fallthru
          _
        // Predicated region
        $region25: #{tpu_custom_call.1} parent=11 // pred_check
          %p653 = pneg %p205
        $region26: #{tpu_custom_call.1} parent=11 // pred_check_branch
          %655 = sbr.rel (%p653) target = $region28
        $region27: #{tpu_custom_call.1} parent=11 // pred_region
          %s657 = ssub.s32 2048, 2048
          %658 = vsyncadd [#allocation10], %s657
          %s659 = sshll.u32 [#allocation11], 4
          %s660 = int_to_ptr.vmem [resolvable:$true] %s659
          %665 = dma.hbm_to_vmem [thread:$0]  %s5, 2048, %s660, [#allocation10], 128, 128, 8
        $region28: #{tpu_custom_call.1} parent=11 // pred_fallthru
          _
        // Predicated region
        $region29: #{tpu_custom_call.1} parent=11 // pred_check
          %p666 = pneg %p226
        $region30: #{tpu_custom_call.1} parent=11 // pred_check_branch
          %668 = sbr.rel (%p666) target = $region32
        $region31: #{tpu_custom_call.1} parent=11 // pred_region
          %s670 = ssub.s32 2048, 2048
          %671 = vsyncadd [#allocation13], %s670
          %s672 = sshll.u32 [#allocation12], 4
          %s673 = int_to_ptr.vmem [resolvable:$true] %s672
          %678 = dma.hbm_to_vmem [thread:$0]  %s6, 2048, %s673, [#allocation13], 128, 128, 8
        $region32: #{tpu_custom_call.1} parent=11 // pred_fallthru
          _
        // Predicated region
        $region33: #{tpu_custom_call.1} parent=11 // pred_check
          %p679 = pneg %p247
        $region34: #{tpu_custom_call.1} parent=11 // pred_check_branch
          %681 = sbr.rel (%p679) target = $region36
        $region35: #{tpu_custom_call.1} parent=11 // pred_region
          %s683 = ssub.s32 2048, 2048
          %684 = vsyncadd [#allocation13], %s683
          %s685 = sshll.u32 [#allocation14], 4
          %s686 = int_to_ptr.vmem [resolvable:$true] %s685
          %691 = dma.hbm_to_vmem [thread:$0]  %s7, 2048, %s686, [#allocation13], 128, 128, 8
        $region36: #{tpu_custom_call.1} parent=11 // pred_fallthru
          _
        // Predicated region
        $region37: #{tpu_custom_call.1} parent=11 // pred_check
          %p692 = pneg %p268
        $region38: #{tpu_custom_call.1} parent=11 // pred_check_branch
          %694 = sbr.rel (%p692) target = $region40
        $region39: #{tpu_custom_call.1} parent=11 // pred_region
          %s696 = ssub.s32 20480, 20480
          %697 = vsyncadd [#allocation16], %s696
          %s698 = sshll.u32 [#allocation15], 4
          %s699 = int_to_ptr.vmem [resolvable:$true] %s698
          %704 = dma.hbm_to_vmem [thread:$0]  %s8, 20480, %s699, [#allocation16], 256, 256, 16
        $region40: #{tpu_custom_call.1} parent=11 // pred_fallthru
          _
        // Predicated region
        $region41: #{tpu_custom_call.1} parent=11 // pred_check
          %p705 = pneg %p289
        $region42: #{tpu_custom_call.1} parent=11 // pred_check_branch
          %707 = sbr.rel (%p705) target = $region44
        $region43: #{tpu_custom_call.1} parent=11 // pred_region
          %s709 = ssub.s32 64, 64
          %710 = vsyncadd [#allocation16], %s709
          %s712 = sshll.u32 [#allocation17], 4
          %s713 = int_to_ptr.vmem [resolvable:$true] %s712
          %715 = dma.hbm_to_vmem [thread:$0]  %s9, 64, %s713, [#allocation16]
        $region44: #{tpu_custom_call.1} parent=11 // pred_fallthru
          _
        // Predicated region
        $region45: #{tpu_custom_call.1} parent=11 // pred_check
          %p716 = pneg %p310
        $region46: #{tpu_custom_call.1} parent=11 // pred_check_branch
          %718 = sbr.rel (%p716) target = $region48
        $region47: #{tpu_custom_call.1} parent=11 // pred_region
          %s720 = ssub.s32 64, 64
          %721 = vsyncadd [#allocation19], %s720
          %s723 = sshll.u32 [#allocation18], 4
          %s724 = int_to_ptr.vmem [resolvable:$true] %s723
          %726 = dma.hbm_to_vmem [thread:$0]  %s10, 64, %s724, [#allocation19]
        $region48: #{tpu_custom_call.1} parent=11 // pred_fallthru
          _
        // Predicated region
        $region49: #{tpu_custom_call.1} parent=11 // pred_check
          %p727 = pneg %p331
        $region50: #{tpu_custom_call.1} parent=11 // pred_check_branch
          %729 = sbr.rel (%p727) target = $region52
        $region51: #{tpu_custom_call.1} parent=11 // pred_region
          %s731 = ssub.s32 64, 64
          %732 = vsyncadd [#allocation19], %s731
          %s734 = sshll.u32 [#allocation20], 4
          %s735 = int_to_ptr.vmem [resolvable:$true] %s734
          %737 = dma.hbm_to_vmem [thread:$0]  %s11, 64, %s735, [#allocation19]
        $region52: #{tpu_custom_call.1} parent=11 // pred_fallthru
          _
        // Predicated region
        $region53: #{tpu_custom_call.1} parent=11 // pred_check
          %p738 = pneg %p352
        $region54: #{tpu_custom_call.1} parent=11 // pred_check_branch
          %740 = sbr.rel (%p738) target = $region56
        $region55: #{tpu_custom_call.1} parent=11 // pred_region
          %s742 = ssub.s32 8192, 8192
          %743 = vsyncadd [#allocation22], %s742
          %s744 = sshll.u32 [#allocation21], 4
          %s745 = int_to_ptr.vmem [resolvable:$true] %s744
          %750 = dma.hbm_to_vmem [thread:$0]  %s12, 8192, %s745, [#allocation22], 512, 512, 32
        $region56: #{tpu_custom_call.1} parent=11 // pred_fallthru
          _
        // Predicated region
        $region57: #{tpu_custom_call.1} parent=11 // pred_check
          %p751 = pneg %p373
        $region58: #{tpu_custom_call.1} parent=11 // pred_check_branch
          %753 = sbr.rel (%p751) target = $region60
        $region59: #{tpu_custom_call.1} parent=11 // pred_region
          _
        $region60: #{tpu_custom_call.1} parent=11 // pred_fallthru
          _
        // Predicated region
        $region61: #{tpu_custom_call.1} parent=11 // pred_check
          %p754 = pneg %p394
        $region62: #{tpu_custom_call.1} parent=11 // pred_check_branch
          %756 = sbr.rel (%p754) target = $region64
        $region63: #{tpu_custom_call.1} parent=11 // pred_region
          _
        $region64: #{tpu_custom_call.1} parent=11 // pred_fallthru
          _
        // Predicated region
        $region65: #{tpu_custom_call.1} parent=11 // pred_check
          %p757 = pneg %p415
        $region66: #{tpu_custom_call.1} parent=11 // pred_check_branch
          %759 = sbr.rel (%p757) target = $region68
        $region67: #{tpu_custom_call.1} parent=11 // pred_region
          _
        $region68: #{tpu_custom_call.1} parent=11 // pred_fallthru
          _
      $region12: #{tpu_custom_call.1} parent=5 // pred_fallthru
        _
      %p760 = scmp.lt.s32.totalorder %s50, 2
      // Predicated region
      $region69: #{tpu_custom_call.1} parent=5 // pred_check
        %p761 = pneg %p760
      $region70: #{tpu_custom_call.1} parent=5 // pred_check_branch
        %763 = sbr.rel (%p761) target = $region72
      $region71: #{tpu_custom_call.1} parent=5 // pred_region
        // Predicated region
        $region73: #{tpu_custom_call.1} parent=71 // pred_check
          %p764 = pneg %p82
        $region74: #{tpu_custom_call.1} parent=71 // pred_check_branch
          %766 = sbr.rel (%p764) target = $region76
        $region75: #{tpu_custom_call.1} parent=71 // pred_region
          %p767 = scmp.lt.s32.totalorder %s57, 1
          %s768 = scalar_select %p767, %s57, 1
          %s769 = scalar_lea.vmem %s0, %s768
        $region76: #{tpu_custom_call.1} parent=71 // pred_fallthru
          _
        // Predicated region
        $region77: #{tpu_custom_call.1} parent=71 // pred_check
          %p770 = pneg %p110
        $region78: #{tpu_custom_call.1} parent=71 // pred_check_branch
          %772 = sbr.rel (%p770) target = $region80
        $region79: #{tpu_custom_call.1} parent=71 // pred_region
          %s773 = sand.u32 %s100, 1
          %s774 = scalar_lea.sflag [#allocation4], %s773
          %s775 = sand.u32 %s100, 1
          %s776 = smul.addr %s775, 8
          %s777 = scalar_lea.vmem [#allocation3], %s776
          %s779 = ssub.s32 128, 128
          %780 = vsyncadd %s774, %s779
          %s781 = smul.addr %s57, 2
          %s782 = sadd.s32 %s58, %s781
          %s783 = smul.addr %s782, 64
          %s784 = scalar_lea.hbm %s1, %s783
          %s785 = sshll.u32 %s777, 4
          %s786 = int_to_ptr.vmem [resolvable:$true] %s785
          %791 = dma.hbm_to_vmem [thread:$0]  %s784, 128, %s786, %s774, 64, 64, 4
        $region80: #{tpu_custom_call.1} parent=71 // pred_fallthru
          _
      $region72: #{tpu_custom_call.1} parent=5 // pred_fallthru
        _
      %p792 = scmp.le.s32.totalorder 1, %s50
      %p793 = scmp.lt.s32.totalorder %s50, 3
      %p794 = pnand %p792, %p793
      %p795 = pneg %p794
      // Predicated region
      $region81: #{tpu_custom_call.1} parent=5 // pred_check
        _
      $region82: #{tpu_custom_call.1} parent=5 // pred_check_branch
        %797 = sbr.rel (%p794) target = $region84
      $region83: #{tpu_custom_call.1} parent=5 // pred_region
        %s798 = ssub.s32 %s50, 1
        %s799 = sand.u32 %s103, 1
        %s800 = scalar_lea.sflag [#allocation4], %s799
        %s801 = sand.u32 %s103, 1
        %s802 = smul.addr %s801, 8
        %s803 = scalar_lea.vmem [#allocation3], %s802
        // Predicated region
        $region85: #{tpu_custom_call.1} parent=83 // pred_check
          %p804 = pneg %p116
        $region86: #{tpu_custom_call.1} parent=83 // pred_check_branch
          %806 = sbr.rel (%p804) target = $region88
        $region87: #{tpu_custom_call.1} parent=83 // pred_region
          %807 = dma.done %s800, 128
        $region88: #{tpu_custom_call.1} parent=83 // pred_fallthru
          _
        // Predicated region
        $region89: #{tpu_custom_call.1} parent=83 // pred_check
          %p808 = pneg %p142
        $region90: #{tpu_custom_call.1} parent=83 // pred_check_branch
          %810 = sbr.rel (%p808) target = $region92
        $region91: #{tpu_custom_call.1} parent=83 // pred_region
          %811 = dma.done [#allocation7], 4096
        $region92: #{tpu_custom_call.1} parent=83 // pred_fallthru
          _
        // Predicated region
        $region93: #{tpu_custom_call.1} parent=83 // pred_check
          %p812 = pneg %p163
        $region94: #{tpu_custom_call.1} parent=83 // pred_check_branch
          %814 = sbr.rel (%p812) target = $region96
        $region95: #{tpu_custom_call.1} parent=83 // pred_region
          %815 = dma.done [#allocation7], 64
        $region96: #{tpu_custom_call.1} parent=83 // pred_fallthru
          _
        // Predicated region
        $region97: #{tpu_custom_call.1} parent=83 // pred_check
          %p816 = pneg %p184
        $region98: #{tpu_custom_call.1} parent=83 // pred_check_branch
          %818 = sbr.rel (%p816) target = $region100
        $region99: #{tpu_custom_call.1} parent=83 // pred_region
          %819 = dma.done [#allocation10], 2048
        $region100: #{tpu_custom_call.1} parent=83 // pred_fallthru
          _
        // Predicated region
        $region101: #{tpu_custom_call.1} parent=83 // pred_check
          %p820 = pneg %p205
        $region102: #{tpu_custom_call.1} parent=83 // pred_check_branch
          %822 = sbr.rel (%p820) target = $region104
        $region103: #{tpu_custom_call.1} parent=83 // pred_region
          %823 = dma.done [#allocation10], 2048
        $region104: #{tpu_custom_call.1} parent=83 // pred_fallthru
          _
        // Predicated region
        $region105: #{tpu_custom_call.1} parent=83 // pred_check
          %p824 = pneg %p226
        $region106: #{tpu_custom_call.1} parent=83 // pred_check_branch
          %826 = sbr.rel (%p824) target = $region108
        $region107: #{tpu_custom_call.1} parent=83 // pred_region
          %827 = dma.done [#allocation13], 2048
        $region108: #{tpu_custom_call.1} parent=83 // pred_fallthru
          _
        // Predicated region
        $region109: #{tpu_custom_call.1} parent=83 // pred_check
          %p828 = pneg %p247
        $region110: #{tpu_custom_call.1} parent=83 // pred_check_branch
          %830 = sbr.rel (%p828) target = $region112
        $region111: #{tpu_custom_call.1} parent=83 // pred_region
          %831 = dma.done [#allocation13], 2048
        $region112: #{tpu_custom_call.1} parent=83 // pred_fallthru
          _
        // Predicated region
        $region113: #{tpu_custom_call.1} parent=83 // pred_check
          %p832 = pneg %p268
        $region114: #{tpu_custom_call.1} parent=83 // pred_check_branch
          %834 = sbr.rel (%p832) target = $region116
        $region115: #{tpu_custom_call.1} parent=83 // pred_region
          %835 = dma.done [#allocation16], 20480
        $region116: #{tpu_custom_call.1} parent=83 // pred_fallthru
          _
        // Predicated region
        $region117: #{tpu_custom_call.1} parent=83 // pred_check
          %p836 = pneg %p289
        $region118: #{tpu_custom_call.1} parent=83 // pred_check_branch
          %838 = sbr.rel (%p836) target = $region120
        $region119: #{tpu_custom_call.1} parent=83 // pred_region
          %839 = dma.done [#allocation16], 64
        $region120: #{tpu_custom_call.1} parent=83 // pred_fallthru
          _
        // Predicated region
        $region121: #{tpu_custom_call.1} parent=83 // pred_check
          %p840 = pneg %p310
        $region122: #{tpu_custom_call.1} parent=83 // pred_check_branch
          %842 = sbr.rel (%p840) target = $region124
        $region123: #{tpu_custom_call.1} parent=83 // pred_region
          %843 = dma.done [#allocation19], 64
        $region124: #{tpu_custom_call.1} parent=83 // pred_fallthru
          _
        // Predicated region
        $region125: #{tpu_custom_call.1} parent=83 // pred_check
          %p844 = pneg %p331
        $region126: #{tpu_custom_call.1} parent=83 // pred_check_branch
          %846 = sbr.rel (%p844) target = $region128
        $region127: #{tpu_custom_call.1} parent=83 // pred_region
          %847 = dma.done [#allocation19], 64
        $region128: #{tpu_custom_call.1} parent=83 // pred_fallthru
          _
        // Predicated region
        $region129: #{tpu_custom_call.1} parent=83 // pred_check
          %p848 = pneg %p352
        $region130: #{tpu_custom_call.1} parent=83 // pred_check_branch
          %850 = sbr.rel (%p848) target = $region132
        $region131: #{tpu_custom_call.1} parent=83 // pred_region
          %851 = dma.done [#allocation22], 8192
        $region132: #{tpu_custom_call.1} parent=83 // pred_fallthru
          _
        %p852 = scmp.lt.s32.totalorder %s59, 1
        %s853 = scalar_select %p852, %s59, 1
        %s854 = scalar_lea.vmem %s0, %s853
        %p855 = pneg %p88
        %p856 = pneg %p85
        %s857 = sand.u32 %s103, 1
        %s858 = scalar_lea.sflag [#allocation4], %s857
        %s859 = sand.u32 %s103, 1
        %s860 = smul.addr %s859, 8
        %s861 = scalar_lea.vmem [#allocation3], %s860
        %p862 = pneg %p116
        %p863 = pneg %p113
        %p864 = pneg %p142
        %p865 = pneg %p139
        %p866 = pneg %p163
        %p867 = pneg %p160
        %p868 = pneg %p184
        %p869 = pneg %p181
        %p870 = pneg %p205
        %p871 = pneg %p202
        %p872 = pneg %p226
        %p873 = pneg %p223
        %p874 = pneg %p247
        %p875 = pneg %p244
        %p876 = pneg %p268
        %p877 = pneg %p265
        %p878 = pneg %p289
        %p879 = pneg %p286
        %p880 = pneg %p310
        %p881 = pneg %p307
        %p882 = pneg %p331
        %p883 = pneg %p328
        %p884 = pneg %p352
        %p885 = pneg %p349
        %p886 = pneg %p373
        %p887 = pneg %p370
        %p888 = pneg %p394
        %p889 = pneg %p391
        %p890 = pneg %p415
        %p891 = pneg %p412
        %p892 = pneg %p441
        %p893 = pneg %p438
        %s894 = sand.u32 %s428, 1
        %s895 = scalar_lea.sflag [#allocation5], %s894
        %s896 = sand.u32 %s428, 1
        %s897 = scalar_lea.vmem [#allocation23], %s896
        %p898 = pneg %p467
        %p899 = pneg %p464
        %s900 = sand.u32 %s55, 1
        %s901 = scalar_lea.sflag [#allocation25], %s900
        %s902 = sand.u32 %s454, 1
        %s903 = smul.addr %s902, 16
        %s904 = scalar_lea.vmem [#allocation24], %s903
        %p905 = pneg %p493
        %p906 = pneg %p490
        %s907 = sand.u32 %s55, 1
        %s908 = scalar_lea.sflag [#allocation25], %s907
        %s909 = sand.u32 %s480, 1
        %s910 = smul.addr %s909, 16
        %s911 = scalar_lea.vmem [#allocation26], %s910
        %p912 = pneg %p519
        %p913 = pneg %p516
        %s914 = sand.u32 %s55, 1
        %s915 = scalar_lea.sflag [#allocation28], %s914
        %s916 = sand.u32 %s506, 1
        %s917 = scalar_lea.vmem [#allocation27], %s916
        %p918 = pneg %p545
        %p919 = pneg %p542
        %s920 = sand.u32 %s55, 1
        %s921 = scalar_lea.sflag [#allocation28], %s920
        %s922 = sand.u32 %s532, 1
        %s923 = scalar_lea.vmem [#allocation29], %s922
        %p924 = pneg %p571
        %p925 = pneg %p568
        %s926 = sand.u32 %s55, 1
        %s927 = scalar_lea.sflag [#allocation31], %s926
        %s928 = sand.u32 %s558, 1
        %s929 = smul.addr %s928, 64
        %s930 = scalar_lea.vmem [#allocation30], %s929
        %p931 = pneg %p597
        %p932 = pneg %p594
        %s933 = sand.u32 %s55, 1
        %s934 = scalar_lea.sflag [#allocation31], %s933
        %s935 = sand.u32 %s584, 1
        %s936 = smul.addr %s935, 128
        %s937 = scalar_lea.vmem [#allocation32], %s936
        %p938 = scmp.lt.s32.totalorder %s59, 1
        %s939 = scalar_select %p938, %s59, 1
        %s940 = scalar_lea.vmem %s0, %s939
        %s941 = smul.u32 16, %s60
        %v943 = vld [vmem:[%s803] sm:$0xf]
        %v944 = vld [vmem:[%s803 + $0x4] sm:$0xf]
        %v945 = vld [vmem:[#allocation6] sm:$0xff]
        %v946 = vld [vmem:[#allocation6 + $0x8] sm:$0xff]
        %v947 = vld [vmem:[#allocation6 + $0x10] sm:$0xff]
        %v948 = vld [vmem:[#allocation6 + $0x18] sm:$0xff]
        %v949 = vld [vmem:[#allocation6 + $0x20] sm:$0xff]
        %v950 = vld [vmem:[#allocation6 + $0x28] sm:$0xff]
        %v951 = vld [vmem:[#allocation6 + $0x30] sm:$0xff]
        %v952 = vld [vmem:[#allocation6 + $0x38] sm:$0xff]
        %v953 = vld [vmem:[#allocation6 + $0x40] sm:$0xff]
        %v954 = vld [vmem:[#allocation6 + $0x48] sm:$0xff]
        %v955 = vld [vmem:[#allocation6 + $0x50] sm:$0xff]
        %v956 = vld [vmem:[#allocation6 + $0x58] sm:$0xff]
        %v957 = vld [vmem:[#allocation6 + $0x60] sm:$0xff]
        %v958 = vld [vmem:[#allocation6 + $0x68] sm:$0xff]
        %v959 = vld [vmem:[#allocation6 + $0x70] sm:$0xff]
        %v960 = vld [vmem:[#allocation6 + $0x78] sm:$0xff]
        %v961 = vld [vmem:[#allocation6 + $0x80] sm:$0xff]
        %v962 = vld [vmem:[#allocation6 + $0x88] sm:$0xff]
        %v963 = vld [vmem:[#allocation6 + $0x90] sm:$0xff]
        %v964 = vld [vmem:[#allocation6 + $0x98] sm:$0xff]
        %v965 = vld [vmem:[#allocation6 + $0xa0] sm:$0xff]
        %v966 = vld [vmem:[#allocation6 + $0xa8] sm:$0xff]
        %v967 = vld [vmem:[#allocation6 + $0xb0] sm:$0xff]
        %v968 = vld [vmem:[#allocation6 + $0xb8] sm:$0xff]
        %v969 = vld [vmem:[#allocation6 + $0xc0] sm:$0xff]
        %v970 = vld [vmem:[#allocation6 + $0xc8] sm:$0xff]
        %v971 = vld [vmem:[#allocation6 + $0xd0] sm:$0xff]
        %v972 = vld [vmem:[#allocation6 + $0xd8] sm:$0xff]
        %v973 = vld [vmem:[#allocation6 + $0xe0] sm:$0xff]
        %v974 = vld [vmem:[#allocation6 + $0xe8] sm:$0xff]
        %v975 = vld [vmem:[#allocation6 + $0xf0] sm:$0xff]
        %v976 = vld [vmem:[#allocation6 + $0xf8] sm:$0xff]
        %v979 = vunpack.c.l.b16 %v943
        %v980 = vunpack.c.l.b16 %v944
        %v981 = vpack.c.b16 %v980, %v979
        %v1015 = vunpack.c.l.b16 %v945
        %v1016 = vunpack.c.h.b16 %v945
        %v1017 = vunpack.c.l.b16 %v946
        %v1018 = vunpack.c.h.b16 %v946
        %v1019 = vunpack.c.l.b16 %v947
        %v1020 = vunpack.c.h.b16 %v947
        %v1021 = vunpack.c.l.b16 %v948
        %v1022 = vunpack.c.h.b16 %v948
        %v1023 = vunpack.c.l.b16 %v949
        %v1024 = vunpack.c.h.b16 %v949
        %v1025 = vunpack.c.l.b16 %v950
        %v1026 = vunpack.c.h.b16 %v950
        %v1027 = vunpack.c.l.b16 %v951
        %v1028 = vunpack.c.h.b16 %v951
        %v1029 = vunpack.c.l.b16 %v952
        %v1030 = vunpack.c.h.b16 %v952
        %v1031 = vunpack.c.l.b16 %v953
        %v1032 = vunpack.c.h.b16 %v953
        %v1033 = vunpack.c.l.b16 %v954
        %v1034 = vunpack.c.h.b16 %v954
        %v1035 = vunpack.c.l.b16 %v955
        %v1036 = vunpack.c.h.b16 %v955
        %v1037 = vunpack.c.l.b16 %v956
        %v1038 = vunpack.c.h.b16 %v956
        %v1039 = vunpack.c.l.b16 %v957
        %v1040 = vunpack.c.h.b16 %v957
        %v1041 = vunpack.c.l.b16 %v958
        %v1042 = vunpack.c.h.b16 %v958
        %v1043 = vunpack.c.l.b16 %v959
        %v1044 = vunpack.c.h.b16 %v959
        %v1045 = vunpack.c.l.b16 %v960
        %v1046 = vunpack.c.h.b16 %v960
        %v1047 = vunpack.c.l.b16 %v961
        %v1048 = vunpack.c.h.b16 %v961
        %v1049 = vunpack.c.l.b16 %v962
        %v1050 = vunpack.c.h.b16 %v962
        %v1051 = vunpack.c.l.b16 %v963
        %v1052 = vunpack.c.h.b16 %v963
        %v1053 = vunpack.c.l.b16 %v964
        %v1054 = vunpack.c.h.b16 %v964
        %v1055 = vunpack.c.l.b16 %v965
        %v1056 = vunpack.c.h.b16 %v965
        %v1057 = vunpack.c.l.b16 %v966
        %v1058 = vunpack.c.h.b16 %v966
        %v1059 = vunpack.c.l.b16 %v967
        %v1060 = vunpack.c.h.b16 %v967
        %v1061 = vunpack.c.l.b16 %v968
        %v1062 = vunpack.c.h.b16 %v968
        %v1063 = vunpack.c.l.b16 %v969
        %v1064 = vunpack.c.h.b16 %v969
        %v1065 = vunpack.c.l.b16 %v970
        %v1066 = vunpack.c.h.b16 %v970
        %v1067 = vunpack.c.l.b16 %v971
        %v1068 = vunpack.c.h.b16 %v971
        %v1069 = vunpack.c.l.b16 %v972
        %v1070 = vunpack.c.h.b16 %v972
        %v1071 = vunpack.c.l.b16 %v973
        %v1072 = vunpack.c.h.b16 %v973
        %v1073 = vunpack.c.l.b16 %v974
        %v1074 = vunpack.c.h.b16 %v974
        %v1075 = vunpack.c.l.b16 %v975
        %v1076 = vunpack.c.h.b16 %v975
        %v1077 = vunpack.c.l.b16 %v976
        %v1078 = vunpack.c.h.b16 %v976
        %v1079 = vpack.c.b16 %v1019, %v1015
        %v1080 = vpack.c.b16 %v1020, %v1016
        %v1081 = vpack.c.b16 %v1021, %v1017
        %v1082 = vpack.c.b16 %v1022, %v1018
        %v1083 = vpack.c.b16 %v1027, %v1023
        %v1084 = vpack.c.b16 %v1028, %v1024
        %v1085 = vpack.c.b16 %v1029, %v1025
        %v1086 = vpack.c.b16 %v1030, %v1026
        %v1087 = vpack.c.b16 %v1035, %v1031
        %v1088 = vpack.c.b16 %v1036, %v1032
        %v1089 = vpack.c.b16 %v1037, %v1033
        %v1090 = vpack.c.b16 %v1038, %v1034
        %v1091 = vpack.c.b16 %v1043, %v1039
        %v1092 = vpack.c.b16 %v1044, %v1040
        %v1093 = vpack.c.b16 %v1045, %v1041
        %v1094 = vpack.c.b16 %v1046, %v1042
        %v1095 = vpack.c.b16 %v1051, %v1047
        %v1096 = vpack.c.b16 %v1052, %v1048
        %v1097 = vpack.c.b16 %v1053, %v1049
        %v1098 = vpack.c.b16 %v1054, %v1050
        %v1099 = vpack.c.b16 %v1059, %v1055
        %v1100 = vpack.c.b16 %v1060, %v1056
        %v1101 = vpack.c.b16 %v1061, %v1057
        %v1102 = vpack.c.b16 %v1062, %v1058
        %v1103 = vpack.c.b16 %v1067, %v1063
        %v1104 = vpack.c.b16 %v1068, %v1064
        %v1105 = vpack.c.b16 %v1069, %v1065
        %v1106 = vpack.c.b16 %v1070, %v1066
        %v1107 = vpack.c.b16 %v1075, %v1071
        %v1108 = vpack.c.b16 %v1076, %v1072
        %v1109 = vpack.c.b16 %v1077, %v1073
        %v1110 = vpack.c.b16 %v1078, %v1074
        %1143 = vmatprep.subr.bf16.mxu0 %v1108
        %1144 = vmatpush1.bf16.msra.mxu0 %v1107
        %1145 = vmatprep.subr.bf16.mxu0 %v1104
        %1146 = vmatpush1.bf16.msra.mxu0 %v1103
        %1147 = vmatprep.subr.bf16.mxu0 %v1100
        %1148 = vmatpush1.bf16.msra.mxu0 %v1099
        %1149 = vmatprep.subr.bf16.mxu0 %v1096
        %1150 = vmatpush1.bf16.msra.mxu0 %v1095
        %1151 = vmatprep.subr.bf16.mxu0 %v1092
        %1152 = vmatpush1.bf16.msra.mxu0 %v1091
        %1153 = vmatprep.subr.bf16.mxu0 %v1088
        %1154 = vmatpush1.bf16.msra.mxu0 %v1087
        %1155 = vmatprep.subr.bf16.mxu0 %v1084
        %1156 = vmatpush1.bf16.msra.mxu0 %v1083
        %1157 = vmatprep.subr.bf16.mxu0 %v1080
        %1158 = vmatpush1.bf16.msra.mxu0 %v1079
        %1159 = vmatprep.subr.bf16.mxu0 0
        %1160 = vmatpush2.bf16.msra.mxu0 0
        %1161 = vmatprep.subr.bf16.mxu0 0
        %1162 = vmatpush2.bf16.msra.mxu0 0
        %1163 = vmatprep.subr.bf16.mxu0 0
        %1164 = vmatpush2.bf16.msra.mxu0 0
        %1165 = vmatprep.subr.bf16.mxu0 0
        %1166 = vmatpush2.bf16.msra.mxu0 0
        %1167 = vmatprep.subr.bf16.mxu0 0
        %1168 = vmatpush2.bf16.msra.mxu0 0
        %1169 = vmatprep.subr.bf16.mxu0 0
        %1170 = vmatpush2.bf16.msra.mxu0 0
        %1171 = vmatprep.subr.bf16.mxu0 0
        %1172 = vmatpush2.bf16.msra.mxu0 0
        %1173 = vmatprep.subr.bf16.mxu0 0
        %1174 = vmatpush2.bf16.msra.mxu0 0
        %1175 = vmatprep.mubr.bf16.mxu0 0
        %1176 = vmatmul.mubr.bf16.gmra.mxu0 %v981
        %v1177 = vpop.f32.mrf.mxu0
        %v1178 = vadd.f32 0.0, %v1177
        %v1179 = vpop.f32.mrf.mxu0
        %v1180 = vadd.f32 0.0, %v1179
        %v1181 = vpop.f32.mrf.mxu0
        %v1182 = vadd.f32 0.0, %v1181
        %v1183 = vpop.f32.mrf.mxu0
        %v1184 = vadd.f32 0.0, %v1183
        %1185 = vdwg.mxu0
        %1186 = vmatprep.subr.bf16.mxu0 %v1110
        %1187 = vmatpush1.bf16.msra.mxu0 %v1109
        %1188 = vmatprep.subr.bf16.mxu0 %v1106
        %1189 = vmatpush1.bf16.msra.mxu0 %v1105
        %1190 = vmatprep.subr.bf16.mxu0 %v1102
        %1191 = vmatpush1.bf16.msra.mxu0 %v1101
        %1192 = vmatprep.subr.bf16.mxu0 %v1098
        %1193 = vmatpush1.bf16.msra.mxu0 %v1097
        %1194 = vmatprep.subr.bf16.mxu0 %v1094
        %1195 = vmatpush1.bf16.msra.mxu0 %v1093
        %1196 = vmatprep.subr.bf16.mxu0 %v1090
        %1197 = vmatpush1.bf16.msra.mxu0 %v1089
        %1198 = vmatprep.subr.bf16.mxu0 %v1086
        %1199 = vmatpush1.bf16.msra.mxu0 %v1085
        %1200 = vmatprep.subr.bf16.mxu0 %v1082
        %1201 = vmatpush1.bf16.msra.mxu0 %v1081
        %1202 = vmatprep.subr.bf16.mxu0 0
        %1203 = vmatpush2.bf16.msra.mxu0 0
        %1204 = vmatprep.subr.bf16.mxu0 0
        %1205 = vmatpush2.bf16.msra.mxu0 0
        %1206 = vmatprep.subr.bf16.mxu0 0
        %1207 = vmatpush2.bf16.msra.mxu0 0
        %1208 = vmatprep.subr.bf16.mxu0 0
        %1209 = vmatpush2.bf16.msra.mxu0 0
        %1210 = vmatprep.subr.bf16.mxu0 0
        %1211 = vmatpush2.bf16.msra.mxu0 0
        %1212 = vmatprep.subr.bf16.mxu0 0
        %1213 = vmatpush2.bf16.msra.mxu0 0
        %1214 = vmatprep.subr.bf16.mxu0 0
        %1215 = vmatpush2.bf16.msra.mxu0 0
        %1216 = vmatprep.subr.bf16.mxu0 0
        %1217 = vmatpush2.bf16.msra.mxu0 0
        %1218 = vmatprep.mubr.bf16.mxu0 0
        %1219 = vmatmul.mubr.bf16.gmra.mxu0 %v981
        %v1220 = vpop.f32.mrf.mxu0
        %v1221 = vadd.f32 0.0, %v1220
        %v1222 = vpop.f32.mrf.mxu0
        %v1223 = vadd.f32 0.0, %v1222
        %v1224 = vpop.f32.mrf.mxu0
        %v1225 = vadd.f32 0.0, %v1224
        %v1226 = vpop.f32.mrf.mxu0
        %v1227 = vadd.f32 0.0, %v1226
        %1228 = vdwg.mxu0
        %p1229 = scmp.eq.s32.totalorder %s60, 0
        // Predicated region
        $region133: #{tpu_custom_call.1} parent=83 // pred_check
          %p1230 = pneg %p1229
        $region134: #{tpu_custom_call.1} parent=83 // pred_check_branch
          %1232 = sbr.rel (%p1230) target = $region136
        $region135: #{tpu_custom_call.1} parent=83 // pred_region
          %1233 = vst [vmem:[#allocation2] sm:$0xff] %v1178
          %1234 = vst [vmem:[#allocation2 + $0x8] sm:$0xff] %v1180
          %1235 = vst [vmem:[#allocation2 + $0x10] sm:$0xff] %v1221
          %1236 = vst [vmem:[#allocation2 + $0x18] sm:$0xff] %v1223
          %1237 = vst [vmem:[#allocation2 + $0x20] sm:$0xff] %v1182
          %1238 = vst [vmem:[#allocation2 + $0x28] sm:$0xff] %v1184
          %1239 = vst [vmem:[#allocation2 + $0x30] sm:$0xff] %v1225
          %1240 = vst [vmem:[#allocation2 + $0x38] sm:$0xff] %v1227
        $region136: #{tpu_custom_call.1} parent=83 // pred_fallthru
          _
        %p1241 = scmp.gt.s32.totalorder %s60, 0
        // Predicated region
        $region137: #{tpu_custom_call.1} parent=83 // pred_check
          %p1242 = pneg %p1241
        $region138: #{tpu_custom_call.1} parent=83 // pred_check_branch
          %1244 = sbr.rel (%p1242) target = $region140
        $region139: #{tpu_custom_call.1} parent=83 // pred_region
          %v1245 = vld [vmem:[#allocation2] sm:$0xff]
          %v1246 = vld [vmem:[#allocation2 + $0x8] sm:$0xff]
          %v1247 = vld [vmem:[#allocation2 + $0x10] sm:$0xff]
          %v1248 = vld [vmem:[#allocation2 + $0x18] sm:$0xff]
          %v1249 = vld [vmem:[#allocation2 + $0x20] sm:$0xff]
          %v1250 = vld [vmem:[#allocation2 + $0x28] sm:$0xff]
          %v1251 = vld [vmem:[#allocation2 + $0x30] sm:$0xff]
          %v1252 = vld [vmem:[#allocation2 + $0x38] sm:$0xff]
          %v1253 = vadd.f32 %v1245, %v1178
          %v1254 = vadd.f32 %v1246, %v1180
          %v1255 = vadd.f32 %v1247, %v1221
          %v1256 = vadd.f32 %v1248, %v1223
          %v1257 = vadd.f32 %v1249, %v1182
          %v1258 = vadd.f32 %v1250, %v1184
          %v1259 = vadd.f32 %v1251, %v1225
          %v1260 = vadd.f32 %v1252, %v1227
          %1261 = vst [vmem:[#allocation2] sm:$0xff] %v1253
          %1262 = vst [vmem:[#allocation2 + $0x8] sm:$0xff] %v1254
          %1263 = vst [vmem:[#allocation2 + $0x10] sm:$0xff] %v1255
          %1264 = vst [vmem:[#allocation2 + $0x18] sm:$0xff] %v1256
          %1265 = vst [vmem:[#allocation2 + $0x20] sm:$0xff] %v1257
          %1266 = vst [vmem:[#allocation2 + $0x28] sm:$0xff] %v1258
          %1267 = vst [vmem:[#allocation2 + $0x30] sm:$0xff] %v1259
          %1268 = vst [vmem:[#allocation2 + $0x38] sm:$0xff] %v1260
        $region140: #{tpu_custom_call.1} parent=83 // pred_fallthru
          _
        // Predicated region
        $region141: #{tpu_custom_call.1} parent=83 // pred_check
          %p1269 = pneg %p1229
        $region142: #{tpu_custom_call.1} parent=83 // pred_check_branch
          %1271 = sbr.rel (%p1269) target = $region144
        $region143: #{tpu_custom_call.1} parent=83 // pred_region
          %v1272 = vld [vmem:[#allocation2] sm:$0xff]
          %v1273 = vld [vmem:[#allocation2 + $0x8] sm:$0xff]
          %v1274 = vld [vmem:[#allocation2 + $0x10] sm:$0xff]
          %v1275 = vld [vmem:[#allocation2 + $0x18] sm:$0xff]
          %v1276 = vld [vmem:[#allocation2 + $0x20] sm:$0xff]
          %v1277 = vld [vmem:[#allocation2 + $0x28] sm:$0xff]
          %v1278 = vld [vmem:[#allocation2 + $0x30] sm:$0xff]
          %v1279 = vld [vmem:[#allocation2 + $0x38] sm:$0xff]
          %v1280 = vld [vmem:[#allocation8] sm:$0xf]
          %v1282 = vlaneseq
          %v1283 = vshrl.u32 %v1282, 7
          %v1284 = vsub.s32 0, %v1283
          %v1285 = vrot.slane %v1280, %v1284
          %v1286 = vlaneseq
          %v1287 = vshrl.u32 %v1286, 7
          %v1288 = vsub.s32 1, %v1287
          %v1289 = vrot.slane %v1280, %v1288
          %v1290 = vlaneseq
          %v1291 = vshrl.u32 %v1290, 7
          %v1292 = vsub.s32 2, %v1291
          %v1293 = vrot.slane %v1280, %v1292
          %v1294 = vlaneseq
          %v1295 = vshrl.u32 %v1294, 7
          %v1296 = vsub.s32 3, %v1295
          %v1297 = vrot.slane %v1280, %v1296
          %v1302 = vadd.f32 %v1272, %v1285
          %v1303 = vadd.f32 %v1273, %v1289
          %v1304 = vadd.f32 %v1274, %v1293
          %v1305 = vadd.f32 %v1275, %v1297
          %v1306 = vadd.f32 %v1276, %v1285
          %v1307 = vadd.f32 %v1277, %v1289
          %v1308 = vadd.f32 %v1278, %v1293
          %v1309 = vadd.f32 %v1279, %v1297
          %1310 = vst [vmem:[%s904] sm:$0xff] %v1303
          %1311 = vst [vmem:[%s904 + $0x8] sm:$0xff] %v1307
          %1312 = vst [vmem:[%s911] sm:$0xff] %v1304
          %1313 = vst [vmem:[%s911 + $0x8] sm:$0xff] %v1308
          %v1314 = vld [vmem:[%s940] sm:$0x1]
          %v1315 = vlaneseq
          %v1316 = vshrl.u32 %v1315, 7
          %v1317 = vadd.s32 %v1316, 8
          %v1318 = vlaneseq
          %v1319 = vshrl.u32 %v1318, 7
          %v1320 = vsub.s32 0, %v1319
          %v1321 = vrot.slane %v1314, %v1320
          %vm1322 = vcmp.lt.s32.totalorder %v1316, %v1321
          %vm1323 = vcmp.lt.s32.totalorder %v1317, %v1321
          %vm1324 = vcmp.lt.s32.totalorder %v1316, 8
          %vm1325 = vcmp.lt.s32.totalorder %v1317, 8
          %v1326 = vsel %vm1324, 1, 0
          %v1327 = vsel %vm1325, 1, 0
          %v1328 = vcvt.s32.f32 %v1326
          %v1329 = vcvt.s32.f32 %v1327
          %v1330 = vsel %vm1322, %v1305, -1e+18
          %v1331 = vsel %vm1323, %v1309, -1e+18
          %vm1332 = vcmask 7168
          %v1333 = vsel %vm1332, %v1330, -inf
          %v1334 = vsel %vm1332, %v1331, -inf
          %v1335 = vmax.f32 %v1333, %v1334
          %v1336 = vrot.slane %v1335, 4
          %v1337 = vmax.f32 %v1335, %v1336
          %v1338 = vrot.slane %v1337, 2
          %v1339 = vmax.f32 %v1337, %v1338
          %v1340 = vrot.slane %v1339, 1
          %v1341 = vmax.f32 %v1339, %v1340
          %v1342 = vsub.f32 %v1330, %v1341
          %v1343 = vsub.f32 %v1331, %v1341
          %v1344 = vmul.f32 %v1342, 1.442695
          %v1345 = vpow.pop %v1344
          %v1346 = vmul.f32 %v1343, 1.442695
          %v1347 = vpow.pop %v1346
          %v1348 = vsel %vm1332, %v1345, 0.0
          %v1349 = vsel %vm1332, %v1347, 0.0
          %v1350 = vadd.f32 %v1348, %v1349
          %v1351 = vrot.slane %v1350, 4
          %v1352 = vadd.f32 %v1350, %v1351
          %v1353 = vrot.slane %v1352, 2
          %v1354 = vadd.f32 %v1352, %v1353
          %v1355 = vrot.slane %v1354, 1
          %v1356 = vadd.f32 %v1354, %v1355
          %v1357 = vmax.f32 %v1356, 1e-30
          %v1358 = vrcp.pop %v1357
          %v1359 = vmul.f32 %v1345, %v1358
          %v1360 = vmul.f32 %v1347, %v1358
          %1362 = vset.pattern.permute.xlu0 0
          %1363 = vperm.xlu0 %1362, %v1359
          %v1364 = vpop.permute.xlu0 %1363
          %1367 = vset.pattern.permute.xlu0 0
          %1368 = vperm.xlu0 %1367, %v1360
          %v1369 = vpop.permute.xlu0 %1368
          %v1371 = vmul.f32 %v1302, %v1364
          %v1372 = vmul.f32 %v1306, %v1369
          %v1373 = vadd.f32 %v1371, %v1372
          %v1374 = vrot.slane %v1373, 4
          %v1375 = vadd.f32 %v1373, %v1374
          %v1376 = vrot.slane %v1375, 2
          %v1377 = vadd.f32 %v1375, %v1376
          %v1378 = vrot.slane %v1377, 1
          %v1379 = vadd.f32 %v1377, %v1378
          %1380 = vst [vmem:[%s897] sm:$0x1] %v1379
          %v1381 = vld [vmem:[#allocation9] sm:$0xff]
          %v1382 = vld [vmem:[#allocation9 + $0x8] sm:$0xff]
          %v1383 = vld [vmem:[#allocation9 + $0x10] sm:$0xff]
          %v1384 = vld [vmem:[#allocation9 + $0x18] sm:$0xff]
          %v1385 = vld [vmem:[#allocation9 + $0x20] sm:$0xff]
          %v1386 = vld [vmem:[#allocation9 + $0x28] sm:$0xff]
          %v1387 = vld [vmem:[#allocation9 + $0x30] sm:$0xff]
          %v1388 = vld [vmem:[#allocation9 + $0x38] sm:$0xff]
          %v1389 = vld [vmem:[#allocation9 + $0x40] sm:$0xff]
          %v1390 = vld [vmem:[#allocation9 + $0x48] sm:$0xff]
          %v1391 = vld [vmem:[#allocation9 + $0x50] sm:$0xff]
          %v1392 = vld [vmem:[#allocation9 + $0x58] sm:$0xff]
          %v1393 = vld [vmem:[#allocation9 + $0x60] sm:$0xff]
          %v1394 = vld [vmem:[#allocation9 + $0x68] sm:$0xff]
          %v1395 = vld [vmem:[#allocation9 + $0x70] sm:$0xff]
          %v1396 = vld [vmem:[#allocation9 + $0x78] sm:$0xff]
          %v1397 = vld [vmem:[#allocation11] sm:$0xff]
          %v1398 = vld [vmem:[#allocation11 + $0x8] sm:$0xff]
          %v1399 = vld [vmem:[#allocation11 + $0x10] sm:$0xff]
          %v1400 = vld [vmem:[#allocation11 + $0x18] sm:$0xff]
          %v1401 = vld [vmem:[#allocation11 + $0x20] sm:$0xff]
          %v1402 = vld [vmem:[#allocation11 + $0x28] sm:$0xff]
          %v1403 = vld [vmem:[#allocation11 + $0x30] sm:$0xff]
          %v1404 = vld [vmem:[#allocation11 + $0x38] sm:$0xff]
          %v1405 = vld [vmem:[#allocation11 + $0x40] sm:$0xff]
          %v1406 = vld [vmem:[#allocation11 + $0x48] sm:$0xff]
          %v1407 = vld [vmem:[#allocation11 + $0x50] sm:$0xff]
          %v1408 = vld [vmem:[#allocation11 + $0x58] sm:$0xff]
          %v1409 = vld [vmem:[#allocation11 + $0x60] sm:$0xff]
          %v1410 = vld [vmem:[#allocation11 + $0x68] sm:$0xff]
          %v1411 = vld [vmem:[#allocation11 + $0x70] sm:$0xff]
          %v1412 = vld [vmem:[#allocation11 + $0x78] sm:$0xff]
          %v1413 = vmul.f32 %v1303, %v1328
          %v1414 = vmul.f32 %v1307, %v1329
          %v1415 = vadd.f32 %v1413, %v1414
          %v1416 = vrot.slane %v1415, 4
          %v1417 = vadd.f32 %v1415, %v1416
          %v1418 = vrot.slane %v1417, 2
          %v1419 = vadd.f32 %v1417, %v1418
          %v1420 = vrot.slane %v1419, 1
          %v1421 = vadd.f32 %v1419, %v1420
          %v1422 = vmul.f32 %v1421, 0.125
          %1423 = vmatprep.subr.mxu0 0.0
          %1424 = vmatpush1.msra.mxu0 %v1396
          %1425 = vmatprep.subr.mxu0 0.0
          %1426 = vmatpush1.msra.mxu0 %v1395
          %1427 = vmatprep.subr.mxu0 0.0
          %1428 = vmatpush1.msra.mxu0 %v1394
          %1429 = vmatprep.subr.mxu0 0.0
          %1430 = vmatpush1.msra.mxu0 %v1393
          %1431 = vmatprep.subr.mxu0 0.0
          %1432 = vmatpush1.msra.mxu0 %v1392
          %1433 = vmatprep.subr.mxu0 0.0
          %1434 = vmatpush1.msra.mxu0 %v1391
          %1435 = vmatprep.subr.mxu0 0.0
          %1436 = vmatpush1.msra.mxu0 %v1390
          %1437 = vmatprep.subr.mxu0 0.0
          %1438 = vmatpush1.msra.mxu0 %v1389
          %1439 = vmatprep.subr.mxu0 0.0
          %1440 = vmatpush1.msra.mxu0 %v1388
          %1441 = vmatprep.subr.mxu0 0.0
          %1442 = vmatpush1.msra.mxu0 %v1387
          %1443 = vmatprep.subr.mxu0 0.0
          %1444 = vmatpush1.msra.mxu0 %v1386
          %1445 = vmatprep.subr.mxu0 0.0
          %1446 = vmatpush1.msra.mxu0 %v1385
          %1447 = vmatprep.subr.mxu0 0.0
          %1448 = vmatpush1.msra.mxu0 %v1384
          %1449 = vmatprep.subr.mxu0 0.0
          %1450 = vmatpush1.msra.mxu0 %v1383
          %1451 = vmatprep.subr.mxu0 0.0
          %1452 = vmatpush1.msra.mxu0 %v1382
          %1453 = vmatprep.subr.mxu0 0.0
          %1454 = vmatpush1.msra.mxu0 %v1381
          %1455 = vmatprep.subr.mxu0 0.0
          %1456 = vmatpush2.msra.mxu0 0.0
          %1457 = vmatprep.subr.mxu0 0.0
          %1458 = vmatpush2.msra.mxu0 0.0
          %1459 = vmatprep.subr.mxu0 0.0
          %1460 = vmatpush2.msra.mxu0 0.0
          %1461 = vmatprep.subr.mxu0 0.0
          %1462 = vmatpush2.msra.mxu0 0.0
          %1463 = vmatprep.subr.mxu0 0.0
          %1464 = vmatpush2.msra.mxu0 0.0
          %1465 = vmatprep.subr.mxu0 0.0
          %1466 = vmatpush2.msra.mxu0 0.0
          %1467 = vmatprep.subr.mxu0 0.0
          %1468 = vmatpush2.msra.mxu0 0.0
          %1469 = vmatprep.subr.mxu0 0.0
          %1470 = vmatpush2.msra.mxu0 0.0
          %1471 = vmatprep.subr.mxu0 0.0
          %1472 = vmatpush2.msra.mxu0 0.0
          %1473 = vmatprep.subr.mxu0 0.0
          %1474 = vmatpush2.msra.mxu0 0.0
          %1475 = vmatprep.subr.mxu0 0.0
          %1476 = vmatpush2.msra.mxu0 0.0
          %1477 = vmatprep.subr.mxu0 0.0
          %1478 = vmatpush2.msra.mxu0 0.0
          %1479 = vmatprep.subr.mxu0 0.0
          %1480 = vmatpush2.msra.mxu0 0.0
          %1481 = vmatprep.subr.mxu0 0.0
          %1482 = vmatpush2.msra.mxu0 0.0
          %1483 = vmatprep.subr.mxu0 0.0
          %1484 = vmatpush2.msra.mxu0 0.0
          %1485 = vmatprep.subr.mxu0 0.0
          %1486 = vmatpush2.msra.mxu0 0.0
          %1487 = vmatprep.mubr.f32.mxu0 0.0
          %1488 = vmatmul.mubr.f32.gmra.mxu0 %v1422
          %v1489 = vpop.f32.mrf.mxu0
          %v1490 = vadd.f32 0.0, %v1489
          %v1491 = vpop.f32.mrf.mxu0
          %1492 = vdwg.mxu0
          %v1493 = vmax.f32 %v1490, 0.0
          %1494 = vmatprep.subr.mxu0 0.0
          %1495 = vmatpush1.msra.mxu0 %v1412
          %1496 = vmatprep.subr.mxu0 0.0
          %1497 = vmatpush1.msra.mxu0 %v1411
          %1498 = vmatprep.subr.mxu0 0.0
          %1499 = vmatpush1.msra.mxu0 %v1410
          %1500 = vmatprep.subr.mxu0 0.0
          %1501 = vmatpush1.msra.mxu0 %v1409
          %1502 = vmatprep.subr.mxu0 0.0
          %1503 = vmatpush1.msra.mxu0 %v1408
          %1504 = vmatprep.subr.mxu0 0.0
          %1505 = vmatpush1.msra.mxu0 %v1407
          %1506 = vmatprep.subr.mxu0 0.0
          %1507 = vmatpush1.msra.mxu0 %v1406
          %1508 = vmatprep.subr.mxu0 0.0
          %1509 = vmatpush1.msra.mxu0 %v1405
          %1510 = vmatprep.subr.mxu0 0.0
          %1511 = vmatpush1.msra.mxu0 %v1404
          %1512 = vmatprep.subr.mxu0 0.0
          %1513 = vmatpush1.msra.mxu0 %v1403
          %1514 = vmatprep.subr.mxu0 0.0
          %1515 = vmatpush1.msra.mxu0 %v1402
          %1516 = vmatprep.subr.mxu0 0.0
          %1517 = vmatpush1.msra.mxu0 %v1401
          %1518 = vmatprep.subr.mxu0 0.0
          %1519 = vmatpush1.msra.mxu0 %v1400
          %1520 = vmatprep.subr.mxu0 0.0
          %1521 = vmatpush1.msra.mxu0 %v1399
          %1522 = vmatprep.subr.mxu0 0.0
          %1523 = vmatpush1.msra.mxu0 %v1398
          %1524 = vmatprep.subr.mxu0 0.0
          %1525 = vmatpush1.msra.mxu0 %v1397
          %1526 = vmatprep.subr.mxu0 0.0
          %1527 = vmatpush2.msra.mxu0 0.0
          %1528 = vmatprep.subr.mxu0 0.0
          %1529 = vmatpush2.msra.mxu0 0.0
          %1530 = vmatprep.subr.mxu0 0.0
          %1531 = vmatpush2.msra.mxu0 0.0
          %1532 = vmatprep.subr.mxu0 0.0
          %1533 = vmatpush2.msra.mxu0 0.0
          %1534 = vmatprep.subr.mxu0 0.0
          %1535 = vmatpush2.msra.mxu0 0.0
          %1536 = vmatprep.subr.mxu0 0.0
          %1537 = vmatpush2.msra.mxu0 0.0
          %1538 = vmatprep.subr.mxu0 0.0
          %1539 = vmatpush2.msra.mxu0 0.0
          %1540 = vmatprep.subr.mxu0 0.0
          %1541 = vmatpush2.msra.mxu0 0.0
          %1542 = vmatprep.subr.mxu0 0.0
          %1543 = vmatpush2.msra.mxu0 0.0
          %1544 = vmatprep.subr.mxu0 0.0
          %1545 = vmatpush2.msra.mxu0 0.0
          %1546 = vmatprep.subr.mxu0 0.0
          %1547 = vmatpush2.msra.mxu0 0.0
          %1548 = vmatprep.subr.mxu0 0.0
          %1549 = vmatpush2.msra.mxu0 0.0
          %1550 = vmatprep.subr.mxu0 0.0
          %1551 = vmatpush2.msra.mxu0 0.0
          %1552 = vmatprep.subr.mxu0 0.0
          %1553 = vmatpush2.msra.mxu0 0.0
          %1554 = vmatprep.subr.mxu0 0.0
          %1555 = vmatpush2.msra.mxu0 0.0
          %1556 = vmatprep.subr.mxu0 0.0
          %1557 = vmatpush2.msra.mxu0 0.0
          %1558 = vmatprep.mubr.f32.mxu0 0.0
          %1559 = vmatmul.mubr.f32.gmra.mxu0 %v1493
          %v1560 = vpop.f32.mrf.mxu0
          %v1561 = vadd.f32 0.0, %v1560
          %v1562 = vpop.f32.mrf.mxu0
          %1563 = vdwg.mxu0
          %v1564 = vxor.u32 %v1561, 2147483648
          %v1565 = vmul.f32 %v1564, 1.442695
          %v1566 = vpow.pop %v1565
          %v1567 = vadd.f32 %v1566, 1.0
          %v1568 = vrcp.pop %v1567
          %v1569 = vmul.f32 1.0, %v1568
          %1570 = vst [vmem:[%s917] sm:$0x1] %v1569
          %v1571 = vld [vmem:[#allocation12] sm:$0xff]
          %v1572 = vld [vmem:[#allocation12 + $0x8] sm:$0xff]
          %v1573 = vld [vmem:[#allocation12 + $0x10] sm:$0xff]
          %v1574 = vld [vmem:[#allocation12 + $0x18] sm:$0xff]
          %v1575 = vld [vmem:[#allocation12 + $0x20] sm:$0xff]
          %v1576 = vld [vmem:[#allocation12 + $0x28] sm:$0xff]
          %v1577 = vld [vmem:[#allocation12 + $0x30] sm:$0xff]
          %v1578 = vld [vmem:[#allocation12 + $0x38] sm:$0xff]
          %v1579 = vld [vmem:[#allocation12 + $0x40] sm:$0xff]
          %v1580 = vld [vmem:[#allocation12 + $0x48] sm:$0xff]
          %v1581 = vld [vmem:[#allocation12 + $0x50] sm:$0xff]
          %v1582 = vld [vmem:[#allocation12 + $0x58] sm:$0xff]
          %v1583 = vld [vmem:[#allocation12 + $0x60] sm:$0xff]
          %v1584 = vld [vmem:[#allocation12 + $0x68] sm:$0xff]
          %v1585 = vld [vmem:[#allocation12 + $0x70] sm:$0xff]
          %v1586 = vld [vmem:[#allocation12 + $0x78] sm:$0xff]
          %v1587 = vld [vmem:[#allocation14] sm:$0xff]
          %v1588 = vld [vmem:[#allocation14 + $0x8] sm:$0xff]
          %v1589 = vld [vmem:[#allocation14 + $0x10] sm:$0xff]
          %v1590 = vld [vmem:[#allocation14 + $0x18] sm:$0xff]
          %v1591 = vld [vmem:[#allocation14 + $0x20] sm:$0xff]
          %v1592 = vld [vmem:[#allocation14 + $0x28] sm:$0xff]
          %v1593 = vld [vmem:[#allocation14 + $0x30] sm:$0xff]
          %v1594 = vld [vmem:[#allocation14 + $0x38] sm:$0xff]
          %v1595 = vld [vmem:[#allocation14 + $0x40] sm:$0xff]
          %v1596 = vld [vmem:[#allocation14 + $0x48] sm:$0xff]
          %v1597 = vld [vmem:[#allocation14 + $0x50] sm:$0xff]
          %v1598 = vld [vmem:[#allocation14 + $0x58] sm:$0xff]
          %v1599 = vld [vmem:[#allocation14 + $0x60] sm:$0xff]
          %v1600 = vld [vmem:[#allocation14 + $0x68] sm:$0xff]
          %v1601 = vld [vmem:[#allocation14 + $0x70] sm:$0xff]
          %v1602 = vld [vmem:[#allocation14 + $0x78] sm:$0xff]
          %v1603 = vmul.f32 %v1304, %v1328
          %v1604 = vmul.f32 %v1308, %v1329
          %v1605 = vadd.f32 %v1603, %v1604
          %v1606 = vrot.slane %v1605, 4
          %v1607 = vadd.f32 %v1605, %v1606
          %v1608 = vrot.slane %v1607, 2
          %v1609 = vadd.f32 %v1607, %v1608
          %v1610 = vrot.slane %v1609, 1
          %v1611 = vadd.f32 %v1609, %v1610
          %v1612 = vmul.f32 %v1611, 0.125
          %1613 = vmatprep.subr.mxu0 0.0
          %1614 = vmatpush1.msra.mxu0 %v1586
          %1615 = vmatprep.subr.mxu0 0.0
          %1616 = vmatpush1.msra.mxu0 %v1585
          %1617 = vmatprep.subr.mxu0 0.0
          %1618 = vmatpush1.msra.mxu0 %v1584
          %1619 = vmatprep.subr.mxu0 0.0
          %1620 = vmatpush1.msra.mxu0 %v1583
          %1621 = vmatprep.subr.mxu0 0.0
          %1622 = vmatpush1.msra.mxu0 %v1582
          %1623 = vmatprep.subr.mxu0 0.0
          %1624 = vmatpush1.msra.mxu0 %v1581
          %1625 = vmatprep.subr.mxu0 0.0
          %1626 = vmatpush1.msra.mxu0 %v1580
          %1627 = vmatprep.subr.mxu0 0.0
          %1628 = vmatpush1.msra.mxu0 %v1579
          %1629 = vmatprep.subr.mxu0 0.0
          %1630 = vmatpush1.msra.mxu0 %v1578
          %1631 = vmatprep.subr.mxu0 0.0
          %1632 = vmatpush1.msra.mxu0 %v1577
          %1633 = vmatprep.subr.mxu0 0.0
          %1634 = vmatpush1.msra.mxu0 %v1576
          %1635 = vmatprep.subr.mxu0 0.0
          %1636 = vmatpush1.msra.mxu0 %v1575
          %1637 = vmatprep.subr.mxu0 0.0
          %1638 = vmatpush1.msra.mxu0 %v1574
          %1639 = vmatprep.subr.mxu0 0.0
          %1640 = vmatpush1.msra.mxu0 %v1573
          %1641 = vmatprep.subr.mxu0 0.0
          %1642 = vmatpush1.msra.mxu0 %v1572
          %1643 = vmatprep.subr.mxu0 0.0
          %1644 = vmatpush1.msra.mxu0 %v1571
          %1645 = vmatprep.subr.mxu0 0.0
          %1646 = vmatpush2.msra.mxu0 0.0
          %1647 = vmatprep.subr.mxu0 0.0
          %1648 = vmatpush2.msra.mxu0 0.0
          %1649 = vmatprep.subr.mxu0 0.0
          %1650 = vmatpush2.msra.mxu0 0.0
          %1651 = vmatprep.subr.mxu0 0.0
          %1652 = vmatpush2.msra.mxu0 0.0
          %1653 = vmatprep.subr.mxu0 0.0
          %1654 = vmatpush2.msra.mxu0 0.0
          %1655 = vmatprep.subr.mxu0 0.0
          %1656 = vmatpush2.msra.mxu0 0.0
          %1657 = vmatprep.subr.mxu0 0.0
          %1658 = vmatpush2.msra.mxu0 0.0
          %1659 = vmatprep.subr.mxu0 0.0
          %1660 = vmatpush2.msra.mxu0 0.0
          %1661 = vmatprep.subr.mxu0 0.0
          %1662 = vmatpush2.msra.mxu0 0.0
          %1663 = vmatprep.subr.mxu0 0.0
          %1664 = vmatpush2.msra.mxu0 0.0
          %1665 = vmatprep.subr.mxu0 0.0
          %1666 = vmatpush2.msra.mxu0 0.0
          %1667 = vmatprep.subr.mxu0 0.0
          %1668 = vmatpush2.msra.mxu0 0.0
          %1669 = vmatprep.subr.mxu0 0.0
          %1670 = vmatpush2.msra.mxu0 0.0
          %1671 = vmatprep.subr.mxu0 0.0
          %1672 = vmatpush2.msra.mxu0 0.0
          %1673 = vmatprep.subr.mxu0 0.0
          %1674 = vmatpush2.msra.mxu0 0.0
          %1675 = vmatprep.subr.mxu0 0.0
          %1676 = vmatpush2.msra.mxu0 0.0
          %1677 = vmatprep.mubr.f32.mxu0 0.0
          %1678 = vmatmul.mubr.f32.gmra.mxu0 %v1612
          %v1679 = vpop.f32.mrf.mxu0
          %v1680 = vadd.f32 0.0, %v1679
          %v1681 = vpop.f32.mrf.mxu0
          %1682 = vdwg.mxu0
          %v1683 = vmax.f32 %v1680, 0.0
          %1684 = vmatprep.subr.mxu0 0.0
          %1685 = vmatpush1.msra.mxu0 %v1602
          %1686 = vmatprep.subr.mxu0 0.0
          %1687 = vmatpush1.msra.mxu0 %v1601
          %1688 = vmatprep.subr.mxu0 0.0
          %1689 = vmatpush1.msra.mxu0 %v1600
          %1690 = vmatprep.subr.mxu0 0.0
          %1691 = vmatpush1.msra.mxu0 %v1599
          %1692 = vmatprep.subr.mxu0 0.0
          %1693 = vmatpush1.msra.mxu0 %v1598
          %1694 = vmatprep.subr.mxu0 0.0
          %1695 = vmatpush1.msra.mxu0 %v1597
          %1696 = vmatprep.subr.mxu0 0.0
          %1697 = vmatpush1.msra.mxu0 %v1596
          %1698 = vmatprep.subr.mxu0 0.0
          %1699 = vmatpush1.msra.mxu0 %v1595
          %1700 = vmatprep.subr.mxu0 0.0
          %1701 = vmatpush1.msra.mxu0 %v1594
          %1702 = vmatprep.subr.mxu0 0.0
          %1703 = vmatpush1.msra.mxu0 %v1593
          %1704 = vmatprep.subr.mxu0 0.0
          %1705 = vmatpush1.msra.mxu0 %v1592
          %1706 = vmatprep.subr.mxu0 0.0
          %1707 = vmatpush1.msra.mxu0 %v1591
          %1708 = vmatprep.subr.mxu0 0.0
          %1709 = vmatpush1.msra.mxu0 %v1590
          %1710 = vmatprep.subr.mxu0 0.0
          %1711 = vmatpush1.msra.mxu0 %v1589
          %1712 = vmatprep.subr.mxu0 0.0
          %1713 = vmatpush1.msra.mxu0 %v1588
          %1714 = vmatprep.subr.mxu0 0.0
          %1715 = vmatpush1.msra.mxu0 %v1587
          %1716 = vmatprep.subr.mxu0 0.0
          %1717 = vmatpush2.msra.mxu0 0.0
          %1718 = vmatprep.subr.mxu0 0.0
          %1719 = vmatpush2.msra.mxu0 0.0
          %1720 = vmatprep.subr.mxu0 0.0
          %1721 = vmatpush2.msra.mxu0 0.0
          %1722 = vmatprep.subr.mxu0 0.0
          %1723 = vmatpush2.msra.mxu0 0.0
          %1724 = vmatprep.subr.mxu0 0.0
          %1725 = vmatpush2.msra.mxu0 0.0
          %1726 = vmatprep.subr.mxu0 0.0
          %1727 = vmatpush2.msra.mxu0 0.0
          %1728 = vmatprep.subr.mxu0 0.0
          %1729 = vmatpush2.msra.mxu0 0.0
          %1730 = vmatprep.subr.mxu0 0.0
          %1731 = vmatpush2.msra.mxu0 0.0
          %1732 = vmatprep.subr.mxu0 0.0
          %1733 = vmatpush2.msra.mxu0 0.0
          %1734 = vmatprep.subr.mxu0 0.0
          %1735 = vmatpush2.msra.mxu0 0.0
          %1736 = vmatprep.subr.mxu0 0.0
          %1737 = vmatpush2.msra.mxu0 0.0
          %1738 = vmatprep.subr.mxu0 0.0
          %1739 = vmatpush2.msra.mxu0 0.0
          %1740 = vmatprep.subr.mxu0 0.0
          %1741 = vmatpush2.msra.mxu0 0.0
          %1742 = vmatprep.subr.mxu0 0.0
          %1743 = vmatpush2.msra.mxu0 0.0
          %1744 = vmatprep.subr.mxu0 0.0
          %1745 = vmatpush2.msra.mxu0 0.0
          %1746 = vmatprep.subr.mxu0 0.0
          %1747 = vmatpush2.msra.mxu0 0.0
          %1748 = vmatprep.mubr.f32.mxu0 0.0
          %1749 = vmatmul.mubr.f32.gmra.mxu0 %v1683
          %v1750 = vpop.f32.mrf.mxu0
          %v1751 = vadd.f32 0.0, %v1750
          %v1752 = vpop.f32.mrf.mxu0
          %1753 = vdwg.mxu0
          %v1754 = vxor.u32 %v1751, 2147483648
          %v1755 = vmul.f32 %v1754, 1.442695
          %v1756 = vpow.pop %v1755
          %v1757 = vadd.f32 %v1756, 1.0
          %v1758 = vrcp.pop %v1757
          %v1759 = vmul.f32 1.0, %v1758
          %1760 = vst [vmem:[%s923] sm:$0x1] %v1759
          %vm1761 = vcmp.eq.s32.totalorder %v1326, 1
          %vm1762 = vcmp.eq.s32.totalorder %v1327, 1
          %v1763 = vsel %vm1761, %v1303, 0.0
          %v1764 = vsel %vm1762, %v1307, 0.0
          %v1765 = vpack.c.bf16 %v1764, %v1763
          %v1766 = vld [vmem:[#allocation15] sm:$0xff]
          %v1767 = vld [vmem:[#allocation15 + $0x8] sm:$0xff]
          %v1768 = vld [vmem:[#allocation15 + $0x10] sm:$0xff]
          %v1769 = vld [vmem:[#allocation15 + $0x18] sm:$0xff]
          %v1770 = vld [vmem:[#allocation15 + $0x20] sm:$0xff]
          %v1771 = vld [vmem:[#allocation15 + $0x28] sm:$0xff]
          %v1772 = vld [vmem:[#allocation15 + $0x30] sm:$0xff]
          %v1773 = vld [vmem:[#allocation15 + $0x38] sm:$0xff]
          %v1774 = vld [vmem:[#allocation15 + $0x40] sm:$0xff]
          %v1775 = vld [vmem:[#allocation15 + $0x48] sm:$0xff]
          %v1776 = vld [vmem:[#allocation15 + $0x50] sm:$0xff]
          %v1777 = vld [vmem:[#allocation15 + $0x58] sm:$0xff]
          %v1778 = vld [vmem:[#allocation15 + $0x60] sm:$0xff]
          %v1779 = vld [vmem:[#allocation15 + $0x68] sm:$0xff]
          %v1780 = vld [vmem:[#allocation15 + $0x70] sm:$0xff]
          %v1781 = vld [vmem:[#allocation15 + $0x78] sm:$0xff]
          %v1782 = vld [vmem:[#allocation15 + $0x80] sm:$0xff]
          %v1783 = vld [vmem:[#allocation15 + $0x88] sm:$0xff]
          %v1784 = vld [vmem:[#allocation15 + $0x90] sm:$0xff]
          %v1785 = vld [vmem:[#allocation15 + $0x98] sm:$0xff]
          %v1786 = vld [vmem:[#allocation15 + $0xa0] sm:$0xff]
          %v1787 = vld [vmem:[#allocation15 + $0xa8] sm:$0xff]
          %v1788 = vld [vmem:[#allocation15 + $0xb0] sm:$0xff]
          %v1789 = vld [vmem:[#allocation15 + $0xb8] sm:$0xff]
          %v1790 = vld [vmem:[#allocation15 + $0xc0] sm:$0xff]
          %v1791 = vld [vmem:[#allocation15 + $0xc8] sm:$0xff]
          %v1792 = vld [vmem:[#allocation15 + $0xd0] sm:$0xff]
          %v1793 = vld [vmem:[#allocation15 + $0xd8] sm:$0xff]
          %v1794 = vld [vmem:[#allocation15 + $0xe0] sm:$0xff]
          %v1795 = vld [vmem:[#allocation15 + $0xe8] sm:$0xff]
          %v1796 = vld [vmem:[#allocation15 + $0xf0] sm:$0xff]
          %v1797 = vld [vmem:[#allocation15 + $0xf8] sm:$0xff]
          %v1830 = vunpack.c.l.b16 %v1766
          %v1831 = vunpack.c.h.b16 %v1766
          %v1832 = vunpack.c.l.b16 %v1767
          %v1833 = vunpack.c.h.b16 %v1767
          %v1834 = vunpack.c.l.b16 %v1768
          %v1835 = vunpack.c.h.b16 %v1768
          %v1836 = vunpack.c.l.b16 %v1769
          %v1837 = vunpack.c.h.b16 %v1769
          %v1838 = vunpack.c.l.b16 %v1770
          %v1839 = vunpack.c.h.b16 %v1770
          %v1840 = vunpack.c.l.b16 %v1771
          %v1841 = vunpack.c.h.b16 %v1771
          %v1842 = vunpack.c.l.b16 %v1772
          %v1843 = vunpack.c.h.b16 %v1772
          %v1844 = vunpack.c.l.b16 %v1773
          %v1845 = vunpack.c.h.b16 %v1773
          %v1846 = vunpack.c.l.b16 %v1774
          %v1847 = vunpack.c.h.b16 %v1774
          %v1848 = vunpack.c.l.b16 %v1775
          %v1849 = vunpack.c.h.b16 %v1775
          %v1850 = vunpack.c.l.b16 %v1776
          %v1851 = vunpack.c.h.b16 %v1776
          %v1852 = vunpack.c.l.b16 %v1777
          %v1853 = vunpack.c.h.b16 %v1777
          %v1854 = vunpack.c.l.b16 %v1778
          %v1855 = vunpack.c.h.b16 %v1778
          %v1856 = vunpack.c.l.b16 %v1779
          %v1857 = vunpack.c.h.b16 %v1779
          %v1858 = vunpack.c.l.b16 %v1780
          %v1859 = vunpack.c.h.b16 %v1780
          %v1860 = vunpack.c.l.b16 %v1781
          %v1861 = vunpack.c.h.b16 %v1781
          %v1862 = vunpack.c.l.b16 %v1782
          %v1863 = vunpack.c.h.b16 %v1782
          %v1864 = vunpack.c.l.b16 %v1783
          %v1865 = vunpack.c.h.b16 %v1783
          %v1866 = vunpack.c.l.b16 %v1784
          %v1867 = vunpack.c.h.b16 %v1784
          %v1868 = vunpack.c.l.b16 %v1785
          %v1869 = vunpack.c.h.b16 %v1785
          %v1870 = vunpack.c.l.b16 %v1786
          %v1871 = vunpack.c.h.b16 %v1786
          %v1872 = vunpack.c.l.b16 %v1787
          %v1873 = vunpack.c.h.b16 %v1787
          %v1874 = vunpack.c.l.b16 %v1788
          %v1875 = vunpack.c.h.b16 %v1788
          %v1876 = vunpack.c.l.b16 %v1789
          %v1877 = vunpack.c.h.b16 %v1789
          %v1878 = vunpack.c.l.b16 %v1790
          %v1879 = vunpack.c.h.b16 %v1790
          %v1880 = vunpack.c.l.b16 %v1791
          %v1881 = vunpack.c.h.b16 %v1791
          %v1882 = vunpack.c.l.b16 %v1792
          %v1883 = vunpack.c.h.b16 %v1792
          %v1884 = vunpack.c.l.b16 %v1793
          %v1885 = vunpack.c.h.b16 %v1793
          %v1886 = vunpack.c.l.b16 %v1794
          %v1887 = vunpack.c.h.b16 %v1794
          %v1888 = vunpack.c.l.b16 %v1795
          %v1889 = vunpack.c.h.b16 %v1795
          %v1890 = vunpack.c.l.b16 %v1796
          %v1891 = vunpack.c.h.b16 %v1796
          %v1892 = vunpack.c.l.b16 %v1797
          %v1893 = vunpack.c.h.b16 %v1797
          %v1894 = vpack.c.b16 %v1834, %v1830
          %v1895 = vpack.c.b16 %v1835, %v1831
          %v1896 = vpack.c.b16 %v1836, %v1832
          %v1897 = vpack.c.b16 %v1837, %v1833
          %v1898 = vpack.c.b16 %v1842, %v1838
          %v1899 = vpack.c.b16 %v1843, %v1839
          %v1900 = vpack.c.b16 %v1844, %v1840
          %v1901 = vpack.c.b16 %v1845, %v1841
          %v1902 = vpack.c.b16 %v1850, %v1846
          %v1903 = vpack.c.b16 %v1851, %v1847
          %v1904 = vpack.c.b16 %v1852, %v1848
          %v1905 = vpack.c.b16 %v1853, %v1849
          %v1906 = vpack.c.b16 %v1858, %v1854
          %v1907 = vpack.c.b16 %v1859, %v1855
          %v1908 = vpack.c.b16 %v1860, %v1856
          %v1909 = vpack.c.b16 %v1861, %v1857
          %v1910 = vpack.c.b16 %v1866, %v1862
          %v1911 = vpack.c.b16 %v1867, %v1863
          %v1912 = vpack.c.b16 %v1868, %v1864
          %v1913 = vpack.c.b16 %v1869, %v1865
          %v1914 = vpack.c.b16 %v1874, %v1870
          %v1915 = vpack.c.b16 %v1875, %v1871
          %v1916 = vpack.c.b16 %v1876, %v1872
          %v1917 = vpack.c.b16 %v1877, %v1873
          %v1918 = vpack.c.b16 %v1882, %v1878
          %v1919 = vpack.c.b16 %v1883, %v1879
          %v1920 = vpack.c.b16 %v1884, %v1880
          %v1921 = vpack.c.b16 %v1885, %v1881
          %v1922 = vpack.c.b16 %v1890, %v1886
          %v1923 = vpack.c.b16 %v1891, %v1887
          %v1924 = vpack.c.b16 %v1892, %v1888
          %v1925 = vpack.c.b16 %v1893, %v1889
          %1958 = vmatprep.subr.bf16.mxu0 %v1923
          %1959 = vmatpush1.bf16.msra.mxu0 %v1922
          %1960 = vmatprep.subr.bf16.mxu0 %v1919
          %1961 = vmatpush1.bf16.msra.mxu0 %v1918
          %1962 = vmatprep.subr.bf16.mxu0 %v1915
          %1963 = vmatpush1.bf16.msra.mxu0 %v1914
          %1964 = vmatprep.subr.bf16.mxu0 %v1911
          %1965 = vmatpush1.bf16.msra.mxu0 %v1910
          %1966 = vmatprep.subr.bf16.mxu0 %v1907
          %1967 = vmatpush1.bf16.msra.mxu0 %v1906
          %1968 = vmatprep.subr.bf16.mxu0 %v1903
          %1969 = vmatpush1.bf16.msra.mxu0 %v1902
          %1970 = vmatprep.subr.bf16.mxu0 %v1899
          %1971 = vmatpush1.bf16.msra.mxu0 %v1898
          %1972 = vmatprep.subr.bf16.mxu0 %v1895
          %1973 = vmatpush1.bf16.msra.mxu0 %v1894
          %1974 = vmatprep.subr.bf16.mxu0 0
          %1975 = vmatpush2.bf16.msra.mxu0 0
          %1976 = vmatprep.subr.bf16.mxu0 0
          %1977 = vmatpush2.bf16.msra.mxu0 0
          %1978 = vmatprep.subr.bf16.mxu0 0
          %1979 = vmatpush2.bf16.msra.mxu0 0
          %1980 = vmatprep.subr.bf16.mxu0 0
          %1981 = vmatpush2.bf16.msra.mxu0 0
          %1982 = vmatprep.subr.bf16.mxu0 0
          %1983 = vmatpush2.bf16.msra.mxu0 0
          %1984 = vmatprep.subr.bf16.mxu0 0
          %1985 = vmatpush2.bf16.msra.mxu0 0
          %1986 = vmatprep.subr.bf16.mxu0 0
          %1987 = vmatpush2.bf16.msra.mxu0 0
          %1988 = vmatprep.subr.bf16.mxu0 0
          %1989 = vmatpush2.bf16.msra.mxu0 0
          %1990 = vmatprep.mubr.bf16.mxu0 0
          %1991 = vmatmul.mubr.bf16.gmra.mxu0 %v1765
          %v1992 = vpop.f32.mrf.mxu0
          %v1993 = vadd.f32 0.0, %v1992
          %v1994 = vpop.f32.mrf.mxu0
          %v1995 = vadd.f32 0.0, %v1994
          %v1996 = vpop.f32.mrf.mxu0
          %v1997 = vadd.f32 0.0, %v1996
          %v1998 = vpop.f32.mrf.mxu0
          %v1999 = vadd.f32 0.0, %v1998
          %2000 = vdwg.mxu0
          %2001 = vmatprep.subr.bf16.mxu0 %v1925
          %2002 = vmatpush1.bf16.msra.mxu0 %v1924
          %2003 = vmatprep.subr.bf16.mxu0 %v1921
          %2004 = vmatpush1.bf16.msra.mxu0 %v1920
          %2005 = vmatprep.subr.bf16.mxu0 %v1917
          %2006 = vmatpush1.bf16.msra.mxu0 %v1916
          %2007 = vmatprep.subr.bf16.mxu0 %v1913
          %2008 = vmatpush1.bf16.msra.mxu0 %v1912
          %2009 = vmatprep.subr.bf16.mxu0 %v1909
          %2010 = vmatpush1.bf16.msra.mxu0 %v1908
          %2011 = vmatprep.subr.bf16.mxu0 %v1905
          %2012 = vmatpush1.bf16.msra.mxu0 %v1904
          %2013 = vmatprep.subr.bf16.mxu0 %v1901
          %2014 = vmatpush1.bf16.msra.mxu0 %v1900
          %2015 = vmatprep.subr.bf16.mxu0 %v1897
          %2016 = vmatpush1.bf16.msra.mxu0 %v1896
          %2017 = vmatprep.subr.bf16.mxu0 0
          %2018 = vmatpush2.bf16.msra.mxu0 0
          %2019 = vmatprep.subr.bf16.mxu0 0
          %2020 = vmatpush2.bf16.msra.mxu0 0
          %2021 = vmatprep.subr.bf16.mxu0 0
          %2022 = vmatpush2.bf16.msra.mxu0 0
          %2023 = vmatprep.subr.bf16.mxu0 0
          %2024 = vmatpush2.bf16.msra.mxu0 0
          %2025 = vmatprep.subr.bf16.mxu0 0
          %2026 = vmatpush2.bf16.msra.mxu0 0
          %2027 = vmatprep.subr.bf16.mxu0 0
          %2028 = vmatpush2.bf16.msra.mxu0 0
          %2029 = vmatprep.subr.bf16.mxu0 0
          %2030 = vmatpush2.bf16.msra.mxu0 0
          %2031 = vmatprep.subr.bf16.mxu0 0
          %2032 = vmatpush2.bf16.msra.mxu0 0
          %2033 = vmatprep.mubr.bf16.mxu0 0
          %2034 = vmatmul.mubr.bf16.gmra.mxu0 %v1765
          %v2035 = vpop.f32.mrf.mxu0
          %v2036 = vadd.f32 0.0, %v2035
          %v2037 = vpop.f32.mrf.mxu0
          %v2038 = vadd.f32 0.0, %v2037
          %v2039 = vpop.f32.mrf.mxu0
          %v2040 = vadd.f32 0.0, %v2039
          %v2041 = vpop.f32.mrf.mxu0
          %v2042 = vadd.f32 0.0, %v2041
          %2043 = vdwg.mxu0
          %v2044 = vrot.slane %v1993, 6
          %v2045 = vrot.slane %v1995, 6
          %v2046 = vrot.slane %v2036, 6
          %v2047 = vrot.slane %v2038, 6
          %v2048 = vrot.slane %v1997, 6
          %v2049 = vrot.slane %v1999, 6
          %v2050 = vrot.slane %v2040, 6
          %v2051 = vrot.slane %v2042, 6
          %vm2052 = vcmp.lt.s32.totalorder %v1316, 2
          %v2053 = vsel %vm2052, %v2044, %v2048
          %v2054 = vsel %vm2052, %v2045, %v2049
          %v2055 = vsel %vm2052, %v2046, %v2050
          %v2056 = vsel %vm2052, %v2047, %v2051
          %v2057 = vsel %vm2052, %v2048, %v2044
          %v2058 = vsel %vm2052, %v2049, %v2045
          %v2059 = vsel %vm2052, %v2050, %v2046
          %v2060 = vsel %vm2052, %v2051, %v2047
          %s2061 = scalar_lea.vmem [#allocation15], 256
          %v2062 = vld [vmem:[%s2061] sm:$0xff]
          %v2063 = vld [vmem:[%s2061 + $0x8] sm:$0xff]
          %v2064 = vld [vmem:[%s2061 + $0x10] sm:$0xff]
          %v2065 = vld [vmem:[%s2061 + $0x18] sm:$0xff]
          %v2066 = vld [vmem:[%s2061 + $0x20] sm:$0xff]
          %v2067 = vld [vmem:[%s2061 + $0x28] sm:$0xff]
          %v2068 = vld [vmem:[%s2061 + $0x30] sm:$0xff]
          %v2069 = vld [vmem:[%s2061 + $0x38] sm:$0xff]
          %v2070 = vld [vmem:[%s2061 + $0x40] sm:$0xff]
          %v2071 = vld [vmem:[%s2061 + $0x48] sm:$0xff]
          %v2072 = vld [vmem:[%s2061 + $0x50] sm:$0xff]
          %v2073 = vld [vmem:[%s2061 + $0x58] sm:$0xff]
          %v2074 = vld [vmem:[%s2061 + $0x60] sm:$0xff]
          %v2075 = vld [vmem:[%s2061 + $0x68] sm:$0xff]
          %v2076 = vld [vmem:[%s2061 + $0x70] sm:$0xff]
          %v2077 = vld [vmem:[%s2061 + $0x78] sm:$0xff]
          %v2078 = vld [vmem:[%s2061 + $0x80] sm:$0xff]
          %v2079 = vld [vmem:[%s2061 + $0x88] sm:$0xff]
          %v2080 = vld [vmem:[%s2061 + $0x90] sm:$0xff]
          %v2081 = vld [vmem:[%s2061 + $0x98] sm:$0xff]
          %v2082 = vld [vmem:[%s2061 + $0xa0] sm:$0xff]
          %v2083 = vld [vmem:[%s2061 + $0xa8] sm:$0xff]
          %v2084 = vld [vmem:[%s2061 + $0xb0] sm:$0xff]
          %v2085 = vld [vmem:[%s2061 + $0xb8] sm:$0xff]
          %v2086 = vld [vmem:[%s2061 + $0xc0] sm:$0xff]
          %v2087 = vld [vmem:[%s2061 + $0xc8] sm:$0xff]
          %v2088 = vld [vmem:[%s2061 + $0xd0] sm:$0xff]
          %v2089 = vld [vmem:[%s2061 + $0xd8] sm:$0xff]
          %v2090 = vld [vmem:[%s2061 + $0xe0] sm:$0xff]
          %v2091 = vld [vmem:[%s2061 + $0xe8] sm:$0xff]
          %v2092 = vld [vmem:[%s2061 + $0xf0] sm:$0xff]
          %v2093 = vld [vmem:[%s2061 + $0xf8] sm:$0xff]
          %v2126 = vunpack.c.l.b16 %v2062
          %v2127 = vunpack.c.h.b16 %v2062
          %v2128 = vunpack.c.l.b16 %v2063
          %v2129 = vunpack.c.h.b16 %v2063
          %v2130 = vunpack.c.l.b16 %v2064
          %v2131 = vunpack.c.h.b16 %v2064
          %v2132 = vunpack.c.l.b16 %v2065
          %v2133 = vunpack.c.h.b16 %v2065
          %v2134 = vunpack.c.l.b16 %v2066
          %v2135 = vunpack.c.h.b16 %v2066
          %v2136 = vunpack.c.l.b16 %v2067
          %v2137 = vunpack.c.h.b16 %v2067
          %v2138 = vunpack.c.l.b16 %v2068
          %v2139 = vunpack.c.h.b16 %v2068
          %v2140 = vunpack.c.l.b16 %v2069
          %v2141 = vunpack.c.h.b16 %v2069
          %v2142 = vunpack.c.l.b16 %v2070
          %v2143 = vunpack.c.h.b16 %v2070
          %v2144 = vunpack.c.l.b16 %v2071
          %v2145 = vunpack.c.h.b16 %v2071
          %v2146 = vunpack.c.l.b16 %v2072
          %v2147 = vunpack.c.h.b16 %v2072
          %v2148 = vunpack.c.l.b16 %v2073
          %v2149 = vunpack.c.h.b16 %v2073
          %v2150 = vunpack.c.l.b16 %v2074
          %v2151 = vunpack.c.h.b16 %v2074
          %v2152 = vunpack.c.l.b16 %v2075
          %v2153 = vunpack.c.h.b16 %v2075
          %v2154 = vunpack.c.l.b16 %v2076
          %v2155 = vunpack.c.h.b16 %v2076
          %v2156 = vunpack.c.l.b16 %v2077
          %v2157 = vunpack.c.h.b16 %v2077
          %v2158 = vunpack.c.l.b16 %v2078
          %v2159 = vunpack.c.h.b16 %v2078
          %v2160 = vunpack.c.l.b16 %v2079
          %v2161 = vunpack.c.h.b16 %v2079
          %v2162 = vunpack.c.l.b16 %v2080
          %v2163 = vunpack.c.h.b16 %v2080
          %v2164 = vunpack.c.l.b16 %v2081
          %v2165 = vunpack.c.h.b16 %v2081
          %v2166 = vunpack.c.l.b16 %v2082
          %v2167 = vunpack.c.h.b16 %v2082
          %v2168 = vunpack.c.l.b16 %v2083
          %v2169 = vunpack.c.h.b16 %v2083
          %v2170 = vunpack.c.l.b16 %v2084
          %v2171 = vunpack.c.h.b16 %v2084
          %v2172 = vunpack.c.l.b16 %v2085
          %v2173 = vunpack.c.h.b16 %v2085
          %v2174 = vunpack.c.l.b16 %v2086
          %v2175 = vunpack.c.h.b16 %v2086
          %v2176 = vunpack.c.l.b16 %v2087
          %v2177 = vunpack.c.h.b16 %v2087
          %v2178 = vunpack.c.l.b16 %v2088
          %v2179 = vunpack.c.h.b16 %v2088
          %v2180 = vunpack.c.l.b16 %v2089
          %v2181 = vunpack.c.h.b16 %v2089
          %v2182 = vunpack.c.l.b16 %v2090
          %v2183 = vunpack.c.h.b16 %v2090
          %v2184 = vunpack.c.l.b16 %v2091
          %v2185 = vunpack.c.h.b16 %v2091
          %v2186 = vunpack.c.l.b16 %v2092
          %v2187 = vunpack.c.h.b16 %v2092
          %v2188 = vunpack.c.l.b16 %v2093
          %v2189 = vunpack.c.h.b16 %v2093
          %v2190 = vpack.c.b16 %v2130, %v2126
          %v2191 = vpack.c.b16 %v2131, %v2127
          %v2192 = vpack.c.b16 %v2132, %v2128
          %v2193 = vpack.c.b16 %v2133, %v2129
          %v2194 = vpack.c.b16 %v2138, %v2134
          %v2195 = vpack.c.b16 %v2139, %v2135
          %v2196 = vpack.c.b16 %v2140, %v2136
          %v2197 = vpack.c.b16 %v2141, %v2137
          %v2198 = vpack.c.b16 %v2146, %v2142
          %v2199 = vpack.c.b16 %v2147, %v2143
          %v2200 = vpack.c.b16 %v2148, %v2144
          %v2201 = vpack.c.b16 %v2149, %v2145
          %v2202 = vpack.c.b16 %v2154, %v2150
          %v2203 = vpack.c.b16 %v2155, %v2151
          %v2204 = vpack.c.b16 %v2156, %v2152
          %v2205 = vpack.c.b16 %v2157, %v2153
          %v2206 = vpack.c.b16 %v2162, %v2158
          %v2207 = vpack.c.b16 %v2163, %v2159
          %v2208 = vpack.c.b16 %v2164, %v2160
          %v2209 = vpack.c.b16 %v2165, %v2161
          %v2210 = vpack.c.b16 %v2170, %v2166
          %v2211 = vpack.c.b16 %v2171, %v2167
          %v2212 = vpack.c.b16 %v2172, %v2168
          %v2213 = vpack.c.b16 %v2173, %v2169
          %v2214 = vpack.c.b16 %v2178, %v2174
          %v2215 = vpack.c.b16 %v2179, %v2175
          %v2216 = vpack.c.b16 %v2180, %v2176
          %v2217 = vpack.c.b16 %v2181, %v2177
          %v2218 = vpack.c.b16 %v2186, %v2182
          %v2219 = vpack.c.b16 %v2187, %v2183
          %v2220 = vpack.c.b16 %v2188, %v2184
          %v2221 = vpack.c.b16 %v2189, %v2185
          %2254 = vmatprep.subr.bf16.mxu0 %v2219
          %2255 = vmatpush1.bf16.msra.mxu0 %v2218
          %2256 = vmatprep.subr.bf16.mxu0 %v2215
          %2257 = vmatpush1.bf16.msra.mxu0 %v2214
          %2258 = vmatprep.subr.bf16.mxu0 %v2211
          %2259 = vmatpush1.bf16.msra.mxu0 %v2210
          %2260 = vmatprep.subr.bf16.mxu0 %v2207
          %2261 = vmatpush1.bf16.msra.mxu0 %v2206
          %2262 = vmatprep.subr.bf16.mxu0 %v2203
          %2263 = vmatpush1.bf16.msra.mxu0 %v2202
          %2264 = vmatprep.subr.bf16.mxu0 %v2199
          %2265 = vmatpush1.bf16.msra.mxu0 %v2198
          %2266 = vmatprep.subr.bf16.mxu0 %v2195
          %2267 = vmatpush1.bf16.msra.mxu0 %v2194
          %2268 = vmatprep.subr.bf16.mxu0 %v2191
          %2269 = vmatpush1.bf16.msra.mxu0 %v2190
          %2270 = vmatprep.subr.bf16.mxu0 0
          %2271 = vmatpush2.bf16.msra.mxu0 0
          %2272 = vmatprep.subr.bf16.mxu0 0
          %2273 = vmatpush2.bf16.msra.mxu0 0
          %2274 = vmatprep.subr.bf16.mxu0 0
          %2275 = vmatpush2.bf16.msra.mxu0 0
          %2276 = vmatprep.subr.bf16.mxu0 0
          %2277 = vmatpush2.bf16.msra.mxu0 0
          %2278 = vmatprep.subr.bf16.mxu0 0
          %2279 = vmatpush2.bf16.msra.mxu0 0
          %2280 = vmatprep.subr.bf16.mxu0 0
          %2281 = vmatpush2.bf16.msra.mxu0 0
          %2282 = vmatprep.subr.bf16.mxu0 0
          %2283 = vmatpush2.bf16.msra.mxu0 0
          %2284 = vmatprep.subr.bf16.mxu0 0
          %2285 = vmatpush2.bf16.msra.mxu0 0
          %2286 = vmatprep.mubr.bf16.mxu0 0
          %2287 = vmatmul.mubr.bf16.gmra.mxu0 %v1765
          %v2288 = vpop.f32.mrf.mxu0
          %v2289 = vadd.f32 0.0, %v2288
          %v2290 = vpop.f32.mrf.mxu0
          %v2291 = vadd.f32 0.0, %v2290
          %v2292 = vpop.f32.mrf.mxu0
          %v2293 = vadd.f32 0.0, %v2292
          %v2294 = vpop.f32.mrf.mxu0
          %v2295 = vadd.f32 0.0, %v2294
          %2296 = vdwg.mxu0
          %2297 = vmatprep.subr.bf16.mxu0 %v2221
          %2298 = vmatpush1.bf16.msra.mxu0 %v2220
          %2299 = vmatprep.subr.bf16.mxu0 %v2217
          %2300 = vmatpush1.bf16.msra.mxu0 %v2216
          %2301 = vmatprep.subr.bf16.mxu0 %v2213
          %2302 = vmatpush1.bf16.msra.mxu0 %v2212
          %2303 = vmatprep.subr.bf16.mxu0 %v2209
          %2304 = vmatpush1.bf16.msra.mxu0 %v2208
          %2305 = vmatprep.subr.bf16.mxu0 %v2205
          %2306 = vmatpush1.bf16.msra.mxu0 %v2204
          %2307 = vmatprep.subr.bf16.mxu0 %v2201
          %2308 = vmatpush1.bf16.msra.mxu0 %v2200
          %2309 = vmatprep.subr.bf16.mxu0 %v2197
          %2310 = vmatpush1.bf16.msra.mxu0 %v2196
          %2311 = vmatprep.subr.bf16.mxu0 %v2193
          %2312 = vmatpush1.bf16.msra.mxu0 %v2192
          %2313 = vmatprep.subr.bf16.mxu0 0
          %2314 = vmatpush2.bf16.msra.mxu0 0
          %2315 = vmatprep.subr.bf16.mxu0 0
          %2316 = vmatpush2.bf16.msra.mxu0 0
          %2317 = vmatprep.subr.bf16.mxu0 0
          %2318 = vmatpush2.bf16.msra.mxu0 0
          %2319 = vmatprep.subr.bf16.mxu0 0
          %2320 = vmatpush2.bf16.msra.mxu0 0
          %2321 = vmatprep.subr.bf16.mxu0 0
          %2322 = vmatpush2.bf16.msra.mxu0 0
          %2323 = vmatprep.subr.bf16.mxu0 0
          %2324 = vmatpush2.bf16.msra.mxu0 0
          %2325 = vmatprep.subr.bf16.mxu0 0
          %2326 = vmatpush2.bf16.msra.mxu0 0
          %2327 = vmatprep.subr.bf16.mxu0 0
          %2328 = vmatpush2.bf16.msra.mxu0 0
          %2329 = vmatprep.mubr.bf16.mxu0 0
          %2330 = vmatmul.mubr.bf16.gmra.mxu0 %v1765
          %v2331 = vpop.f32.mrf.mxu0
          %v2332 = vadd.f32 0.0, %v2331
          %v2333 = vpop.f32.mrf.mxu0
          %v2334 = vadd.f32 0.0, %v2333
          %v2335 = vpop.f32.mrf.mxu0
          %v2336 = vadd.f32 0.0, %v2335
          %v2337 = vpop.f32.mrf.mxu0
          %v2338 = vadd.f32 0.0, %v2337
          %2339 = vdwg.mxu0
          %v2340 = vrot.slane %v2289, 7
          %v2341 = vrot.slane %v2291, 7
          %v2342 = vrot.slane %v2332, 7
          %v2343 = vrot.slane %v2334, 7
          %v2344 = vrot.slane %v2293, 7
          %v2345 = vrot.slane %v2295, 7
          %v2346 = vrot.slane %v2336, 7
          %v2347 = vrot.slane %v2338, 7
          %vm2348 = vcmp.lt.s32.totalorder %v1316, 1
          %v2349 = vsel %vm2348, %v2340, %v2344
          %v2350 = vsel %vm2348, %v2341, %v2345
          %v2351 = vsel %vm2348, %v2342, %v2346
          %v2352 = vsel %vm2348, %v2343, %v2347
          %v2353 = vsel %vm2348, %v2344, %v2340
          %v2354 = vsel %vm2348, %v2345, %v2341
          %v2355 = vsel %vm2348, %v2346, %v2342
          %v2356 = vsel %vm2348, %v2347, %v2343
          %v2357 = vadd.f32 %v2057, %v2353
          %v2358 = vadd.f32 %v2058, %v2354
          %v2359 = vadd.f32 %v2059, %v2355
          %v2360 = vadd.f32 %v2060, %v2356
          %v2361 = vadd.f32 %v2053, %v2349
          %v2362 = vadd.f32 %v2054, %v2350
          %v2363 = vadd.f32 %v2055, %v2351
          %v2364 = vadd.f32 %v2056, %v2352
          %s2365 = scalar_lea.vmem [#allocation15], 512
          %v2366 = vld [vmem:[%s2365] sm:$0xff]
          %v2367 = vld [vmem:[%s2365 + $0x8] sm:$0xff]
          %v2368 = vld [vmem:[%s2365 + $0x10] sm:$0xff]
          %v2369 = vld [vmem:[%s2365 + $0x18] sm:$0xff]
          %v2370 = vld [vmem:[%s2365 + $0x20] sm:$0xff]
          %v2371 = vld [vmem:[%s2365 + $0x28] sm:$0xff]
          %v2372 = vld [vmem:[%s2365 + $0x30] sm:$0xff]
          %v2373 = vld [vmem:[%s2365 + $0x38] sm:$0xff]
          %v2374 = vld [vmem:[%s2365 + $0x40] sm:$0xff]
          %v2375 = vld [vmem:[%s2365 + $0x48] sm:$0xff]
          %v2376 = vld [vmem:[%s2365 + $0x50] sm:$0xff]
          %v2377 = vld [vmem:[%s2365 + $0x58] sm:$0xff]
          %v2378 = vld [vmem:[%s2365 + $0x60] sm:$0xff]
          %v2379 = vld [vmem:[%s2365 + $0x68] sm:$0xff]
          %v2380 = vld [vmem:[%s2365 + $0x70] sm:$0xff]
          %v2381 = vld [vmem:[%s2365 + $0x78] sm:$0xff]
          %v2382 = vld [vmem:[%s2365 + $0x80] sm:$0xff]
          %v2383 = vld [vmem:[%s2365 + $0x88] sm:$0xff]
          %v2384 = vld [vmem:[%s2365 + $0x90] sm:$0xff]
          %v2385 = vld [vmem:[%s2365 + $0x98] sm:$0xff]
          %v2386 = vld [vmem:[%s2365 + $0xa0] sm:$0xff]
          %v2387 = vld [vmem:[%s2365 + $0xa8] sm:$0xff]
          %v2388 = vld [vmem:[%s2365 + $0xb0] sm:$0xff]
          %v2389 = vld [vmem:[%s2365 + $0xb8] sm:$0xff]
          %v2390 = vld [vmem:[%s2365 + $0xc0] sm:$0xff]
          %v2391 = vld [vmem:[%s2365 + $0xc8] sm:$0xff]
          %v2392 = vld [vmem:[%s2365 + $0xd0] sm:$0xff]
          %v2393 = vld [vmem:[%s2365 + $0xd8] sm:$0xff]
          %v2394 = vld [vmem:[%s2365 + $0xe0] sm:$0xff]
          %v2395 = vld [vmem:[%s2365 + $0xe8] sm:$0xff]
          %v2396 = vld [vmem:[%s2365 + $0xf0] sm:$0xff]
          %v2397 = vld [vmem:[%s2365 + $0xf8] sm:$0xff]
          %v2430 = vunpack.c.l.b16 %v2366
          %v2431 = vunpack.c.h.b16 %v2366
          %v2432 = vunpack.c.l.b16 %v2367
          %v2433 = vunpack.c.h.b16 %v2367
          %v2434 = vunpack.c.l.b16 %v2368
          %v2435 = vunpack.c.h.b16 %v2368
          %v2436 = vunpack.c.l.b16 %v2369
          %v2437 = vunpack.c.h.b16 %v2369
          %v2438 = vunpack.c.l.b16 %v2370
          %v2439 = vunpack.c.h.b16 %v2370
          %v2440 = vunpack.c.l.b16 %v2371
          %v2441 = vunpack.c.h.b16 %v2371
          %v2442 = vunpack.c.l.b16 %v2372
          %v2443 = vunpack.c.h.b16 %v2372
          %v2444 = vunpack.c.l.b16 %v2373
          %v2445 = vunpack.c.h.b16 %v2373
          %v2446 = vunpack.c.l.b16 %v2374
          %v2447 = vunpack.c.h.b16 %v2374
          %v2448 = vunpack.c.l.b16 %v2375
          %v2449 = vunpack.c.h.b16 %v2375
          %v2450 = vunpack.c.l.b16 %v2376
          %v2451 = vunpack.c.h.b16 %v2376
          %v2452 = vunpack.c.l.b16 %v2377
          %v2453 = vunpack.c.h.b16 %v2377
          %v2454 = vunpack.c.l.b16 %v2378
          %v2455 = vunpack.c.h.b16 %v2378
          %v2456 = vunpack.c.l.b16 %v2379
          %v2457 = vunpack.c.h.b16 %v2379
          %v2458 = vunpack.c.l.b16 %v2380
          %v2459 = vunpack.c.h.b16 %v2380
          %v2460 = vunpack.c.l.b16 %v2381
          %v2461 = vunpack.c.h.b16 %v2381
          %v2462 = vunpack.c.l.b16 %v2382
          %v2463 = vunpack.c.h.b16 %v2382
          %v2464 = vunpack.c.l.b16 %v2383
          %v2465 = vunpack.c.h.b16 %v2383
          %v2466 = vunpack.c.l.b16 %v2384
          %v2467 = vunpack.c.h.b16 %v2384
          %v2468 = vunpack.c.l.b16 %v2385
          %v2469 = vunpack.c.h.b16 %v2385
          %v2470 = vunpack.c.l.b16 %v2386
          %v2471 = vunpack.c.h.b16 %v2386
          %v2472 = vunpack.c.l.b16 %v2387
          %v2473 = vunpack.c.h.b16 %v2387
          %v2474 = vunpack.c.l.b16 %v2388
          %v2475 = vunpack.c.h.b16 %v2388
          %v2476 = vunpack.c.l.b16 %v2389
          %v2477 = vunpack.c.h.b16 %v2389
          %v2478 = vunpack.c.l.b16 %v2390
          %v2479 = vunpack.c.h.b16 %v2390
          %v2480 = vunpack.c.l.b16 %v2391
          %v2481 = vunpack.c.h.b16 %v2391
          %v2482 = vunpack.c.l.b16 %v2392
          %v2483 = vunpack.c.h.b16 %v2392
          %v2484 = vunpack.c.l.b16 %v2393
          %v2485 = vunpack.c.h.b16 %v2393
          %v2486 = vunpack.c.l.b16 %v2394
          %v2487 = vunpack.c.h.b16 %v2394
          %v2488 = vunpack.c.l.b16 %v2395
          %v2489 = vunpack.c.h.b16 %v2395
          %v2490 = vunpack.c.l.b16 %v2396
          %v2491 = vunpack.c.h.b16 %v2396
          %v2492 = vunpack.c.l.b16 %v2397
          %v2493 = vunpack.c.h.b16 %v2397
          %v2494 = vpack.c.b16 %v2434, %v2430
          %v2495 = vpack.c.b16 %v2435, %v2431
          %v2496 = vpack.c.b16 %v2436, %v2432
          %v2497 = vpack.c.b16 %v2437, %v2433
          %v2498 = vpack.c.b16 %v2442, %v2438
          %v2499 = vpack.c.b16 %v2443, %v2439
          %v2500 = vpack.c.b16 %v2444, %v2440
          %v2501 = vpack.c.b16 %v2445, %v2441
          %v2502 = vpack.c.b16 %v2450, %v2446
          %v2503 = vpack.c.b16 %v2451, %v2447
          %v2504 = vpack.c.b16 %v2452, %v2448
          %v2505 = vpack.c.b16 %v2453, %v2449
          %v2506 = vpack.c.b16 %v2458, %v2454
          %v2507 = vpack.c.b16 %v2459, %v2455
          %v2508 = vpack.c.b16 %v2460, %v2456
          %v2509 = vpack.c.b16 %v2461, %v2457
          %v2510 = vpack.c.b16 %v2466, %v2462
          %v2511 = vpack.c.b16 %v2467, %v2463
          %v2512 = vpack.c.b16 %v2468, %v2464
          %v2513 = vpack.c.b16 %v2469, %v2465
          %v2514 = vpack.c.b16 %v2474, %v2470
          %v2515 = vpack.c.b16 %v2475, %v2471
          %v2516 = vpack.c.b16 %v2476, %v2472
          %v2517 = vpack.c.b16 %v2477, %v2473
          %v2518 = vpack.c.b16 %v2482, %v2478
          %v2519 = vpack.c.b16 %v2483, %v2479
          %v2520 = vpack.c.b16 %v2484, %v2480
          %v2521 = vpack.c.b16 %v2485, %v2481
          %v2522 = vpack.c.b16 %v2490, %v2486
          %v2523 = vpack.c.b16 %v2491, %v2487
          %v2524 = vpack.c.b16 %v2492, %v2488
          %v2525 = vpack.c.b16 %v2493, %v2489
          %2558 = vmatprep.subr.bf16.mxu0 %v2523
          %2559 = vmatpush1.bf16.msra.mxu0 %v2522
          %2560 = vmatprep.subr.bf16.mxu0 %v2519
          %2561 = vmatpush1.bf16.msra.mxu0 %v2518
          %2562 = vmatprep.subr.bf16.mxu0 %v2515
          %2563 = vmatpush1.bf16.msra.mxu0 %v2514
          %2564 = vmatprep.subr.bf16.mxu0 %v2511
          %2565 = vmatpush1.bf16.msra.mxu0 %v2510
          %2566 = vmatprep.subr.bf16.mxu0 %v2507
          %2567 = vmatpush1.bf16.msra.mxu0 %v2506
          %2568 = vmatprep.subr.bf16.mxu0 %v2503
          %2569 = vmatpush1.bf16.msra.mxu0 %v2502
          %2570 = vmatprep.subr.bf16.mxu0 %v2499
          %2571 = vmatpush1.bf16.msra.mxu0 %v2498
          %2572 = vmatprep.subr.bf16.mxu0 %v2495
          %2573 = vmatpush1.bf16.msra.mxu0 %v2494
          %2574 = vmatprep.subr.bf16.mxu0 0
          %2575 = vmatpush2.bf16.msra.mxu0 0
          %2576 = vmatprep.subr.bf16.mxu0 0
          %2577 = vmatpush2.bf16.msra.mxu0 0
          %2578 = vmatprep.subr.bf16.mxu0 0
          %2579 = vmatpush2.bf16.msra.mxu0 0
          %2580 = vmatprep.subr.bf16.mxu0 0
          %2581 = vmatpush2.bf16.msra.mxu0 0
          %2582 = vmatprep.subr.bf16.mxu0 0
          %2583 = vmatpush2.bf16.msra.mxu0 0
          %2584 = vmatprep.subr.bf16.mxu0 0
          %2585 = vmatpush2.bf16.msra.mxu0 0
          %2586 = vmatprep.subr.bf16.mxu0 0
          %2587 = vmatpush2.bf16.msra.mxu0 0
          %2588 = vmatprep.subr.bf16.mxu0 0
          %2589 = vmatpush2.bf16.msra.mxu0 0
          %2590 = vmatprep.mubr.bf16.mxu0 0
          %2591 = vmatmul.mubr.bf16.gmra.mxu0 %v1765
          %v2592 = vpop.f32.mrf.mxu0
          %v2593 = vadd.f32 0.0, %v2592
          %v2594 = vpop.f32.mrf.mxu0
          %v2595 = vadd.f32 0.0, %v2594
          %v2596 = vpop.f32.mrf.mxu0
          %v2597 = vadd.f32 0.0, %v2596
          %v2598 = vpop.f32.mrf.mxu0
          %v2599 = vadd.f32 0.0, %v2598
          %2600 = vdwg.mxu0
          %2601 = vmatprep.subr.bf16.mxu0 %v2525
          %2602 = vmatpush1.bf16.msra.mxu0 %v2524
          %2603 = vmatprep.subr.bf16.mxu0 %v2521
          %2604 = vmatpush1.bf16.msra.mxu0 %v2520
          %2605 = vmatprep.subr.bf16.mxu0 %v2517
          %2606 = vmatpush1.bf16.msra.mxu0 %v2516
          %2607 = vmatprep.subr.bf16.mxu0 %v2513
          %2608 = vmatpush1.bf16.msra.mxu0 %v2512
          %2609 = vmatprep.subr.bf16.mxu0 %v2509
          %2610 = vmatpush1.bf16.msra.mxu0 %v2508
          %2611 = vmatprep.subr.bf16.mxu0 %v2505
          %2612 = vmatpush1.bf16.msra.mxu0 %v2504
          %2613 = vmatprep.subr.bf16.mxu0 %v2501
          %2614 = vmatpush1.bf16.msra.mxu0 %v2500
          %2615 = vmatprep.subr.bf16.mxu0 %v2497
          %2616 = vmatpush1.bf16.msra.mxu0 %v2496
          %2617 = vmatprep.subr.bf16.mxu0 0
          %2618 = vmatpush2.bf16.msra.mxu0 0
          %2619 = vmatprep.subr.bf16.mxu0 0
          %2620 = vmatpush2.bf16.msra.mxu0 0
          %2621 = vmatprep.subr.bf16.mxu0 0
          %2622 = vmatpush2.bf16.msra.mxu0 0
          %2623 = vmatprep.subr.bf16.mxu0 0
          %2624 = vmatpush2.bf16.msra.mxu0 0
          %2625 = vmatprep.subr.bf16.mxu0 0
          %2626 = vmatpush2.bf16.msra.mxu0 0
          %2627 = vmatprep.subr.bf16.mxu0 0
          %2628 = vmatpush2.bf16.msra.mxu0 0
          %2629 = vmatprep.subr.bf16.mxu0 0
          %2630 = vmatpush2.bf16.msra.mxu0 0
          %2631 = vmatprep.subr.bf16.mxu0 0
          %2632 = vmatpush2.bf16.msra.mxu0 0
          %2633 = vmatprep.mubr.bf16.mxu0 0
          %2634 = vmatmul.mubr.bf16.gmra.mxu0 %v1765
          %v2635 = vpop.f32.mrf.mxu0
          %v2636 = vadd.f32 0.0, %v2635
          %v2637 = vpop.f32.mrf.mxu0
          %v2638 = vadd.f32 0.0, %v2637
          %v2639 = vpop.f32.mrf.mxu0
          %v2640 = vadd.f32 0.0, %v2639
          %v2641 = vpop.f32.mrf.mxu0
          %v2642 = vadd.f32 0.0, %v2641
          %2643 = vdwg.mxu0
          %v2644 = vadd.f32 %v2357, %v2593
          %v2645 = vadd.f32 %v2358, %v2595
          %v2646 = vadd.f32 %v2359, %v2636
          %v2647 = vadd.f32 %v2360, %v2638
          %v2648 = vadd.f32 %v2361, %v2597
          %v2649 = vadd.f32 %v2362, %v2599
          %v2650 = vadd.f32 %v2363, %v2640
          %v2651 = vadd.f32 %v2364, %v2642
          %s2652 = scalar_lea.vmem [#allocation15], 768
          %v2653 = vld [vmem:[%s2652] sm:$0xff]
          %v2654 = vld [vmem:[%s2652 + $0x8] sm:$0xff]
          %v2655 = vld [vmem:[%s2652 + $0x10] sm:$0xff]
          %v2656 = vld [vmem:[%s2652 + $0x18] sm:$0xff]
          %v2657 = vld [vmem:[%s2652 + $0x20] sm:$0xff]
          %v2658 = vld [vmem:[%s2652 + $0x28] sm:$0xff]
          %v2659 = vld [vmem:[%s2652 + $0x30] sm:$0xff]
          %v2660 = vld [vmem:[%s2652 + $0x38] sm:$0xff]
          %v2661 = vld [vmem:[%s2652 + $0x40] sm:$0xff]
          %v2662 = vld [vmem:[%s2652 + $0x48] sm:$0xff]
          %v2663 = vld [vmem:[%s2652 + $0x50] sm:$0xff]
          %v2664 = vld [vmem:[%s2652 + $0x58] sm:$0xff]
          %v2665 = vld [vmem:[%s2652 + $0x60] sm:$0xff]
          %v2666 = vld [vmem:[%s2652 + $0x68] sm:$0xff]
          %v2667 = vld [vmem:[%s2652 + $0x70] sm:$0xff]
          %v2668 = vld [vmem:[%s2652 + $0x78] sm:$0xff]
          %v2669 = vld [vmem:[%s2652 + $0x80] sm:$0xff]
          %v2670 = vld [vmem:[%s2652 + $0x88] sm:$0xff]
          %v2671 = vld [vmem:[%s2652 + $0x90] sm:$0xff]
          %v2672 = vld [vmem:[%s2652 + $0x98] sm:$0xff]
          %v2673 = vld [vmem:[%s2652 + $0xa0] sm:$0xff]
          %v2674 = vld [vmem:[%s2652 + $0xa8] sm:$0xff]
          %v2675 = vld [vmem:[%s2652 + $0xb0] sm:$0xff]
          %v2676 = vld [vmem:[%s2652 + $0xb8] sm:$0xff]
          %v2677 = vld [vmem:[%s2652 + $0xc0] sm:$0xff]
          %v2678 = vld [vmem:[%s2652 + $0xc8] sm:$0xff]
          %v2679 = vld [vmem:[%s2652 + $0xd0] sm:$0xff]
          %v2680 = vld [vmem:[%s2652 + $0xd8] sm:$0xff]
          %v2681 = vld [vmem:[%s2652 + $0xe0] sm:$0xff]
          %v2682 = vld [vmem:[%s2652 + $0xe8] sm:$0xff]
          %v2683 = vld [vmem:[%s2652 + $0xf0] sm:$0xff]
          %v2684 = vld [vmem:[%s2652 + $0xf8] sm:$0xff]
          %v2717 = vunpack.c.l.b16 %v2653
          %v2718 = vunpack.c.h.b16 %v2653
          %v2719 = vunpack.c.l.b16 %v2654
          %v2720 = vunpack.c.h.b16 %v2654
          %v2721 = vunpack.c.l.b16 %v2655
          %v2722 = vunpack.c.h.b16 %v2655
          %v2723 = vunpack.c.l.b16 %v2656
          %v2724 = vunpack.c.h.b16 %v2656
          %v2725 = vunpack.c.l.b16 %v2657
          %v2726 = vunpack.c.h.b16 %v2657
          %v2727 = vunpack.c.l.b16 %v2658
          %v2728 = vunpack.c.h.b16 %v2658
          %v2729 = vunpack.c.l.b16 %v2659
          %v2730 = vunpack.c.h.b16 %v2659
          %v2731 = vunpack.c.l.b16 %v2660
          %v2732 = vunpack.c.h.b16 %v2660
          %v2733 = vunpack.c.l.b16 %v2661
          %v2734 = vunpack.c.h.b16 %v2661
          %v2735 = vunpack.c.l.b16 %v2662
          %v2736 = vunpack.c.h.b16 %v2662
          %v2737 = vunpack.c.l.b16 %v2663
          %v2738 = vunpack.c.h.b16 %v2663
          %v2739 = vunpack.c.l.b16 %v2664
          %v2740 = vunpack.c.h.b16 %v2664
          %v2741 = vunpack.c.l.b16 %v2665
          %v2742 = vunpack.c.h.b16 %v2665
          %v2743 = vunpack.c.l.b16 %v2666
          %v2744 = vunpack.c.h.b16 %v2666
          %v2745 = vunpack.c.l.b16 %v2667
          %v2746 = vunpack.c.h.b16 %v2667
          %v2747 = vunpack.c.l.b16 %v2668
          %v2748 = vunpack.c.h.b16 %v2668
          %v2749 = vunpack.c.l.b16 %v2669
          %v2750 = vunpack.c.h.b16 %v2669
          %v2751 = vunpack.c.l.b16 %v2670
          %v2752 = vunpack.c.h.b16 %v2670
          %v2753 = vunpack.c.l.b16 %v2671
          %v2754 = vunpack.c.h.b16 %v2671
          %v2755 = vunpack.c.l.b16 %v2672
          %v2756 = vunpack.c.h.b16 %v2672
          %v2757 = vunpack.c.l.b16 %v2673
          %v2758 = vunpack.c.h.b16 %v2673
          %v2759 = vunpack.c.l.b16 %v2674
          %v2760 = vunpack.c.h.b16 %v2674
          %v2761 = vunpack.c.l.b16 %v2675
          %v2762 = vunpack.c.h.b16 %v2675
          %v2763 = vunpack.c.l.b16 %v2676
          %v2764 = vunpack.c.h.b16 %v2676
          %v2765 = vunpack.c.l.b16 %v2677
          %v2766 = vunpack.c.h.b16 %v2677
          %v2767 = vunpack.c.l.b16 %v2678
          %v2768 = vunpack.c.h.b16 %v2678
          %v2769 = vunpack.c.l.b16 %v2679
          %v2770 = vunpack.c.h.b16 %v2679
          %v2771 = vunpack.c.l.b16 %v2680
          %v2772 = vunpack.c.h.b16 %v2680
          %v2773 = vunpack.c.l.b16 %v2681
          %v2774 = vunpack.c.h.b16 %v2681
          %v2775 = vunpack.c.l.b16 %v2682
          %v2776 = vunpack.c.h.b16 %v2682
          %v2777 = vunpack.c.l.b16 %v2683
          %v2778 = vunpack.c.h.b16 %v2683
          %v2779 = vunpack.c.l.b16 %v2684
          %v2780 = vunpack.c.h.b16 %v2684
          %v2781 = vpack.c.b16 %v2721, %v2717
          %v2782 = vpack.c.b16 %v2722, %v2718
          %v2783 = vpack.c.b16 %v2723, %v2719
          %v2784 = vpack.c.b16 %v2724, %v2720
          %v2785 = vpack.c.b16 %v2729, %v2725
          %v2786 = vpack.c.b16 %v2730, %v2726
          %v2787 = vpack.c.b16 %v2731, %v2727
          %v2788 = vpack.c.b16 %v2732, %v2728
          %v2789 = vpack.c.b16 %v2737, %v2733
          %v2790 = vpack.c.b16 %v2738, %v2734
          %v2791 = vpack.c.b16 %v2739, %v2735
          %v2792 = vpack.c.b16 %v2740, %v2736
          %v2793 = vpack.c.b16 %v2745, %v2741
          %v2794 = vpack.c.b16 %v2746, %v2742
          %v2795 = vpack.c.b16 %v2747, %v2743
          %v2796 = vpack.c.b16 %v2748, %v2744
          %v2797 = vpack.c.b16 %v2753, %v2749
          %v2798 = vpack.c.b16 %v2754, %v2750
          %v2799 = vpack.c.b16 %v2755, %v2751
          %v2800 = vpack.c.b16 %v2756, %v2752
          %v2801 = vpack.c.b16 %v2761, %v2757
          %v2802 = vpack.c.b16 %v2762, %v2758
          %v2803 = vpack.c.b16 %v2763, %v2759
          %v2804 = vpack.c.b16 %v2764, %v2760
          %v2805 = vpack.c.b16 %v2769, %v2765
          %v2806 = vpack.c.b16 %v2770, %v2766
          %v2807 = vpack.c.b16 %v2771, %v2767
          %v2808 = vpack.c.b16 %v2772, %v2768
          %v2809 = vpack.c.b16 %v2777, %v2773
          %v2810 = vpack.c.b16 %v2778, %v2774
          %v2811 = vpack.c.b16 %v2779, %v2775
          %v2812 = vpack.c.b16 %v2780, %v2776
          %2845 = vmatprep.subr.bf16.mxu0 %v2810
          %2846 = vmatpush1.bf16.msra.mxu0 %v2809
          %2847 = vmatprep.subr.bf16.mxu0 %v2806
          %2848 = vmatpush1.bf16.msra.mxu0 %v2805
          %2849 = vmatprep.subr.bf16.mxu0 %v2802
          %2850 = vmatpush1.bf16.msra.mxu0 %v2801
          %2851 = vmatprep.subr.bf16.mxu0 %v2798
          %2852 = vmatpush1.bf16.msra.mxu0 %v2797
          %2853 = vmatprep.subr.bf16.mxu0 %v2794
          %2854 = vmatpush1.bf16.msra.mxu0 %v2793
          %2855 = vmatprep.subr.bf16.mxu0 %v2790
          %2856 = vmatpush1.bf16.msra.mxu0 %v2789
          %2857 = vmatprep.subr.bf16.mxu0 %v2786
          %2858 = vmatpush1.bf16.msra.mxu0 %v2785
          %2859 = vmatprep.subr.bf16.mxu0 %v2782
          %2860 = vmatpush1.bf16.msra.mxu0 %v2781
          %2861 = vmatprep.subr.bf16.mxu0 0
          %2862 = vmatpush2.bf16.msra.mxu0 0
          %2863 = vmatprep.subr.bf16.mxu0 0
          %2864 = vmatpush2.bf16.msra.mxu0 0
          %2865 = vmatprep.subr.bf16.mxu0 0
          %2866 = vmatpush2.bf16.msra.mxu0 0
          %2867 = vmatprep.subr.bf16.mxu0 0
          %2868 = vmatpush2.bf16.msra.mxu0 0
          %2869 = vmatprep.subr.bf16.mxu0 0
          %2870 = vmatpush2.bf16.msra.mxu0 0
          %2871 = vmatprep.subr.bf16.mxu0 0
          %2872 = vmatpush2.bf16.msra.mxu0 0
          %2873 = vmatprep.subr.bf16.mxu0 0
          %2874 = vmatpush2.bf16.msra.mxu0 0
          %2875 = vmatprep.subr.bf16.mxu0 0
          %2876 = vmatpush2.bf16.msra.mxu0 0
          %2877 = vmatprep.mubr.bf16.mxu0 0
          %2878 = vmatmul.mubr.bf16.gmra.mxu0 %v1765
          %v2879 = vpop.f32.mrf.mxu0
          %v2880 = vadd.f32 0.0, %v2879
          %v2881 = vpop.f32.mrf.mxu0
          %v2882 = vadd.f32 0.0, %v2881
          %v2883 = vpop.f32.mrf.mxu0
          %v2884 = vadd.f32 0.0, %v2883
          %v2885 = vpop.f32.mrf.mxu0
          %v2886 = vadd.f32 0.0, %v2885
          %2887 = vdwg.mxu0
          %2888 = vmatprep.subr.bf16.mxu0 %v2812
          %2889 = vmatpush1.bf16.msra.mxu0 %v2811
          %2890 = vmatprep.subr.bf16.mxu0 %v2808
          %2891 = vmatpush1.bf16.msra.mxu0 %v2807
          %2892 = vmatprep.subr.bf16.mxu0 %v2804
          %2893 = vmatpush1.bf16.msra.mxu0 %v2803
          %2894 = vmatprep.subr.bf16.mxu0 %v2800
          %2895 = vmatpush1.bf16.msra.mxu0 %v2799
          %2896 = vmatprep.subr.bf16.mxu0 %v2796
          %2897 = vmatpush1.bf16.msra.mxu0 %v2795
          %2898 = vmatprep.subr.bf16.mxu0 %v2792
          %2899 = vmatpush1.bf16.msra.mxu0 %v2791
          %2900 = vmatprep.subr.bf16.mxu0 %v2788
          %2901 = vmatpush1.bf16.msra.mxu0 %v2787
          %2902 = vmatprep.subr.bf16.mxu0 %v2784
          %2903 = vmatpush1.bf16.msra.mxu0 %v2783
          %2904 = vmatprep.subr.bf16.mxu0 0
          %2905 = vmatpush2.bf16.msra.mxu0 0
          %2906 = vmatprep.subr.bf16.mxu0 0
          %2907 = vmatpush2.bf16.msra.mxu0 0
          %2908 = vmatprep.subr.bf16.mxu0 0
          %2909 = vmatpush2.bf16.msra.mxu0 0
          %2910 = vmatprep.subr.bf16.mxu0 0
          %2911 = vmatpush2.bf16.msra.mxu0 0
          %2912 = vmatprep.subr.bf16.mxu0 0
          %2913 = vmatpush2.bf16.msra.mxu0 0
          %2914 = vmatprep.subr.bf16.mxu0 0
          %2915 = vmatpush2.bf16.msra.mxu0 0
          %2916 = vmatprep.subr.bf16.mxu0 0
          %2917 = vmatpush2.bf16.msra.mxu0 0
          %2918 = vmatprep.subr.bf16.mxu0 0
          %2919 = vmatpush2.bf16.msra.mxu0 0
          %2920 = vmatprep.mubr.bf16.mxu0 0
          %2921 = vmatmul.mubr.bf16.gmra.mxu0 %v1765
          %v2922 = vpop.f32.mrf.mxu0
          %v2923 = vadd.f32 0.0, %v2922
          %v2924 = vpop.f32.mrf.mxu0
          %v2925 = vadd.f32 0.0, %v2924
          %v2926 = vpop.f32.mrf.mxu0
          %v2927 = vadd.f32 0.0, %v2926
          %v2928 = vpop.f32.mrf.mxu0
          %v2929 = vadd.f32 0.0, %v2928
          %2930 = vdwg.mxu0
          %v2931 = vrot.slane %v2880, 1
          %v2932 = vrot.slane %v2882, 1
          %v2933 = vrot.slane %v2923, 1
          %v2934 = vrot.slane %v2925, 1
          %v2935 = vrot.slane %v2884, 1
          %v2936 = vrot.slane %v2886, 1
          %v2937 = vrot.slane %v2927, 1
          %v2938 = vrot.slane %v2929, 1
          %vm2939 = vcmp.lt.s32.totalorder %v1316, 7
          %v2940 = vsel %vm2939, %v2931, %v2935
          %v2941 = vsel %vm2939, %v2932, %v2936
          %v2942 = vsel %vm2939, %v2933, %v2937
          %v2943 = vsel %vm2939, %v2934, %v2938
          %v2944 = vsel %vm2939, %v2935, %v2931
          %v2945 = vsel %vm2939, %v2936, %v2932
          %v2946 = vsel %vm2939, %v2937, %v2933
          %v2947 = vsel %vm2939, %v2938, %v2934
          %v2948 = vadd.f32 %v2644, %v2940
          %v2949 = vadd.f32 %v2645, %v2941
          %v2950 = vadd.f32 %v2646, %v2942
          %v2951 = vadd.f32 %v2647, %v2943
          %v2952 = vadd.f32 %v2648, %v2944
          %v2953 = vadd.f32 %v2649, %v2945
          %v2954 = vadd.f32 %v2650, %v2946
          %v2955 = vadd.f32 %v2651, %v2947
          %s2956 = scalar_lea.vmem [#allocation15], 1024
          %v2957 = vld [vmem:[%s2956] sm:$0xff]
          %v2958 = vld [vmem:[%s2956 + $0x8] sm:$0xff]
          %v2959 = vld [vmem:[%s2956 + $0x10] sm:$0xff]
          %v2960 = vld [vmem:[%s2956 + $0x18] sm:$0xff]
          %v2961 = vld [vmem:[%s2956 + $0x20] sm:$0xff]
          %v2962 = vld [vmem:[%s2956 + $0x28] sm:$0xff]
          %v2963 = vld [vmem:[%s2956 + $0x30] sm:$0xff]
          %v2964 = vld [vmem:[%s2956 + $0x38] sm:$0xff]
          %v2965 = vld [vmem:[%s2956 + $0x40] sm:$0xff]
          %v2966 = vld [vmem:[%s2956 + $0x48] sm:$0xff]
          %v2967 = vld [vmem:[%s2956 + $0x50] sm:$0xff]
          %v2968 = vld [vmem:[%s2956 + $0x58] sm:$0xff]
          %v2969 = vld [vmem:[%s2956 + $0x60] sm:$0xff]
          %v2970 = vld [vmem:[%s2956 + $0x68] sm:$0xff]
          %v2971 = vld [vmem:[%s2956 + $0x70] sm:$0xff]
          %v2972 = vld [vmem:[%s2956 + $0x78] sm:$0xff]
          %v2973 = vld [vmem:[%s2956 + $0x80] sm:$0xff]
          %v2974 = vld [vmem:[%s2956 + $0x88] sm:$0xff]
          %v2975 = vld [vmem:[%s2956 + $0x90] sm:$0xff]
          %v2976 = vld [vmem:[%s2956 + $0x98] sm:$0xff]
          %v2977 = vld [vmem:[%s2956 + $0xa0] sm:$0xff]
          %v2978 = vld [vmem:[%s2956 + $0xa8] sm:$0xff]
          %v2979 = vld [vmem:[%s2956 + $0xb0] sm:$0xff]
          %v2980 = vld [vmem:[%s2956 + $0xb8] sm:$0xff]
          %v2981 = vld [vmem:[%s2956 + $0xc0] sm:$0xff]
          %v2982 = vld [vmem:[%s2956 + $0xc8] sm:$0xff]
          %v2983 = vld [vmem:[%s2956 + $0xd0] sm:$0xff]
          %v2984 = vld [vmem:[%s2956 + $0xd8] sm:$0xff]
          %v2985 = vld [vmem:[%s2956 + $0xe0] sm:$0xff]
          %v2986 = vld [vmem:[%s2956 + $0xe8] sm:$0xff]
          %v2987 = vld [vmem:[%s2956 + $0xf0] sm:$0xff]
          %v2988 = vld [vmem:[%s2956 + $0xf8] sm:$0xff]
          %v3021 = vunpack.c.l.b16 %v2957
          %v3022 = vunpack.c.h.b16 %v2957
          %v3023 = vunpack.c.l.b16 %v2958
          %v3024 = vunpack.c.h.b16 %v2958
          %v3025 = vunpack.c.l.b16 %v2959
          %v3026 = vunpack.c.h.b16 %v2959
          %v3027 = vunpack.c.l.b16 %v2960
          %v3028 = vunpack.c.h.b16 %v2960
          %v3029 = vunpack.c.l.b16 %v2961
          %v3030 = vunpack.c.h.b16 %v2961
          %v3031 = vunpack.c.l.b16 %v2962
          %v3032 = vunpack.c.h.b16 %v2962
          %v3033 = vunpack.c.l.b16 %v2963
          %v3034 = vunpack.c.h.b16 %v2963
          %v3035 = vunpack.c.l.b16 %v2964
          %v3036 = vunpack.c.h.b16 %v2964
          %v3037 = vunpack.c.l.b16 %v2965
          %v3038 = vunpack.c.h.b16 %v2965
          %v3039 = vunpack.c.l.b16 %v2966
          %v3040 = vunpack.c.h.b16 %v2966
          %v3041 = vunpack.c.l.b16 %v2967
          %v3042 = vunpack.c.h.b16 %v2967
          %v3043 = vunpack.c.l.b16 %v2968
          %v3044 = vunpack.c.h.b16 %v2968
          %v3045 = vunpack.c.l.b16 %v2969
          %v3046 = vunpack.c.h.b16 %v2969
          %v3047 = vunpack.c.l.b16 %v2970
          %v3048 = vunpack.c.h.b16 %v2970
          %v3049 = vunpack.c.l.b16 %v2971
          %v3050 = vunpack.c.h.b16 %v2971
          %v3051 = vunpack.c.l.b16 %v2972
          %v3052 = vunpack.c.h.b16 %v2972
          %v3053 = vunpack.c.l.b16 %v2973
          %v3054 = vunpack.c.h.b16 %v2973
          %v3055 = vunpack.c.l.b16 %v2974
          %v3056 = vunpack.c.h.b16 %v2974
          %v3057 = vunpack.c.l.b16 %v2975
          %v3058 = vunpack.c.h.b16 %v2975
          %v3059 = vunpack.c.l.b16 %v2976
          %v3060 = vunpack.c.h.b16 %v2976
          %v3061 = vunpack.c.l.b16 %v2977
          %v3062 = vunpack.c.h.b16 %v2977
          %v3063 = vunpack.c.l.b16 %v2978
          %v3064 = vunpack.c.h.b16 %v2978
          %v3065 = vunpack.c.l.b16 %v2979
          %v3066 = vunpack.c.h.b16 %v2979
          %v3067 = vunpack.c.l.b16 %v2980
          %v3068 = vunpack.c.h.b16 %v2980
          %v3069 = vunpack.c.l.b16 %v2981
          %v3070 = vunpack.c.h.b16 %v2981
          %v3071 = vunpack.c.l.b16 %v2982
          %v3072 = vunpack.c.h.b16 %v2982
          %v3073 = vunpack.c.l.b16 %v2983
          %v3074 = vunpack.c.h.b16 %v2983
          %v3075 = vunpack.c.l.b16 %v2984
          %v3076 = vunpack.c.h.b16 %v2984
          %v3077 = vunpack.c.l.b16 %v2985
          %v3078 = vunpack.c.h.b16 %v2985
          %v3079 = vunpack.c.l.b16 %v2986
          %v3080 = vunpack.c.h.b16 %v2986
          %v3081 = vunpack.c.l.b16 %v2987
          %v3082 = vunpack.c.h.b16 %v2987
          %v3083 = vunpack.c.l.b16 %v2988
          %v3084 = vunpack.c.h.b16 %v2988
          %v3085 = vpack.c.b16 %v3025, %v3021
          %v3086 = vpack.c.b16 %v3026, %v3022
          %v3087 = vpack.c.b16 %v3027, %v3023
          %v3088 = vpack.c.b16 %v3028, %v3024
          %v3089 = vpack.c.b16 %v3033, %v3029
          %v3090 = vpack.c.b16 %v3034, %v3030
          %v3091 = vpack.c.b16 %v3035, %v3031
          %v3092 = vpack.c.b16 %v3036, %v3032
          %v3093 = vpack.c.b16 %v3041, %v3037
          %v3094 = vpack.c.b16 %v3042, %v3038
          %v3095 = vpack.c.b16 %v3043, %v3039
          %v3096 = vpack.c.b16 %v3044, %v3040
          %v3097 = vpack.c.b16 %v3049, %v3045
          %v3098 = vpack.c.b16 %v3050, %v3046
          %v3099 = vpack.c.b16 %v3051, %v3047
          %v3100 = vpack.c.b16 %v3052, %v3048
          %v3101 = vpack.c.b16 %v3057, %v3053
          %v3102 = vpack.c.b16 %v3058, %v3054
          %v3103 = vpack.c.b16 %v3059, %v3055
          %v3104 = vpack.c.b16 %v3060, %v3056
          %v3105 = vpack.c.b16 %v3065, %v3061
          %v3106 = vpack.c.b16 %v3066, %v3062
          %v3107 = vpack.c.b16 %v3067, %v3063
          %v3108 = vpack.c.b16 %v3068, %v3064
          %v3109 = vpack.c.b16 %v3073, %v3069
          %v3110 = vpack.c.b16 %v3074, %v3070
          %v3111 = vpack.c.b16 %v3075, %v3071
          %v3112 = vpack.c.b16 %v3076, %v3072
          %v3113 = vpack.c.b16 %v3081, %v3077
          %v3114 = vpack.c.b16 %v3082, %v3078
          %v3115 = vpack.c.b16 %v3083, %v3079
          %v3116 = vpack.c.b16 %v3084, %v3080
          %3149 = vmatprep.subr.bf16.mxu0 %v3114
          %3150 = vmatpush1.bf16.msra.mxu0 %v3113
          %3151 = vmatprep.subr.bf16.mxu0 %v3110
          %3152 = vmatpush1.bf16.msra.mxu0 %v3109
          %3153 = vmatprep.subr.bf16.mxu0 %v3106
          %3154 = vmatpush1.bf16.msra.mxu0 %v3105
          %3155 = vmatprep.subr.bf16.mxu0 %v3102
          %3156 = vmatpush1.bf16.msra.mxu0 %v3101
          %3157 = vmatprep.subr.bf16.mxu0 %v3098
          %3158 = vmatpush1.bf16.msra.mxu0 %v3097
          %3159 = vmatprep.subr.bf16.mxu0 %v3094
          %3160 = vmatpush1.bf16.msra.mxu0 %v3093
          %3161 = vmatprep.subr.bf16.mxu0 %v3090
          %3162 = vmatpush1.bf16.msra.mxu0 %v3089
          %3163 = vmatprep.subr.bf16.mxu0 %v3086
          %3164 = vmatpush1.bf16.msra.mxu0 %v3085
          %3165 = vmatprep.subr.bf16.mxu0 0
          %3166 = vmatpush2.bf16.msra.mxu0 0
          %3167 = vmatprep.subr.bf16.mxu0 0
          %3168 = vmatpush2.bf16.msra.mxu0 0
          %3169 = vmatprep.subr.bf16.mxu0 0
          %3170 = vmatpush2.bf16.msra.mxu0 0
          %3171 = vmatprep.subr.bf16.mxu0 0
          %3172 = vmatpush2.bf16.msra.mxu0 0
          %3173 = vmatprep.subr.bf16.mxu0 0
          %3174 = vmatpush2.bf16.msra.mxu0 0
          %3175 = vmatprep.subr.bf16.mxu0 0
          %3176 = vmatpush2.bf16.msra.mxu0 0
          %3177 = vmatprep.subr.bf16.mxu0 0
          %3178 = vmatpush2.bf16.msra.mxu0 0
          %3179 = vmatprep.subr.bf16.mxu0 0
          %3180 = vmatpush2.bf16.msra.mxu0 0
          %3181 = vmatprep.mubr.bf16.mxu0 0
          %3182 = vmatmul.mubr.bf16.gmra.mxu0 %v1765
          %v3183 = vpop.f32.mrf.mxu0
          %v3184 = vadd.f32 0.0, %v3183
          %v3185 = vpop.f32.mrf.mxu0
          %v3186 = vadd.f32 0.0, %v3185
          %v3187 = vpop.f32.mrf.mxu0
          %v3188 = vadd.f32 0.0, %v3187
          %v3189 = vpop.f32.mrf.mxu0
          %v3190 = vadd.f32 0.0, %v3189
          %3191 = vdwg.mxu0
          %3192 = vmatprep.subr.bf16.mxu0 %v3116
          %3193 = vmatpush1.bf16.msra.mxu0 %v3115
          %3194 = vmatprep.subr.bf16.mxu0 %v3112
          %3195 = vmatpush1.bf16.msra.mxu0 %v3111
          %3196 = vmatprep.subr.bf16.mxu0 %v3108
          %3197 = vmatpush1.bf16.msra.mxu0 %v3107
          %3198 = vmatprep.subr.bf16.mxu0 %v3104
          %3199 = vmatpush1.bf16.msra.mxu0 %v3103
          %3200 = vmatprep.subr.bf16.mxu0 %v3100
          %3201 = vmatpush1.bf16.msra.mxu0 %v3099
          %3202 = vmatprep.subr.bf16.mxu0 %v3096
          %3203 = vmatpush1.bf16.msra.mxu0 %v3095
          %3204 = vmatprep.subr.bf16.mxu0 %v3092
          %3205 = vmatpush1.bf16.msra.mxu0 %v3091
          %3206 = vmatprep.subr.bf16.mxu0 %v3088
          %3207 = vmatpush1.bf16.msra.mxu0 %v3087
          %3208 = vmatprep.subr.bf16.mxu0 0
          %3209 = vmatpush2.bf16.msra.mxu0 0
          %3210 = vmatprep.subr.bf16.mxu0 0
          %3211 = vmatpush2.bf16.msra.mxu0 0
          %3212 = vmatprep.subr.bf16.mxu0 0
          %3213 = vmatpush2.bf16.msra.mxu0 0
          %3214 = vmatprep.subr.bf16.mxu0 0
          %3215 = vmatpush2.bf16.msra.mxu0 0
          %3216 = vmatprep.subr.bf16.mxu0 0
          %3217 = vmatpush2.bf16.msra.mxu0 0
          %3218 = vmatprep.subr.bf16.mxu0 0
          %3219 = vmatpush2.bf16.msra.mxu0 0
          %3220 = vmatprep.subr.bf16.mxu0 0
          %3221 = vmatpush2.bf16.msra.mxu0 0
          %3222 = vmatprep.subr.bf16.mxu0 0
          %3223 = vmatpush2.bf16.msra.mxu0 0
          %3224 = vmatprep.mubr.bf16.mxu0 0
          %3225 = vmatmul.mubr.bf16.gmra.mxu0 %v1765
          %v3226 = vpop.f32.mrf.mxu0
          %v3227 = vadd.f32 0.0, %v3226
          %v3228 = vpop.f32.mrf.mxu0
          %v3229 = vadd.f32 0.0, %v3228
          %v3230 = vpop.f32.mrf.mxu0
          %v3231 = vadd.f32 0.0, %v3230
          %v3232 = vpop.f32.mrf.mxu0
          %v3233 = vadd.f32 0.0, %v3232
          %3234 = vdwg.mxu0
          %v3235 = vrot.slane %v3184, 2
          %v3236 = vrot.slane %v3186, 2
          %v3237 = vrot.slane %v3227, 2
          %v3238 = vrot.slane %v3229, 2
          %v3239 = vrot.slane %v3188, 2
          %v3240 = vrot.slane %v3190, 2
          %v3241 = vrot.slane %v3231, 2
          %v3242 = vrot.slane %v3233, 2
          %vm3243 = vcmp.lt.s32.totalorder %v1316, 6
          %v3244 = vsel %vm3243, %v3235, %v3239
          %v3245 = vsel %vm3243, %v3236, %v3240
          %v3246 = vsel %vm3243, %v3237, %v3241
          %v3247 = vsel %vm3243, %v3238, %v3242
          %v3248 = vsel %vm3243, %v3239, %v3235
          %v3249 = vsel %vm3243, %v3240, %v3236
          %v3250 = vsel %vm3243, %v3241, %v3237
          %v3251 = vsel %vm3243, %v3242, %v3238
          %v3252 = vadd.f32 %v2948, %v3244
          %v3253 = vadd.f32 %v2949, %v3245
          %v3254 = vadd.f32 %v2950, %v3246
          %v3255 = vadd.f32 %v2951, %v3247
          %v3256 = vadd.f32 %v2952, %v3248
          %v3257 = vadd.f32 %v2953, %v3249
          %v3258 = vadd.f32 %v2954, %v3250
          %v3259 = vadd.f32 %v2955, %v3251
          %v3260 = vld [vmem:[#allocation17] sm:$0xf]
          %v3262 = vlaneseq
          %v3263 = vshrl.u32 %v3262, 7
          %v3264 = vsub.s32 0, %v3263
          %v3265 = vrot.slane %v3260, %v3264
          %v3266 = vlaneseq
          %v3267 = vshrl.u32 %v3266, 7
          %v3268 = vsub.s32 1, %v3267
          %v3269 = vrot.slane %v3260, %v3268
          %v3270 = vlaneseq
          %v3271 = vshrl.u32 %v3270, 7
          %v3272 = vsub.s32 2, %v3271
          %v3273 = vrot.slane %v3260, %v3272
          %v3274 = vlaneseq
          %v3275 = vshrl.u32 %v3274, 7
          %v3276 = vsub.s32 3, %v3275
          %v3277 = vrot.slane %v3260, %v3276
          %v3282 = vadd.f32 %v3252, %v3265
          %v3283 = vadd.f32 %v3253, %v3269
          %v3284 = vadd.f32 %v3254, %v3273
          %v3285 = vadd.f32 %v3255, %v3277
          %v3286 = vadd.f32 %v3256, %v3265
          %v3287 = vadd.f32 %v3257, %v3269
          %v3288 = vadd.f32 %v3258, %v3273
          %v3289 = vadd.f32 %v3259, %v3277
          %v3290 = vld [vmem:[#allocation18] sm:$0xf]
          %v3292 = vlaneseq
          %v3293 = vshrl.u32 %v3292, 7
          %v3294 = vsub.s32 0, %v3293
          %v3295 = vrot.slane %v3290, %v3294
          %v3296 = vlaneseq
          %v3297 = vshrl.u32 %v3296, 7
          %v3298 = vsub.s32 1, %v3297
          %v3299 = vrot.slane %v3290, %v3298
          %v3300 = vlaneseq
          %v3301 = vshrl.u32 %v3300, 7
          %v3302 = vsub.s32 2, %v3301
          %v3303 = vrot.slane %v3290, %v3302
          %v3304 = vlaneseq
          %v3305 = vshrl.u32 %v3304, 7
          %v3306 = vsub.s32 3, %v3305
          %v3307 = vrot.slane %v3290, %v3306
          %v3312 = vmul.f32 %v3282, %v3295
          %v3313 = vmul.f32 %v3283, %v3299
          %v3314 = vmul.f32 %v3284, %v3303
          %v3315 = vmul.f32 %v3285, %v3307
          %v3316 = vmul.f32 %v3286, %v3295
          %v3317 = vmul.f32 %v3287, %v3299
          %v3318 = vmul.f32 %v3288, %v3303
          %v3319 = vmul.f32 %v3289, %v3307
          %v3320 = vld [vmem:[#allocation20] sm:$0xf]
          %v3322 = vlaneseq
          %v3323 = vshrl.u32 %v3322, 7
          %v3324 = vsub.s32 0, %v3323
          %v3325 = vrot.slane %v3320, %v3324
          %v3326 = vlaneseq
          %v3327 = vshrl.u32 %v3326, 7
          %v3328 = vsub.s32 1, %v3327
          %v3329 = vrot.slane %v3320, %v3328
          %v3330 = vlaneseq
          %v3331 = vshrl.u32 %v3330, 7
          %v3332 = vsub.s32 2, %v3331
          %v3333 = vrot.slane %v3320, %v3332
          %v3334 = vlaneseq
          %v3335 = vshrl.u32 %v3334, 7
          %v3336 = vsub.s32 3, %v3335
          %v3337 = vrot.slane %v3320, %v3336
          %v3342 = vadd.f32 %v3312, %v3325
          %v3343 = vadd.f32 %v3313, %v3329
          %v3344 = vadd.f32 %v3314, %v3333
          %v3345 = vadd.f32 %v3315, %v3337
          %v3346 = vadd.f32 %v3316, %v3325
          %v3347 = vadd.f32 %v3317, %v3329
          %v3348 = vadd.f32 %v3318, %v3333
          %v3349 = vadd.f32 %v3319, %v3337
          %v3350 = vxor.u32 %v3342, 2147483648
          %v3351 = vxor.u32 %v3343, 2147483648
          %v3352 = vxor.u32 %v3344, 2147483648
          %v3353 = vxor.u32 %v3345, 2147483648
          %v3354 = vxor.u32 %v3346, 2147483648
          %v3355 = vxor.u32 %v3347, 2147483648
          %v3356 = vxor.u32 %v3348, 2147483648
          %v3357 = vxor.u32 %v3349, 2147483648
          %v3358 = vmul.f32 %v3350, 1.442695
          %v3359 = vpow.pop %v3358
          %v3360 = vmul.f32 %v3351, 1.442695
          %v3361 = vpow.pop %v3360
          %v3362 = vmul.f32 %v3352, 1.442695
          %v3363 = vpow.pop %v3362
          %v3364 = vmul.f32 %v3353, 1.442695
          %v3365 = vpow.pop %v3364
          %v3366 = vmul.f32 %v3354, 1.442695
          %v3367 = vpow.pop %v3366
          %v3368 = vmul.f32 %v3355, 1.442695
          %v3369 = vpow.pop %v3368
          %v3370 = vmul.f32 %v3356, 1.442695
          %v3371 = vpow.pop %v3370
          %v3372 = vmul.f32 %v3357, 1.442695
          %v3373 = vpow.pop %v3372
          %v3374 = vadd.f32 %v3359, 1.0
          %v3375 = vadd.f32 %v3361, 1.0
          %v3376 = vadd.f32 %v3363, 1.0
          %v3377 = vadd.f32 %v3365, 1.0
          %v3378 = vadd.f32 %v3367, 1.0
          %v3379 = vadd.f32 %v3369, 1.0
          %v3380 = vadd.f32 %v3371, 1.0
          %v3381 = vadd.f32 %v3373, 1.0
          %v3382 = vrcp.pop %v3374
          %v3383 = vmul.f32 1.0, %v3382
          %v3384 = vrcp.pop %v3375
          %v3385 = vmul.f32 1.0, %v3384
          %v3386 = vrcp.pop %v3376
          %v3387 = vmul.f32 1.0, %v3386
          %v3388 = vrcp.pop %v3377
          %v3389 = vmul.f32 1.0, %v3388
          %v3390 = vrcp.pop %v3378
          %v3391 = vmul.f32 1.0, %v3390
          %v3392 = vrcp.pop %v3379
          %v3393 = vmul.f32 1.0, %v3392
          %v3394 = vrcp.pop %v3380
          %v3395 = vmul.f32 1.0, %v3394
          %v3396 = vrcp.pop %v3381
          %v3397 = vmul.f32 1.0, %v3396
          %3398 = vst [vmem:[%s930] sm:$0xff] %v3383
          %3399 = vst [vmem:[%s930 + $0x8] sm:$0xff] %v3385
          %3400 = vst [vmem:[%s930 + $0x10] sm:$0xff] %v3387
          %3401 = vst [vmem:[%s930 + $0x18] sm:$0xff] %v3389
          %3402 = vst [vmem:[%s930 + $0x20] sm:$0xff] %v3391
          %3403 = vst [vmem:[%s930 + $0x28] sm:$0xff] %v3393
          %3404 = vst [vmem:[%s930 + $0x30] sm:$0xff] %v3395
          %3405 = vst [vmem:[%s930 + $0x38] sm:$0xff] %v3397
          %v3406 = vpack.c.bf16 %v1308, %v1304
          %v3407 = vld [vmem:[#allocation21] sm:$0xff]
          %v3408 = vld [vmem:[#allocation21 + $0x8] sm:$0xff]
          %v3409 = vld [vmem:[#allocation21 + $0x10] sm:$0xff]
          %v3410 = vld [vmem:[#allocation21 + $0x18] sm:$0xff]
          %v3411 = vld [vmem:[#allocation21 + $0x20] sm:$0xff]
          %v3412 = vld [vmem:[#allocation21 + $0x28] sm:$0xff]
          %v3413 = vld [vmem:[#allocation21 + $0x30] sm:$0xff]
          %v3414 = vld [vmem:[#allocation21 + $0x38] sm:$0xff]
          %v3415 = vld [vmem:[#allocation21 + $0x40] sm:$0xff]
          %v3416 = vld [vmem:[#allocation21 + $0x48] sm:$0xff]
          %v3417 = vld [vmem:[#allocation21 + $0x50] sm:$0xff]
          %v3418 = vld [vmem:[#allocation21 + $0x58] sm:$0xff]
          %v3419 = vld [vmem:[#allocation21 + $0x60] sm:$0xff]
          %v3420 = vld [vmem:[#allocation21 + $0x68] sm:$0xff]
          %v3421 = vld [vmem:[#allocation21 + $0x70] sm:$0xff]
          %v3422 = vld [vmem:[#allocation21 + $0x78] sm:$0xff]
          %v3423 = vld [vmem:[#allocation21 + $0x80] sm:$0xff]
          %v3424 = vld [vmem:[#allocation21 + $0x88] sm:$0xff]
          %v3425 = vld [vmem:[#allocation21 + $0x90] sm:$0xff]
          %v3426 = vld [vmem:[#allocation21 + $0x98] sm:$0xff]
          %v3427 = vld [vmem:[#allocation21 + $0xa0] sm:$0xff]
          %v3428 = vld [vmem:[#allocation21 + $0xa8] sm:$0xff]
          %v3429 = vld [vmem:[#allocation21 + $0xb0] sm:$0xff]
          %v3430 = vld [vmem:[#allocation21 + $0xb8] sm:$0xff]
          %v3431 = vld [vmem:[#allocation21 + $0xc0] sm:$0xff]
          %v3432 = vld [vmem:[#allocation21 + $0xc8] sm:$0xff]
          %v3433 = vld [vmem:[#allocation21 + $0xd0] sm:$0xff]
          %v3434 = vld [vmem:[#allocation21 + $0xd8] sm:$0xff]
          %v3435 = vld [vmem:[#allocation21 + $0xe0] sm:$0xff]
          %v3436 = vld [vmem:[#allocation21 + $0xe8] sm:$0xff]
          %v3437 = vld [vmem:[#allocation21 + $0xf0] sm:$0xff]
          %v3438 = vld [vmem:[#allocation21 + $0xf8] sm:$0xff]
          %v3439 = vld [vmem:[#allocation21 + $0x100] sm:$0xff]
          %v3440 = vld [vmem:[#allocation21 + $0x108] sm:$0xff]
          %v3441 = vld [vmem:[#allocation21 + $0x110] sm:$0xff]
          %v3442 = vld [vmem:[#allocation21 + $0x118] sm:$0xff]
          %v3443 = vld [vmem:[#allocation21 + $0x120] sm:$0xff]
          %v3444 = vld [vmem:[#allocation21 + $0x128] sm:$0xff]
          %v3445 = vld [vmem:[#allocation21 + $0x130] sm:$0xff]
          %v3446 = vld [vmem:[#allocation21 + $0x138] sm:$0xff]
          %v3447 = vld [vmem:[#allocation21 + $0x140] sm:$0xff]
          %v3448 = vld [vmem:[#allocation21 + $0x148] sm:$0xff]
          %v3449 = vld [vmem:[#allocation21 + $0x150] sm:$0xff]
          %v3450 = vld [vmem:[#allocation21 + $0x158] sm:$0xff]
          %v3451 = vld [vmem:[#allocation21 + $0x160] sm:$0xff]
          %v3452 = vld [vmem:[#allocation21 + $0x168] sm:$0xff]
          %v3453 = vld [vmem:[#allocation21 + $0x170] sm:$0xff]
          %v3454 = vld [vmem:[#allocation21 + $0x178] sm:$0xff]
          %v3455 = vld [vmem:[#allocation21 + $0x180] sm:$0xff]
          %v3456 = vld [vmem:[#allocation21 + $0x188] sm:$0xff]
          %v3457 = vld [vmem:[#allocation21 + $0x190] sm:$0xff]
          %v3458 = vld [vmem:[#allocation21 + $0x198] sm:$0xff]
          %v3459 = vld [vmem:[#allocation21 + $0x1a0] sm:$0xff]
          %v3460 = vld [vmem:[#allocation21 + $0x1a8] sm:$0xff]
          %v3461 = vld [vmem:[#allocation21 + $0x1b0] sm:$0xff]
          %v3462 = vld [vmem:[#allocation21 + $0x1b8] sm:$0xff]
          %v3463 = vld [vmem:[#allocation21 + $0x1c0] sm:$0xff]
          %v3464 = vld [vmem:[#allocation21 + $0x1c8] sm:$0xff]
          %v3465 = vld [vmem:[#allocation21 + $0x1d0] sm:$0xff]
          %v3466 = vld [vmem:[#allocation21 + $0x1d8] sm:$0xff]
          %v3467 = vld [vmem:[#allocation21 + $0x1e0] sm:$0xff]
          %v3468 = vld [vmem:[#allocation21 + $0x1e8] sm:$0xff]
          %v3469 = vld [vmem:[#allocation21 + $0x1f0] sm:$0xff]
          %v3470 = vld [vmem:[#allocation21 + $0x1f8] sm:$0xff]
          %v3471 = vld [vmem:[%s13] sm:$0xff]
          %v3473 = vlaneseq
          %v3474 = vshrl.u32 %v3473, 7
          %v3475 = vsub.s32 0, %v3474
          %v3476 = vrot.slane %v3471, %v3475
          %v3477 = vlaneseq
          %v3478 = vshrl.u32 %v3477, 7
          %v3479 = vsub.s32 1, %v3478
          %v3480 = vrot.slane %v3471, %v3479
          %v3481 = vlaneseq
          %v3482 = vshrl.u32 %v3481, 7
          %v3483 = vsub.s32 2, %v3482
          %v3484 = vrot.slane %v3471, %v3483
          %v3485 = vlaneseq
          %v3486 = vshrl.u32 %v3485, 7
          %v3487 = vsub.s32 3, %v3486
          %v3488 = vrot.slane %v3471, %v3487
          %v3489 = vlaneseq
          %v3490 = vshrl.u32 %v3489, 7
          %v3491 = vsub.s32 4, %v3490
          %v3492 = vrot.slane %v3471, %v3491
          %v3493 = vlaneseq
          %v3494 = vshrl.u32 %v3493, 7
          %v3495 = vsub.s32 5, %v3494
          %v3496 = vrot.slane %v3471, %v3495
          %v3497 = vlaneseq
          %v3498 = vshrl.u32 %v3497, 7
          %v3499 = vsub.s32 6, %v3498
          %v3500 = vrot.slane %v3471, %v3499
          %v3501 = vlaneseq
          %v3502 = vshrl.u32 %v3501, 7
          %v3503 = vsub.s32 7, %v3502
          %v3504 = vrot.slane %v3471, %v3503
          %v3577 = vunpack.c.l.b16 %v3407
          %v3578 = vunpack.c.h.b16 %v3407
          %v3579 = vunpack.c.l.b16 %v3408
          %v3580 = vunpack.c.h.b16 %v3408
          %v3581 = vunpack.c.l.b16 %v3409
          %v3582 = vunpack.c.h.b16 %v3409
          %v3583 = vunpack.c.l.b16 %v3410
          %v3584 = vunpack.c.h.b16 %v3410
          %v3585 = vunpack.c.l.b16 %v3411
          %v3586 = vunpack.c.h.b16 %v3411
          %v3587 = vunpack.c.l.b16 %v3412
          %v3588 = vunpack.c.h.b16 %v3412
          %v3589 = vunpack.c.l.b16 %v3413
          %v3590 = vunpack.c.h.b16 %v3413
          %v3591 = vunpack.c.l.b16 %v3414
          %v3592 = vunpack.c.h.b16 %v3414
          %v3593 = vunpack.c.l.b16 %v3415
          %v3594 = vunpack.c.h.b16 %v3415
          %v3595 = vunpack.c.l.b16 %v3416
          %v3596 = vunpack.c.h.b16 %v3416
          %v3597 = vunpack.c.l.b16 %v3417
          %v3598 = vunpack.c.h.b16 %v3417
          %v3599 = vunpack.c.l.b16 %v3418
          %v3600 = vunpack.c.h.b16 %v3418
          %v3601 = vunpack.c.l.b16 %v3419
          %v3602 = vunpack.c.h.b16 %v3419
          %v3603 = vunpack.c.l.b16 %v3420
          %v3604 = vunpack.c.h.b16 %v3420
          %v3605 = vunpack.c.l.b16 %v3421
          %v3606 = vunpack.c.h.b16 %v3421
          %v3607 = vunpack.c.l.b16 %v3422
          %v3608 = vunpack.c.h.b16 %v3422
          %v3609 = vunpack.c.l.b16 %v3423
          %v3610 = vunpack.c.h.b16 %v3423
          %v3611 = vunpack.c.l.b16 %v3424
          %v3612 = vunpack.c.h.b16 %v3424
          %v3613 = vunpack.c.l.b16 %v3425
          %v3614 = vunpack.c.h.b16 %v3425
          %v3615 = vunpack.c.l.b16 %v3426
          %v3616 = vunpack.c.h.b16 %v3426
          %v3617 = vunpack.c.l.b16 %v3427
          %v3618 = vunpack.c.h.b16 %v3427
          %v3619 = vunpack.c.l.b16 %v3428
          %v3620 = vunpack.c.h.b16 %v3428
          %v3621 = vunpack.c.l.b16 %v3429
          %v3622 = vunpack.c.h.b16 %v3429
          %v3623 = vunpack.c.l.b16 %v3430
          %v3624 = vunpack.c.h.b16 %v3430
          %v3625 = vunpack.c.l.b16 %v3431
          %v3626 = vunpack.c.h.b16 %v3431
          %v3627 = vunpack.c.l.b16 %v3432
          %v3628 = vunpack.c.h.b16 %v3432
          %v3629 = vunpack.c.l.b16 %v3433
          %v3630 = vunpack.c.h.b16 %v3433
          %v3631 = vunpack.c.l.b16 %v3434
          %v3632 = vunpack.c.h.b16 %v3434
          %v3633 = vunpack.c.l.b16 %v3435
          %v3634 = vunpack.c.h.b16 %v3435
          %v3635 = vunpack.c.l.b16 %v3436
          %v3636 = vunpack.c.h.b16 %v3436
          %v3637 = vunpack.c.l.b16 %v3437
          %v3638 = vunpack.c.h.b16 %v3437
          %v3639 = vunpack.c.l.b16 %v3438
          %v3640 = vunpack.c.h.b16 %v3438
          %v3641 = vunpack.c.l.b16 %v3439
          %v3642 = vunpack.c.h.b16 %v3439
          %v3643 = vunpack.c.l.b16 %v3440
          %v3644 = vunpack.c.h.b16 %v3440
          %v3645 = vunpack.c.l.b16 %v3441
          %v3646 = vunpack.c.h.b16 %v3441
          %v3647 = vunpack.c.l.b16 %v3442
          %v3648 = vunpack.c.h.b16 %v3442
          %v3649 = vunpack.c.l.b16 %v3443
          %v3650 = vunpack.c.h.b16 %v3443
          %v3651 = vunpack.c.l.b16 %v3444
          %v3652 = vunpack.c.h.b16 %v3444
          %v3653 = vunpack.c.l.b16 %v3445
          %v3654 = vunpack.c.h.b16 %v3445
          %v3655 = vunpack.c.l.b16 %v3446
          %v3656 = vunpack.c.h.b16 %v3446
          %v3657 = vunpack.c.l.b16 %v3447
          %v3658 = vunpack.c.h.b16 %v3447
          %v3659 = vunpack.c.l.b16 %v3448
          %v3660 = vunpack.c.h.b16 %v3448
          %v3661 = vunpack.c.l.b16 %v3449
          %v3662 = vunpack.c.h.b16 %v3449
          %v3663 = vunpack.c.l.b16 %v3450
          %v3664 = vunpack.c.h.b16 %v3450
          %v3665 = vunpack.c.l.b16 %v3451
          %v3666 = vunpack.c.h.b16 %v3451
          %v3667 = vunpack.c.l.b16 %v3452
          %v3668 = vunpack.c.h.b16 %v3452
          %v3669 = vunpack.c.l.b16 %v3453
          %v3670 = vunpack.c.h.b16 %v3453
          %v3671 = vunpack.c.l.b16 %v3454
          %v3672 = vunpack.c.h.b16 %v3454
          %v3673 = vunpack.c.l.b16 %v3455
          %v3674 = vunpack.c.h.b16 %v3455
          %v3675 = vunpack.c.l.b16 %v3456
          %v3676 = vunpack.c.h.b16 %v3456
          %v3677 = vunpack.c.l.b16 %v3457
          %v3678 = vunpack.c.h.b16 %v3457
          %v3679 = vunpack.c.l.b16 %v3458
          %v3680 = vunpack.c.h.b16 %v3458
          %v3681 = vunpack.c.l.b16 %v3459
          %v3682 = vunpack.c.h.b16 %v3459
          %v3683 = vunpack.c.l.b16 %v3460
          %v3684 = vunpack.c.h.b16 %v3460
          %v3685 = vunpack.c.l.b16 %v3461
          %v3686 = vunpack.c.h.b16 %v3461
          %v3687 = vunpack.c.l.b16 %v3462
          %v3688 = vunpack.c.h.b16 %v3462
          %v3689 = vunpack.c.l.b16 %v3463
          %v3690 = vunpack.c.h.b16 %v3463
          %v3691 = vunpack.c.l.b16 %v3464
          %v3692 = vunpack.c.h.b16 %v3464
          %v3693 = vunpack.c.l.b16 %v3465
          %v3694 = vunpack.c.h.b16 %v3465
          %v3695 = vunpack.c.l.b16 %v3466
          %v3696 = vunpack.c.h.b16 %v3466
          %v3697 = vunpack.c.l.b16 %v3467
          %v3698 = vunpack.c.h.b16 %v3467
          %v3699 = vunpack.c.l.b16 %v3468
          %v3700 = vunpack.c.h.b16 %v3468
          %v3701 = vunpack.c.l.b16 %v3469
          %v3702 = vunpack.c.h.b16 %v3469
          %v3703 = vunpack.c.l.b16 %v3470
          %v3704 = vunpack.c.h.b16 %v3470
          %v3705 = vpack.c.b16 %v3585, %v3577
          %v3706 = vpack.c.b16 %v3586, %v3578
          %v3707 = vpack.c.b16 %v3587, %v3579
          %v3708 = vpack.c.b16 %v3588, %v3580
          %v3709 = vpack.c.b16 %v3589, %v3581
          %v3710 = vpack.c.b16 %v3590, %v3582
          %v3711 = vpack.c.b16 %v3591, %v3583
          %v3712 = vpack.c.b16 %v3592, %v3584
          %v3713 = vpack.c.b16 %v3601, %v3593
          %v3714 = vpack.c.b16 %v3602, %v3594
          %v3715 = vpack.c.b16 %v3603, %v3595
          %v3716 = vpack.c.b16 %v3604, %v3596
          %v3717 = vpack.c.b16 %v3605, %v3597
          %v3718 = vpack.c.b16 %v3606, %v3598
          %v3719 = vpack.c.b16 %v3607, %v3599
          %v3720 = vpack.c.b16 %v3608, %v3600
          %v3721 = vpack.c.b16 %v3617, %v3609
          %v3722 = vpack.c.b16 %v3618, %v3610
          %v3723 = vpack.c.b16 %v3619, %v3611
          %v3724 = vpack.c.b16 %v3620, %v3612
          %v3725 = vpack.c.b16 %v3621, %v3613
          %v3726 = vpack.c.b16 %v3622, %v3614
          %v3727 = vpack.c.b16 %v3623, %v3615
          %v3728 = vpack.c.b16 %v3624, %v3616
          %v3729 = vpack.c.b16 %v3633, %v3625
          %v3730 = vpack.c.b16 %v3634, %v3626
          %v3731 = vpack.c.b16 %v3635, %v3627
          %v3732 = vpack.c.b16 %v3636, %v3628
          %v3733 = vpack.c.b16 %v3637, %v3629
          %v3734 = vpack.c.b16 %v3638, %v3630
          %v3735 = vpack.c.b16 %v3639, %v3631
          %v3736 = vpack.c.b16 %v3640, %v3632
          %v3737 = vpack.c.b16 %v3649, %v3641
          %v3738 = vpack.c.b16 %v3650, %v3642
          %v3739 = vpack.c.b16 %v3651, %v3643
          %v3740 = vpack.c.b16 %v3652, %v3644
          %v3741 = vpack.c.b16 %v3653, %v3645
          %v3742 = vpack.c.b16 %v3654, %v3646
          %v3743 = vpack.c.b16 %v3655, %v3647
          %v3744 = vpack.c.b16 %v3656, %v3648
          %v3745 = vpack.c.b16 %v3665, %v3657
          %v3746 = vpack.c.b16 %v3666, %v3658
          %v3747 = vpack.c.b16 %v3667, %v3659
          %v3748 = vpack.c.b16 %v3668, %v3660
          %v3749 = vpack.c.b16 %v3669, %v3661
          %v3750 = vpack.c.b16 %v3670, %v3662
          %v3751 = vpack.c.b16 %v3671, %v3663
          %v3752 = vpack.c.b16 %v3672, %v3664
          %v3753 = vpack.c.b16 %v3681, %v3673
          %v3754 = vpack.c.b16 %v3682, %v3674
          %v3755 = vpack.c.b16 %v3683, %v3675
          %v3756 = vpack.c.b16 %v3684, %v3676
          %v3757 = vpack.c.b16 %v3685, %v3677
          %v3758 = vpack.c.b16 %v3686, %v3678
          %v3759 = vpack.c.b16 %v3687, %v3679
          %v3760 = vpack.c.b16 %v3688, %v3680
          %v3761 = vpack.c.b16 %v3697, %v3689
          %v3762 = vpack.c.b16 %v3698, %v3690
          %v3763 = vpack.c.b16 %v3699, %v3691
          %v3764 = vpack.c.b16 %v3700, %v3692
          %v3765 = vpack.c.b16 %v3701, %v3693
          %v3766 = vpack.c.b16 %v3702, %v3694
          %v3767 = vpack.c.b16 %v3703, %v3695
          %v3768 = vpack.c.b16 %v3704, %v3696
          %3833 = vmatprep.subr.bf16.mxu0 %v3762
          %3834 = vmatpush1.bf16.msra.mxu0 %v3761
          %3835 = vmatprep.subr.bf16.mxu0 %v3754
          %3836 = vmatpush1.bf16.msra.mxu0 %v3753
          %3837 = vmatprep.subr.bf16.mxu0 %v3746
          %3838 = vmatpush1.bf16.msra.mxu0 %v3745
          %3839 = vmatprep.subr.bf16.mxu0 %v3738
          %3840 = vmatpush1.bf16.msra.mxu0 %v3737
          %3841 = vmatprep.subr.bf16.mxu0 %v3730
          %3842 = vmatpush1.bf16.msra.mxu0 %v3729
          %3843 = vmatprep.subr.bf16.mxu0 %v3722
          %3844 = vmatpush1.bf16.msra.mxu0 %v3721
          %3845 = vmatprep.subr.bf16.mxu0 %v3714
          %3846 = vmatpush1.bf16.msra.mxu0 %v3713
          %3847 = vmatprep.subr.bf16.mxu0 %v3706
          %3848 = vmatpush1.bf16.msra.mxu0 %v3705
          %3849 = vmatprep.subr.bf16.mxu0 0
          %3850 = vmatpush2.bf16.msra.mxu0 0
          %3851 = vmatprep.subr.bf16.mxu0 0
          %3852 = vmatpush2.bf16.msra.mxu0 0
          %3853 = vmatprep.subr.bf16.mxu0 0
          %3854 = vmatpush2.bf16.msra.mxu0 0
          %3855 = vmatprep.subr.bf16.mxu0 0
          %3856 = vmatpush2.bf16.msra.mxu0 0
          %3857 = vmatprep.subr.bf16.mxu0 0
          %3858 = vmatpush2.bf16.msra.mxu0 0
          %3859 = vmatprep.subr.bf16.mxu0 0
          %3860 = vmatpush2.bf16.msra.mxu0 0
          %3861 = vmatprep.subr.bf16.mxu0 0
          %3862 = vmatpush2.bf16.msra.mxu0 0
          %3863 = vmatprep.subr.bf16.mxu0 0
          %3864 = vmatpush2.bf16.msra.mxu0 0
          %3865 = vmatprep.mubr.bf16.mxu0 0
          %3866 = vmatmul.mubr.bf16.gmra.mxu0 %v3406
          %v3867 = vpop.f32.mrf.mxu0
          %v3868 = vadd.f32 %v3476, %v3867
          %v3869 = vpop.f32.mrf.mxu0
          %v3870 = vadd.f32 %v3480, %v3869
          %v3871 = vpop.f32.mrf.mxu0
          %v3872 = vadd.f32 %v3476, %v3871
          %v3873 = vpop.f32.mrf.mxu0
          %v3874 = vadd.f32 %v3480, %v3873
          %3875 = vdwg.mxu0
          %3876 = vmatprep.subr.bf16.mxu0 %v3764
          %3877 = vmatpush1.bf16.msra.mxu0 %v3763
          %3878 = vmatprep.subr.bf16.mxu0 %v3756
          %3879 = vmatpush1.bf16.msra.mxu0 %v3755
          %3880 = vmatprep.subr.bf16.mxu0 %v3748
          %3881 = vmatpush1.bf16.msra.mxu0 %v3747
          %3882 = vmatprep.subr.bf16.mxu0 %v3740
          %3883 = vmatpush1.bf16.msra.mxu0 %v3739
          %3884 = vmatprep.subr.bf16.mxu0 %v3732
          %3885 = vmatpush1.bf16.msra.mxu0 %v3731
          %3886 = vmatprep.subr.bf16.mxu0 %v3724
          %3887 = vmatpush1.bf16.msra.mxu0 %v3723
          %3888 = vmatprep.subr.bf16.mxu0 %v3716
          %3889 = vmatpush1.bf16.msra.mxu0 %v3715
          %3890 = vmatprep.subr.bf16.mxu0 %v3708
          %3891 = vmatpush1.bf16.msra.mxu0 %v3707
          %3892 = vmatprep.subr.bf16.mxu0 0
          %3893 = vmatpush2.bf16.msra.mxu0 0
          %3894 = vmatprep.subr.bf16.mxu0 0
          %3895 = vmatpush2.bf16.msra.mxu0 0
          %3896 = vmatprep.subr.bf16.mxu0 0
          %3897 = vmatpush2.bf16.msra.mxu0 0
          %3898 = vmatprep.subr.bf16.mxu0 0
          %3899 = vmatpush2.bf16.msra.mxu0 0
          %3900 = vmatprep.subr.bf16.mxu0 0
          %3901 = vmatpush2.bf16.msra.mxu0 0
          %3902 = vmatprep.subr.bf16.mxu0 0
          %3903 = vmatpush2.bf16.msra.mxu0 0
          %3904 = vmatprep.subr.bf16.mxu0 0
          %3905 = vmatpush2.bf16.msra.mxu0 0
          %3906 = vmatprep.subr.bf16.mxu0 0
          %3907 = vmatpush2.bf16.msra.mxu0 0
          %3908 = vmatprep.mubr.bf16.mxu0 0
          %3909 = vmatmul.mubr.bf16.gmra.mxu0 %v3406
          %v3910 = vpop.f32.mrf.mxu0
          %v3911 = vadd.f32 %v3484, %v3910
          %v3912 = vpop.f32.mrf.mxu0
          %v3913 = vadd.f32 %v3488, %v3912
          %v3914 = vpop.f32.mrf.mxu0
          %v3915 = vadd.f32 %v3484, %v3914
          %v3916 = vpop.f32.mrf.mxu0
          %v3917 = vadd.f32 %v3488, %v3916
          %3918 = vdwg.mxu0
          %3919 = vmatprep.subr.bf16.mxu0 %v3766
          %3920 = vmatpush1.bf16.msra.mxu0 %v3765
          %3921 = vmatprep.subr.bf16.mxu0 %v3758
          %3922 = vmatpush1.bf16.msra.mxu0 %v3757
          %3923 = vmatprep.subr.bf16.mxu0 %v3750
          %3924 = vmatpush1.bf16.msra.mxu0 %v3749
          %3925 = vmatprep.subr.bf16.mxu0 %v3742
          %3926 = vmatpush1.bf16.msra.mxu0 %v3741
          %3927 = vmatprep.subr.bf16.mxu0 %v3734
          %3928 = vmatpush1.bf16.msra.mxu0 %v3733
          %3929 = vmatprep.subr.bf16.mxu0 %v3726
          %3930 = vmatpush1.bf16.msra.mxu0 %v3725
          %3931 = vmatprep.subr.bf16.mxu0 %v3718
          %3932 = vmatpush1.bf16.msra.mxu0 %v3717
          %3933 = vmatprep.subr.bf16.mxu0 %v3710
          %3934 = vmatpush1.bf16.msra.mxu0 %v3709
          %3935 = vmatprep.subr.bf16.mxu0 0
          %3936 = vmatpush2.bf16.msra.mxu0 0
          %3937 = vmatprep.subr.bf16.mxu0 0
          %3938 = vmatpush2.bf16.msra.mxu0 0
          %3939 = vmatprep.subr.bf16.mxu0 0
          %3940 = vmatpush2.bf16.msra.mxu0 0
          %3941 = vmatprep.subr.bf16.mxu0 0
          %3942 = vmatpush2.bf16.msra.mxu0 0
          %3943 = vmatprep.subr.bf16.mxu0 0
          %3944 = vmatpush2.bf16.msra.mxu0 0
          %3945 = vmatprep.subr.bf16.mxu0 0
          %3946 = vmatpush2.bf16.msra.mxu0 0
          %3947 = vmatprep.subr.bf16.mxu0 0
          %3948 = vmatpush2.bf16.msra.mxu0 0
          %3949 = vmatprep.subr.bf16.mxu0 0
          %3950 = vmatpush2.bf16.msra.mxu0 0
          %3951 = vmatprep.mubr.bf16.mxu0 0
          %3952 = vmatmul.mubr.bf16.gmra.mxu0 %v3406
          %v3953 = vpop.f32.mrf.mxu0
          %v3954 = vadd.f32 %v3492, %v3953
          %v3955 = vpop.f32.mrf.mxu0
          %v3956 = vadd.f32 %v3496, %v3955
          %v3957 = vpop.f32.mrf.mxu0
          %v3958 = vadd.f32 %v3492, %v3957
          %v3959 = vpop.f32.mrf.mxu0
          %v3960 = vadd.f32 %v3496, %v3959
          %3961 = vdwg.mxu0
          %3962 = vmatprep.subr.bf16.mxu0 %v3768
          %3963 = vmatpush1.bf16.msra.mxu0 %v3767
          %3964 = vmatprep.subr.bf16.mxu0 %v3760
          %3965 = vmatpush1.bf16.msra.mxu0 %v3759
          %3966 = vmatprep.subr.bf16.mxu0 %v3752
          %3967 = vmatpush1.bf16.msra.mxu0 %v3751
          %3968 = vmatprep.subr.bf16.mxu0 %v3744
          %3969 = vmatpush1.bf16.msra.mxu0 %v3743
          %3970 = vmatprep.subr.bf16.mxu0 %v3736
          %3971 = vmatpush1.bf16.msra.mxu0 %v3735
          %3972 = vmatprep.subr.bf16.mxu0 %v3728
          %3973 = vmatpush1.bf16.msra.mxu0 %v3727
          %3974 = vmatprep.subr.bf16.mxu0 %v3720
          %3975 = vmatpush1.bf16.msra.mxu0 %v3719
          %3976 = vmatprep.subr.bf16.mxu0 %v3712
          %3977 = vmatpush1.bf16.msra.mxu0 %v3711
          %3978 = vmatprep.subr.bf16.mxu0 0
          %3979 = vmatpush2.bf16.msra.mxu0 0
          %3980 = vmatprep.subr.bf16.mxu0 0
          %3981 = vmatpush2.bf16.msra.mxu0 0
          %3982 = vmatprep.subr.bf16.mxu0 0
          %3983 = vmatpush2.bf16.msra.mxu0 0
          %3984 = vmatprep.subr.bf16.mxu0 0
          %3985 = vmatpush2.bf16.msra.mxu0 0
          %3986 = vmatprep.subr.bf16.mxu0 0
          %3987 = vmatpush2.bf16.msra.mxu0 0
          %3988 = vmatprep.subr.bf16.mxu0 0
          %3989 = vmatpush2.bf16.msra.mxu0 0
          %3990 = vmatprep.subr.bf16.mxu0 0
          %3991 = vmatpush2.bf16.msra.mxu0 0
          %3992 = vmatprep.subr.bf16.mxu0 0
          %3993 = vmatpush2.bf16.msra.mxu0 0
          %3994 = vmatprep.mubr.bf16.mxu0 0
          %3995 = vmatmul.mubr.bf16.gmra.mxu0 %v3406
          %v3996 = vpop.f32.mrf.mxu0
          %v3997 = vadd.f32 %v3500, %v3996
          %v3998 = vpop.f32.mrf.mxu0
          %v3999 = vadd.f32 %v3504, %v3998
          %v4000 = vpop.f32.mrf.mxu0
          %v4001 = vadd.f32 %v3500, %v4000
          %v4002 = vpop.f32.mrf.mxu0
          %v4003 = vadd.f32 %v3504, %v4002
          %4004 = vdwg.mxu0
          %v4005 = vld [vmem:[%s14] sm:$0xff]
          %v4007 = vlaneseq
          %v4008 = vshrl.u32 %v4007, 7
          %v4009 = vsub.s32 0, %v4008
          %v4010 = vrot.slane %v4005, %v4009
          %v4011 = vlaneseq
          %v4012 = vshrl.u32 %v4011, 7
          %v4013 = vsub.s32 1, %v4012
          %v4014 = vrot.slane %v4005, %v4013
          %v4015 = vlaneseq
          %v4016 = vshrl.u32 %v4015, 7
          %v4017 = vsub.s32 2, %v4016
          %v4018 = vrot.slane %v4005, %v4017
          %v4019 = vlaneseq
          %v4020 = vshrl.u32 %v4019, 7
          %v4021 = vsub.s32 3, %v4020
          %v4022 = vrot.slane %v4005, %v4021
          %v4023 = vlaneseq
          %v4024 = vshrl.u32 %v4023, 7
          %v4025 = vsub.s32 4, %v4024
          %v4026 = vrot.slane %v4005, %v4025
          %v4027 = vlaneseq
          %v4028 = vshrl.u32 %v4027, 7
          %v4029 = vsub.s32 5, %v4028
          %v4030 = vrot.slane %v4005, %v4029
          %v4031 = vlaneseq
          %v4032 = vshrl.u32 %v4031, 7
          %v4033 = vsub.s32 6, %v4032
          %v4034 = vrot.slane %v4005, %v4033
          %v4035 = vlaneseq
          %v4036 = vshrl.u32 %v4035, 7
          %v4037 = vsub.s32 7, %v4036
          %v4038 = vrot.slane %v4005, %v4037
          %v4047 = vmul.f32 %v3868, %v4010
          %v4048 = vmul.f32 %v3870, %v4014
          %v4049 = vmul.f32 %v3911, %v4018
          %v4050 = vmul.f32 %v3913, %v4022
          %v4051 = vmul.f32 %v3954, %v4026
          %v4052 = vmul.f32 %v3956, %v4030
          %v4053 = vmul.f32 %v3997, %v4034
          %v4054 = vmul.f32 %v3999, %v4038
          %v4055 = vmul.f32 %v3872, %v4010
          %v4056 = vmul.f32 %v3874, %v4014
          %v4057 = vmul.f32 %v3915, %v4018
          %v4058 = vmul.f32 %v3917, %v4022
          %v4059 = vmul.f32 %v3958, %v4026
          %v4060 = vmul.f32 %v3960, %v4030
          %v4061 = vmul.f32 %v4001, %v4034
          %v4062 = vmul.f32 %v4003, %v4038
          %v4063 = vld [vmem:[%s15] sm:$0xff]
          %v4065 = vlaneseq
          %v4066 = vshrl.u32 %v4065, 7
          %v4067 = vsub.s32 0, %v4066
          %v4068 = vrot.slane %v4063, %v4067
          %v4069 = vlaneseq
          %v4070 = vshrl.u32 %v4069, 7
          %v4071 = vsub.s32 1, %v4070
          %v4072 = vrot.slane %v4063, %v4071
          %v4073 = vlaneseq
          %v4074 = vshrl.u32 %v4073, 7
          %v4075 = vsub.s32 2, %v4074
          %v4076 = vrot.slane %v4063, %v4075
          %v4077 = vlaneseq
          %v4078 = vshrl.u32 %v4077, 7
          %v4079 = vsub.s32 3, %v4078
          %v4080 = vrot.slane %v4063, %v4079
          %v4081 = vlaneseq
          %v4082 = vshrl.u32 %v4081, 7
          %v4083 = vsub.s32 4, %v4082
          %v4084 = vrot.slane %v4063, %v4083
          %v4085 = vlaneseq
          %v4086 = vshrl.u32 %v4085, 7
          %v4087 = vsub.s32 5, %v4086
          %v4088 = vrot.slane %v4063, %v4087
          %v4089 = vlaneseq
          %v4090 = vshrl.u32 %v4089, 7
          %v4091 = vsub.s32 6, %v4090
          %v4092 = vrot.slane %v4063, %v4091
          %v4093 = vlaneseq
          %v4094 = vshrl.u32 %v4093, 7
          %v4095 = vsub.s32 7, %v4094
          %v4096 = vrot.slane %v4063, %v4095
          %v4105 = vadd.f32 %v4047, %v4068
          %v4106 = vadd.f32 %v4048, %v4072
          %v4107 = vadd.f32 %v4049, %v4076
          %v4108 = vadd.f32 %v4050, %v4080
          %v4109 = vadd.f32 %v4051, %v4084
          %v4110 = vadd.f32 %v4052, %v4088
          %v4111 = vadd.f32 %v4053, %v4092
          %v4112 = vadd.f32 %v4054, %v4096
          %v4113 = vadd.f32 %v4055, %v4068
          %v4114 = vadd.f32 %v4056, %v4072
          %v4115 = vadd.f32 %v4057, %v4076
          %v4116 = vadd.f32 %v4058, %v4080
          %v4117 = vadd.f32 %v4059, %v4084
          %v4118 = vadd.f32 %v4060, %v4088
          %v4119 = vadd.f32 %v4061, %v4092
          %v4120 = vadd.f32 %v4062, %v4096
          %v4121 = vxor.u32 %v4105, 2147483648
          %v4122 = vxor.u32 %v4106, 2147483648
          %v4123 = vxor.u32 %v4107, 2147483648
          %v4124 = vxor.u32 %v4108, 2147483648
          %v4125 = vxor.u32 %v4109, 2147483648
          %v4126 = vxor.u32 %v4110, 2147483648
          %v4127 = vxor.u32 %v4111, 2147483648
          %v4128 = vxor.u32 %v4112, 2147483648
          %v4129 = vxor.u32 %v4113, 2147483648
          %v4130 = vxor.u32 %v4114, 2147483648
          %v4131 = vxor.u32 %v4115, 2147483648
          %v4132 = vxor.u32 %v4116, 2147483648
          %v4133 = vxor.u32 %v4117, 2147483648
          %v4134 = vxor.u32 %v4118, 2147483648
          %v4135 = vxor.u32 %v4119, 2147483648
          %v4136 = vxor.u32 %v4120, 2147483648
          %v4137 = vmul.f32 %v4121, 1.442695
          %v4138 = vpow.pop %v4137
          %v4139 = vmul.f32 %v4122, 1.442695
          %v4140 = vpow.pop %v4139
          %v4141 = vmul.f32 %v4123, 1.442695
          %v4142 = vpow.pop %v4141
          %v4143 = vmul.f32 %v4124, 1.442695
          %v4144 = vpow.pop %v4143
          %v4145 = vmul.f32 %v4125, 1.442695
          %v4146 = vpow.pop %v4145
          %v4147 = vmul.f32 %v4126, 1.442695
          %v4148 = vpow.pop %v4147
          %v4149 = vmul.f32 %v4127, 1.442695
          %v4150 = vpow.pop %v4149
          %v4151 = vmul.f32 %v4128, 1.442695
          %v4152 = vpow.pop %v4151
          %v4153 = vmul.f32 %v4129, 1.442695
          %v4154 = vpow.pop %v4153
          %v4155 = vmul.f32 %v4130, 1.442695
          %v4156 = vpow.pop %v4155
          %v4157 = vmul.f32 %v4131, 1.442695
          %v4158 = vpow.pop %v4157
          %v4159 = vmul.f32 %v4132, 1.442695
          %v4160 = vpow.pop %v4159
          %v4161 = vmul.f32 %v4133, 1.442695
          %v4162 = vpow.pop %v4161
          %v4163 = vmul.f32 %v4134, 1.442695
          %v4164 = vpow.pop %v4163
          %v4165 = vmul.f32 %v4135, 1.442695
          %v4166 = vpow.pop %v4165
          %v4167 = vmul.f32 %v4136, 1.442695
          %v4168 = vpow.pop %v4167
          %v4169 = vadd.f32 %v4138, 1.0
          %v4170 = vadd.f32 %v4140, 1.0
          %v4171 = vadd.f32 %v4142, 1.0
          %v4172 = vadd.f32 %v4144, 1.0
          %v4173 = vadd.f32 %v4146, 1.0
          %v4174 = vadd.f32 %v4148, 1.0
          %v4175 = vadd.f32 %v4150, 1.0
          %v4176 = vadd.f32 %v4152, 1.0
          %v4177 = vadd.f32 %v4154, 1.0
          %v4178 = vadd.f32 %v4156, 1.0
          %v4179 = vadd.f32 %v4158, 1.0
          %v4180 = vadd.f32 %v4160, 1.0
          %v4181 = vadd.f32 %v4162, 1.0
          %v4182 = vadd.f32 %v4164, 1.0
          %v4183 = vadd.f32 %v4166, 1.0
          %v4184 = vadd.f32 %v4168, 1.0
          %v4185 = vrcp.pop %v4169
          %v4186 = vmul.f32 1.0, %v4185
          %v4187 = vrcp.pop %v4170
          %v4188 = vmul.f32 1.0, %v4187
          %v4189 = vrcp.pop %v4171
          %v4190 = vmul.f32 1.0, %v4189
          %v4191 = vrcp.pop %v4172
          %v4192 = vmul.f32 1.0, %v4191
          %v4193 = vrcp.pop %v4173
          %v4194 = vmul.f32 1.0, %v4193
          %v4195 = vrcp.pop %v4174
          %v4196 = vmul.f32 1.0, %v4195
          %v4197 = vrcp.pop %v4175
          %v4198 = vmul.f32 1.0, %v4197
          %v4199 = vrcp.pop %v4176
          %v4200 = vmul.f32 1.0, %v4199
          %v4201 = vrcp.pop %v4177
          %v4202 = vmul.f32 1.0, %v4201
          %v4203 = vrcp.pop %v4178
          %v4204 = vmul.f32 1.0, %v4203
          %v4205 = vrcp.pop %v4179
          %v4206 = vmul.f32 1.0, %v4205
          %v4207 = vrcp.pop %v4180
          %v4208 = vmul.f32 1.0, %v4207
          %v4209 = vrcp.pop %v4181
          %v4210 = vmul.f32 1.0, %v4209
          %v4211 = vrcp.pop %v4182
          %v4212 = vmul.f32 1.0, %v4211
          %v4213 = vrcp.pop %v4183
          %v4214 = vmul.f32 1.0, %v4213
          %v4215 = vrcp.pop %v4184
          %v4216 = vmul.f32 1.0, %v4215
          %4217 = vst [vmem:[%s937] sm:$0xff] %v4186
          %4218 = vst [vmem:[%s937 + $0x8] sm:$0xff] %v4188
          %4219 = vst [vmem:[%s937 + $0x10] sm:$0xff] %v4190
          %4220 = vst [vmem:[%s937 + $0x18] sm:$0xff] %v4192
          %4221 = vst [vmem:[%s937 + $0x20] sm:$0xff] %v4194
          %4222 = vst [vmem:[%s937 + $0x28] sm:$0xff] %v4196
          %4223 = vst [vmem:[%s937 + $0x30] sm:$0xff] %v4198
          %4224 = vst [vmem:[%s937 + $0x38] sm:$0xff] %v4200
          %4225 = vst [vmem:[%s937 + $0x40] sm:$0xff] %v4202
          %4226 = vst [vmem:[%s937 + $0x48] sm:$0xff] %v4204
          %4227 = vst [vmem:[%s937 + $0x50] sm:$0xff] %v4206
          %4228 = vst [vmem:[%s937 + $0x58] sm:$0xff] %v4208
          %4229 = vst [vmem:[%s937 + $0x60] sm:$0xff] %v4210
          %4230 = vst [vmem:[%s937 + $0x68] sm:$0xff] %v4212
          %4231 = vst [vmem:[%s937 + $0x70] sm:$0xff] %v4214
          %4232 = vst [vmem:[%s937 + $0x78] sm:$0xff] %v4216
        $region144: #{tpu_custom_call.1} parent=83 // pred_fallthru
          _
        %s4233 = sand.u32 %s428, 1
        %s4234 = scalar_lea.sflag [#allocation5], %s4233
        %s4235 = sand.u32 %s428, 1
        %s4236 = scalar_lea.vmem [#allocation23], %s4235
        %s4237 = sand.u32 %s55, 1
        %s4238 = scalar_lea.sflag [#allocation25], %s4237
        %s4239 = sand.u32 %s454, 1
        %s4240 = smul.addr %s4239, 16
        %s4241 = scalar_lea.vmem [#allocation24], %s4240
        %s4242 = sand.u32 %s55, 1
        %s4243 = scalar_lea.sflag [#allocation25], %s4242
        %s4244 = sand.u32 %s480, 1
        %s4245 = smul.addr %s4244, 16
        %s4246 = scalar_lea.vmem [#allocation26], %s4245
        %s4247 = sand.u32 %s55, 1
        %s4248 = scalar_lea.sflag [#allocation28], %s4247
        %s4249 = sand.u32 %s506, 1
        %s4250 = scalar_lea.vmem [#allocation27], %s4249
        %s4251 = sand.u32 %s55, 1
        %s4252 = scalar_lea.sflag [#allocation28], %s4251
        %s4253 = sand.u32 %s532, 1
        %s4254 = scalar_lea.vmem [#allocation29], %s4253
        %s4255 = sand.u32 %s55, 1
        %s4256 = scalar_lea.sflag [#allocation31], %s4255
        %s4257 = sand.u32 %s558, 1
        %s4258 = smul.addr %s4257, 64
        %s4259 = scalar_lea.vmem [#allocation30], %s4258
        %s4260 = sand.u32 %s55, 1
        %s4261 = scalar_lea.sflag [#allocation31], %s4260
        %s4262 = sand.u32 %s584, 1
        %s4263 = smul.addr %s4262, 128
        %s4264 = scalar_lea.vmem [#allocation32], %s4263
        // Predicated region
        $region145: #{tpu_custom_call.1} parent=83 // pred_check
          %p4265 = pneg %p438
        $region146: #{tpu_custom_call.1} parent=83 // pred_check_branch
          %4267 = sbr.rel (%p4265) target = $region148
        $region147: #{tpu_custom_call.1} parent=83 // pred_region
          %s4269 = ssub.s32 16, 16
          %4270 = vsyncadd %s4234, %s4269
          %s4271 = smul.addr %s59, 16
          %s4272 = scalar_lea.hbm %s16, %s4271
          %s4274 = sshll.u32 %s4236, 4
          %s4275 = int_to_ptr.vmem [resolvable:$true] %s4274
          %4277 = dma.vmem_to_hbm [thread:$0]  %s4275, 16, %s4272, %s4234
        $region148: #{tpu_custom_call.1} parent=83 // pred_fallthru
          _
        // Predicated region
        $region149: #{tpu_custom_call.1} parent=83 // pred_check
          %p4278 = pneg %p464
        $region150: #{tpu_custom_call.1} parent=83 // pred_check_branch
          %4280 = sbr.rel (%p4278) target = $region152
        $region151: #{tpu_custom_call.1} parent=83 // pred_region
          %s4282 = ssub.s32 256, 256
          %4283 = vsyncadd %s4238, %s4282
          %s4284 = smul.addr %s59, 2
          %s4285 = smul.addr %s4284, 128
          %s4286 = scalar_lea.hbm %s17, %s4285
          %s4287 = sshll.u32 %s4241, 4
          %s4288 = int_to_ptr.vmem [resolvable:$true] %s4287
          %4293 = dma.vmem_to_hbm [thread:$0]  %s4288, 256, %s4286, %s4238, 128, 128, 8
        $region152: #{tpu_custom_call.1} parent=83 // pred_fallthru
          _
        // Predicated region
        $region153: #{tpu_custom_call.1} parent=83 // pred_check
          %p4294 = pneg %p490
        $region154: #{tpu_custom_call.1} parent=83 // pred_check_branch
          %4296 = sbr.rel (%p4294) target = $region156
        $region155: #{tpu_custom_call.1} parent=83 // pred_region
          %s4298 = ssub.s32 256, 256
          %4299 = vsyncadd %s4243, %s4298
          %s4300 = smul.addr %s59, 2
          %s4301 = smul.addr %s4300, 128
          %s4302 = scalar_lea.hbm %s18, %s4301
          %s4303 = sshll.u32 %s4246, 4
          %s4304 = int_to_ptr.vmem [resolvable:$true] %s4303
          %4309 = dma.vmem_to_hbm [thread:$0]  %s4304, 256, %s4302, %s4243, 128, 128, 8
        $region156: #{tpu_custom_call.1} parent=83 // pred_fallthru
          _
        // Predicated region
        $region157: #{tpu_custom_call.1} parent=83 // pred_check
          %p4310 = pneg %p516
        $region158: #{tpu_custom_call.1} parent=83 // pred_check_branch
          %4312 = sbr.rel (%p4310) target = $region160
        $region159: #{tpu_custom_call.1} parent=83 // pred_region
          %s4314 = ssub.s32 16, 16
          %4315 = vsyncadd %s4248, %s4314
          %s4316 = smul.addr %s59, 16
          %s4317 = scalar_lea.hbm %s19, %s4316
          %s4319 = sshll.u32 %s4250, 4
          %s4320 = int_to_ptr.vmem [resolvable:$true] %s4319
          %4322 = dma.vmem_to_hbm [thread:$0]  %s4320, 16, %s4317, %s4248
        $region160: #{tpu_custom_call.1} parent=83 // pred_fallthru
          _
        // Predicated region
        $region161: #{tpu_custom_call.1} parent=83 // pred_check
          %p4323 = pneg %p542
        $region162: #{tpu_custom_call.1} parent=83 // pred_check_branch
          %4325 = sbr.rel (%p4323) target = $region164
        $region163: #{tpu_custom_call.1} parent=83 // pred_region
          %s4327 = ssub.s32 16, 16
          %4328 = vsyncadd %s4252, %s4327
          %s4329 = smul.addr %s59, 16
          %s4330 = scalar_lea.hbm %s20, %s4329
          %s4332 = sshll.u32 %s4254, 4
          %s4333 = int_to_ptr.vmem [resolvable:$true] %s4332
          %4335 = dma.vmem_to_hbm [thread:$0]  %s4333, 16, %s4330, %s4252
        $region164: #{tpu_custom_call.1} parent=83 // pred_fallthru
          _
        // Predicated region
        $region165: #{tpu_custom_call.1} parent=83 // pred_check
          %p4336 = pneg %p568
        $region166: #{tpu_custom_call.1} parent=83 // pred_check_branch
          %4338 = sbr.rel (%p4336) target = $region168
        $region167: #{tpu_custom_call.1} parent=83 // pred_region
          %s4340 = ssub.s32 1024, 1024
          %4341 = vsyncadd %s4256, %s4340
          %s4342 = smul.addr %s59, 8
          %s4343 = smul.addr %s4342, 128
          %s4344 = scalar_lea.hbm %s21, %s4343
          %s4345 = sshll.u32 %s4259, 4
          %s4346 = int_to_ptr.vmem [resolvable:$true] %s4345
          %4351 = dma.vmem_to_hbm [thread:$0]  %s4346, 1024, %s4344, %s4256, 512, 512, 32
        $region168: #{tpu_custom_call.1} parent=83 // pred_fallthru
          _
        // Predicated region
        $region169: #{tpu_custom_call.1} parent=83 // pred_check
          %p4352 = pneg %p594
        $region170: #{tpu_custom_call.1} parent=83 // pred_check_branch
          %4354 = sbr.rel (%p4352) target = $region172
        $region171: #{tpu_custom_call.1} parent=83 // pred_region
          %s4356 = ssub.s32 2048, 2048
          %4357 = vsyncadd %s4261, %s4356
          %s4358 = smul.addr %s59, 16
          %s4359 = smul.addr %s4358, 128
          %s4360 = scalar_lea.hbm %s22, %s4359
          %s4361 = sshll.u32 %s4264, 4
          %s4362 = int_to_ptr.vmem [resolvable:$true] %s4361
          %4367 = dma.vmem_to_hbm [thread:$0]  %s4362, 2048, %s4360, %s4261, 1024, 1024, 64
        $region172: #{tpu_custom_call.1} parent=83 // pred_fallthru
          _
      $region84: #{tpu_custom_call.1} parent=5 // pred_fallthru
        _
      %p4368 = scmp.le.s32.totalorder 2, %s50
      // Predicated region
      $region173: #{tpu_custom_call.1} parent=5 // pred_check
        %p4369 = pneg %p4368
      $region174: #{tpu_custom_call.1} parent=5 // pred_check_branch
        %4371 = sbr.rel (%p4369) target = $region176
      $region175: #{tpu_custom_call.1} parent=5 // pred_region
        %s4372 = ssub.s32 %s50, 2
        // Predicated region
        $region177: #{tpu_custom_call.1} parent=175 // pred_check
          %p4373 = pneg %p444
        $region178: #{tpu_custom_call.1} parent=175 // pred_check_branch
          %4375 = sbr.rel (%p4373) target = $region180
        $region179: #{tpu_custom_call.1} parent=175 // pred_region
          %s4376 = sand.u32 %s429, 1
          %s4377 = scalar_lea.sflag [#allocation5], %s4376
          %s4378 = sand.u32 %s429, 1
          %s4379 = scalar_lea.vmem [#allocation23], %s4378
          %4380 = dma.done %s4377, 16
        $region180: #{tpu_custom_call.1} parent=175 // pred_fallthru
          _
        // Predicated region
        $region181: #{tpu_custom_call.1} parent=175 // pred_check
          %p4381 = pneg %p470
        $region182: #{tpu_custom_call.1} parent=175 // pred_check_branch
          %4383 = sbr.rel (%p4381) target = $region184
        $region183: #{tpu_custom_call.1} parent=175 // pred_region
          %s4384 = sand.u32 %s56, 1
          %s4385 = scalar_lea.sflag [#allocation25], %s4384
          %s4386 = sand.u32 %s455, 1
          %s4387 = smul.addr %s4386, 16
          %s4388 = scalar_lea.vmem [#allocation24], %s4387
          %4389 = dma.done %s4385, 256
        $region184: #{tpu_custom_call.1} parent=175 // pred_fallthru
          _
        // Predicated region
        $region185: #{tpu_custom_call.1} parent=175 // pred_check
          %p4390 = pneg %p496
        $region186: #{tpu_custom_call.1} parent=175 // pred_check_branch
          %4392 = sbr.rel (%p4390) target = $region188
        $region187: #{tpu_custom_call.1} parent=175 // pred_region
          %s4393 = sand.u32 %s56, 1
          %s4394 = scalar_lea.sflag [#allocation25], %s4393
          %s4395 = sand.u32 %s481, 1
          %s4396 = smul.addr %s4395, 16
          %s4397 = scalar_lea.vmem [#allocation26], %s4396
          %4398 = dma.done %s4394, 256
        $region188: #{tpu_custom_call.1} parent=175 // pred_fallthru
          _
        // Predicated region
        $region189: #{tpu_custom_call.1} parent=175 // pred_check
          %p4399 = pneg %p522
        $region190: #{tpu_custom_call.1} parent=175 // pred_check_branch
          %4401 = sbr.rel (%p4399) target = $region192
        $region191: #{tpu_custom_call.1} parent=175 // pred_region
          %s4402 = sand.u32 %s56, 1
          %s4403 = scalar_lea.sflag [#allocation28], %s4402
          %s4404 = sand.u32 %s507, 1
          %s4405 = scalar_lea.vmem [#allocation27], %s4404
          %4406 = dma.done %s4403, 16
        $region192: #{tpu_custom_call.1} parent=175 // pred_fallthru
          _
        // Predicated region
        $region193: #{tpu_custom_call.1} parent=175 // pred_check
          %p4407 = pneg %p548
        $region194: #{tpu_custom_call.1} parent=175 // pred_check_branch
          %4409 = sbr.rel (%p4407) target = $region196
        $region195: #{tpu_custom_call.1} parent=175 // pred_region
          %s4410 = sand.u32 %s56, 1
          %s4411 = scalar_lea.sflag [#allocation28], %s4410
          %s4412 = sand.u32 %s533, 1
          %s4413 = scalar_lea.vmem [#allocation29], %s4412
          %4414 = dma.done %s4411, 16
        $region196: #{tpu_custom_call.1} parent=175 // pred_fallthru
          _
        // Predicated region
        $region197: #{tpu_custom_call.1} parent=175 // pred_check
          %p4415 = pneg %p574
        $region198: #{tpu_custom_call.1} parent=175 // pred_check_branch
          %4417 = sbr.rel (%p4415) target = $region200
        $region199: #{tpu_custom_call.1} parent=175 // pred_region
          %s4418 = sand.u32 %s56, 1
          %s4419 = scalar_lea.sflag [#allocation31], %s4418
          %s4420 = sand.u32 %s559, 1
          %s4421 = smul.addr %s4420, 64
          %s4422 = scalar_lea.vmem [#allocation30], %s4421
          %4423 = dma.done %s4419, 1024
        $region200: #{tpu_custom_call.1} parent=175 // pred_fallthru
          _
        // Predicated region
        $region201: #{tpu_custom_call.1} parent=175 // pred_check
          %p4424 = pneg %p600
        $region202: #{tpu_custom_call.1} parent=175 // pred_check_branch
          %4426 = sbr.rel (%p4424) target = $region204
        $region203: #{tpu_custom_call.1} parent=175 // pred_region
          %s4427 = sand.u32 %s56, 1
          %s4428 = scalar_lea.sflag [#allocation31], %s4427
          %s4429 = sand.u32 %s585, 1
          %s4430 = smul.addr %s4429, 128
          %s4431 = scalar_lea.vmem [#allocation32], %s4430
          %4432 = dma.done %s4428, 2048
        $region204: #{tpu_custom_call.1} parent=175 // pred_fallthru
          _
      $region176: #{tpu_custom_call.1} parent=5 // pred_fallthru
        _
    $region6: #{tpu_custom_call.1} parent=1 // loop_footer
      %s54 = sadd.s32 1, %s50
    $region7: #{tpu_custom_call.1} parent=1 // loop_footer_branch
      %49 = sbr.rel target = $region3
    $region8: #{tpu_custom_call.1} parent=1 // loop_exit
      _
    %4433 = vsyncpa [#allocation4], 1
    %s4434 = scalar_lea.sflag [#allocation4], 1
    %4435 = vsyncpa %s4434, 1
    %4436 = vsyncpa [#allocation7], 1
    %4437 = vsyncpa [#allocation10], 1
    %4438 = vsyncpa [#allocation13], 1
    %4439 = vsyncpa [#allocation16], 1
    %4440 = vsyncpa [#allocation19], 1
    %4441 = vsyncpa [#allocation22], 1
    %4442 = vsyncpa [#allocation5], 1
    %s4443 = scalar_lea.sflag [#allocation5], 1
    %4444 = vsyncpa %s4443, 1
    %4445 = vsyncpa [#allocation25], 1
    %s4446 = scalar_lea.sflag [#allocation25], 1
    %4447 = vsyncpa %s4446, 1
    %4448 = vsyncpa [#allocation28], 1
    %s4449 = scalar_lea.sflag [#allocation28], 1
    %4450 = vsyncpa %s4449, 1
    %4451 = vsyncpa [#allocation31], 1
    %s4452 = scalar_lea.sflag [#allocation31], 1
    %4453 = vsyncpa %s4452, 1

</llo_original>
